<compile_context>
chip_gen: v5e
topology: v5e:2x2
jax: 0.10.0
libtpu: 0.0.40
codegen_flags: <defaults>
</compile_context>

<pallas_src>
import math

import jax
import jax.numpy as jnp
from jax.experimental import pallas as pl
from jax.experimental.pallas import tpu as pltpu

# ---- fixed NTM hyper-params from the module (NTM(..., 100, 1, 1, 1, 128, 20, 160)) ----
CTRL = 100       # controller size
CP = 128         # lane-padded controller width (gate blocks / h / c)
N_MEM = 128      # memory rows
M_MEM = 20       # memory cols
BATCH = 160      # hard-coded batch (forward checks inputs.shape[0] == 160)
BB = 80          # per-grid-step batch block (2 blocks -> both TCs on v7x)
RD = M_MEM + 6   # read-head fc width = M + 1 + 1 + 3 + 1 = 26


def _sigmoid(x):
    return 1.0 / (1.0 + jnp.exp(-x))


def _softplus(x):
    return jnp.logaddexp(x, 0.0)


def _softmax_lastdim(x):
    m = jnp.max(x, axis=-1, keepdims=True)
    e = jnp.exp(x - m)
    return e * pl.reciprocal(jnp.sum(e, axis=-1, keepdims=True), approx=True)


def ntm_agent_kernel(
    # inputs / parameters (batch-blocked or whole-array VMEM tiles)
    inputs_ref, w_fc1_ref, b_fc1_ref,
    w_ih_x_ref, w_hh_ref, b_lstm_ref,
    h_prev_ref, c_prev_ref,
    w_hro_ref, b_hro_ref,
    memT_ref, m_norm_ref, mem_ref,
    w_out_r_ref, w_prev_read_ref,
    # outputs
    q_ref, h_out_ref, c_out_ref,
):
    f32 = jnp.float32

    # ---- agent fc1 + relu ----
    x = jnp.dot(inputs_ref[...], w_fc1_ref[...], preferred_element_type=f32)
    x = jnp.maximum(x + b_fc1_ref[...], 0.0)                           # (BB, H)

    # ---- LSTM controller, single layer / single timestep ----
    # constant r_prev @ w_ih_r already folded into b_lstm by the wrapper;
    # gate blocks are lane-aligned at multiples of CP=128 (padded cols stay 0
    # through c/h because c_prev pads are 0 and tanh(0)=0).
    gates = (jnp.dot(x, w_ih_x_ref[...], preferred_element_type=f32)
             + jnp.dot(h_prev_ref[...], w_hh_ref[...], preferred_element_type=f32)
             + b_lstm_ref[...])                                        # (BB, 4*CP)
    i_g = _sigmoid(gates[:, 0 * CP:1 * CP])
    f_g = _sigmoid(gates[:, 1 * CP:2 * CP])
    g_g = jnp.tanh(gates[:, 2 * CP:3 * CP])
    o_g = _sigmoid(gates[:, 3 * CP:4 * CP])
    c = f_g * c_prev_ref[...] + i_g * g_g                              # (BB, CP)
    h = o_g * jnp.tanh(c)                                              # (BB, CP)

    # ---- fused [read-head fc | output fc (h part)] : one matmul, aligned split ----
    hro = jnp.dot(h, w_hro_ref[...], preferred_element_type=f32) + b_hro_ref[...]
    ro = hro[:, 0:CP]              # read-head fc output (first 26 cols real)
    q_pre = hro[:, CP:2 * CP]      # h @ w_out_h + b_out, padded to 128 lanes

    k = jnp.tanh(ro[:, :M_MEM])                            # key           (BB, M)
    beta = _softplus(ro[:, M_MEM:M_MEM + 1])               # key strength  (BB, 1)
    g = _sigmoid(ro[:, M_MEM + 1:M_MEM + 2])               # gate          (BB, 1)
    s = _softmax_lastdim(ro[:, M_MEM + 2:M_MEM + 5])       # shift weights (BB, 3)
    sharpen = 1.0 + _softplus(ro[:, M_MEM + 5:M_MEM + 6])  # sharpen       (BB, 1)

    # ---- content addressing: cosine similarity against memory rows ----
    dots = jnp.dot(k, memT_ref[...], preferred_element_type=f32)       # (BB, N)
    k_norm = jnp.sqrt(jnp.sum(k * k, axis=1, keepdims=True))           # (BB, 1)
    denom = jnp.maximum(k_norm * m_norm_ref[...], 1e-8)                # (BB, N)
    cos = dots * pl.reciprocal(denom, approx=True)
    wc = _softmax_lastdim(beta * cos)                                  # (BB, N)

    # ---- gated interpolation with previous address ----
    wg = g * wc + (1.0 - g) * w_prev_read_ref[...]

    # ---- circular convolution with 3-tap shift kernel (XLU rolls) ----
    wg_m1 = pltpu.roll(wg, shift=1, axis=1)          # wg[(j-1) mod N]
    wg_p1 = pltpu.roll(wg, shift=N_MEM - 1, axis=1)  # wg[(j+1) mod N]
    ws = wg_m1 * s[:, 0:1] + wg * s[:, 1:2] + wg_p1 * s[:, 2:3]

    # ---- sharpen + renormalize ----
    ws = jnp.exp(sharpen * jnp.log(ws + 1e-30))      # ws ** sharpen (ws >= 0)
    wt = ws * pl.reciprocal(jnp.sum(ws, axis=1, keepdims=True) + 1e-16,
                            approx=True)

    # ---- memory read ----
    r = jnp.dot(wt, mem_ref[...], preferred_element_type=f32)          # (BB, M)

    # ---- output fc on [controller_out, read] + sigmoid (lane-dense (BB,128)) ----
    q = _sigmoid(q_pre + jnp.dot(r, w_out_r_ref[...], preferred_element_type=f32))

    q_ref[...] = q
    h_out_ref[...] = h
    c_out_ref[...] = c


def prepare_params(p):
    """One-time parameter preprocessing: fold constants, pad to lane-aligned layouts."""
    n_act = p["b_out"].shape[1]

    # fold the constant r_prev matmul into the LSTM bias
    b_lstm_eff = jnp.dot(p["r_prev"], p["w_ih_r"]) + p["b_lstm"]       # (1, 4*CTRL)

    def pad_gate_cols(w):
        out = jnp.zeros((w.shape[0], 4 * CP), jnp.float32)
        for gi in range(4):
            out = out.at[:, gi * CP:gi * CP + CTRL].set(
                w[:, gi * CTRL:(gi + 1) * CTRL])
        return out

    w_ih_x = pad_gate_cols(p["w_ih_x"])                                # (H, 4*CP)
    w_hh = jnp.zeros((CP, 4 * CP), jnp.float32).at[:CTRL].set(
        pad_gate_cols(p["w_hh"]))                                      # (CP, 4*CP)
    b_lstm = pad_gate_cols(b_lstm_eff)                                 # (1, 4*CP)

    pad_batch = lambda a: jnp.zeros((BATCH, CP), jnp.float32).at[:, :CTRL].set(a)
    h_prev = pad_batch(p["h_prev"])
    c_prev = pad_batch(p["c_prev"])

    # fused [read-head fc | output fc (h part)] weight/bias, each half 128-lane padded
    w_hro = jnp.zeros((CP, 2 * CP), jnp.float32)
    w_hro = w_hro.at[:CTRL, :RD].set(p["w_read"])
    w_hro = w_hro.at[:CTRL, CP:CP + n_act].set(p["w_out_h"])
    b_hro = jnp.zeros((1, 2 * CP), jnp.float32)
    b_hro = b_hro.at[:, :RD].set(p["b_read"])
    b_hro = b_hro.at[:, CP:CP + n_act].set(p["b_out"])

    # constant memory: transpose + row norms precomputed on the host side
    memT = p["mem"].T                                                  # (M, N)
    m_norm = jnp.sqrt(jnp.sum(p["mem"] * p["mem"], axis=1))[None, :]   # (1, N)

    w_out_r = jnp.zeros((M_MEM, CP), jnp.float32).at[:, :n_act].set(p["w_out_r"])

    return dict(
        n_act=n_act,
        w_fc1=p["w_fc1"], b_fc1=p["b_fc1"],
        w_ih_x=w_ih_x, w_hh=w_hh, b_lstm=b_lstm,
        h_prev=h_prev, c_prev=c_prev,
        w_hro=w_hro, b_hro=b_hro,
        memT=memT, m_norm=m_norm, mem=p["mem"],
        w_out_r=w_out_r, w_prev_read=p["w_prev_read"],
    )


def ntm_agent_forward(inputs, hidden_state, kp):
    """Mirrors NTMAgent.forward(inputs, hidden_state) -> (q, controller_state)."""
    if inputs.shape[0] != BATCH:
        # degenerate branch of the PyTorch module
        return (jnp.zeros((5, 11), jnp.float32),
                jnp.zeros(hidden_state.shape, jnp.float32))

    n_act = kp["n_act"]
    d_in = inputs.shape[1]

    def batch_spec(ncols):
        return pl.BlockSpec((BB, ncols), lambda i: (i, 0))

    def full_spec(a):
        return pl.BlockSpec(a.shape, lambda i: (0, 0))

    args = (
        inputs,
        kp["w_fc1"], kp["b_fc1"],
        kp["w_ih_x"], kp["w_hh"], kp["b_lstm"],
        kp["h_prev"], kp["c_prev"],
        kp["w_hro"], kp["b_hro"],
        kp["memT"], kp["m_norm"], kp["mem"],
        kp["w_out_r"], kp["w_prev_read"],
    )
    in_specs = [
        batch_spec(d_in),
        full_spec(kp["w_fc1"]), full_spec(kp["b_fc1"]),
        full_spec(kp["w_ih_x"]), full_spec(kp["w_hh"]), full_spec(kp["b_lstm"]),
        batch_spec(CP), batch_spec(CP),
        full_spec(kp["w_hro"]), full_spec(kp["b_hro"]),
        full_spec(kp["memT"]), full_spec(kp["m_norm"]), full_spec(kp["mem"]),
        full_spec(kp["w_out_r"]), batch_spec(N_MEM),
    ]
    out_specs = (
        pl.BlockSpec((BB, CP), lambda i: (i, 0)),
        pl.BlockSpec((BB, CP), lambda i: (i, 0)),
        pl.BlockSpec((BB, CP), lambda i: (i, 0)),
    )

    q_p, h_p, c_p = pl.pallas_call(
        ntm_agent_kernel,
        grid=(BATCH // BB,),
        out_shape=(
            jax.ShapeDtypeStruct((BATCH, CP), jnp.float32),   # q, lane-dense
            jax.ShapeDtypeStruct((BATCH, CP), jnp.float32),   # h (padded)
            jax.ShapeDtypeStruct((BATCH, CP), jnp.float32),   # c (padded)
        ),
        in_specs=in_specs,
        out_specs=out_specs,
        compiler_params=pltpu.CompilerParams(
            dimension_semantics=("parallel",)),
    )(*args)

    q = q_p[:, :n_act]
    h_n = h_p[:, :CTRL].reshape(1, BATCH, CTRL)
    c_n = c_p[:, :CTRL].reshape(1, BATCH, CTRL)
    # controller_state layout matches torch nn.LSTM: (num_layers=1, batch, hidden)
    return q, (h_n, c_n)


def init_params(key, d_in, h_rnn, n_act):
    """Deterministic parameter init matching the module's shapes/init schemes."""
    ks = jax.random.split(key, 12)
    uni = lambda k, shape, b: jax.random.uniform(k, shape, jnp.float32, -b, b)

    # agent fc1 (PyTorch default Linear init)
    b1 = 1.0 / math.sqrt(d_in)
    w_fc1 = uni(ks[0], (d_in, h_rnn), b1)
    b_fc1 = uni(ks[1], (1, h_rnn), b1)

    # LSTM controller: num_inputs = h_rnn + M, hidden = CTRL, biases = 0
    stdev = 5.0 / math.sqrt((h_rnn + M_MEM) + CTRL)
    w_ih = uni(ks[2], (h_rnn + M_MEM, 4 * CTRL), stdev)
    w_ih_x, w_ih_r = w_ih[:h_rnn], w_ih[h_rnn:]
    w_hh = uni(ks[3], (CTRL, 4 * CTRL), stdev)
    b_lstm = jnp.zeros((1, 4 * CTRL), jnp.float32)        # b_ih + b_hh, both zero
    h_prev = 0.05 * jax.random.normal(ks[4], (BATCH, CTRL), jnp.float32)
    c_prev = 0.05 * jax.random.normal(ks[5], (BATCH, CTRL), jnp.float32)

    # read head fc: out dims = M + 1 + 1 + 3 + 1 = 26, xavier_uniform gain 1.4
    xb = 1.4 * math.sqrt(6.0 / (CTRL + RD))
    w_read = uni(ks[6], (CTRL, RD), xb)
    b_read = 0.01 * jax.random.normal(ks[7], (1, RD), jnp.float32)

    # initial read vector bias (read0_bias = randn(1, M) * 0.01, repeated over batch)
    r_prev = 0.01 * jax.random.normal(ks[8], (1, M_MEM), jnp.float32)

    # memory bank (const 1e-6 init) and previous read address (zeros)
    mem = jnp.full((N_MEM, M_MEM), 1e-6, jnp.float32)
    w_prev_read = jnp.zeros((BATCH, N_MEM), jnp.float32)

    # NTMCell output fc: in = CTRL + M, out = n_act, xavier_uniform gain 1
    xb2 = math.sqrt(6.0 / ((CTRL + M_MEM) + n_act))
    w_out = uni(ks[9], (CTRL + M_MEM, n_act), xb2)
    w_out_h, w_out_r = w_out[:CTRL], w_out[CTRL:]
    b_out = 0.01 * jax.random.normal(ks[10], (1, n_act), jnp.float32)

    return dict(
        w_fc1=w_fc1, b_fc1=b_fc1, r_prev=r_prev,
        w_ih_x=w_ih_x, w_ih_r=w_ih_r, w_hh=w_hh, b_lstm=b_lstm,
        h_prev=h_prev, c_prev=c_prev,
        w_read=w_read, b_read=b_read,
        mem=mem, w_prev_read=w_prev_read,
        w_out_h=w_out_h, w_out_r=w_out_r, b_out=b_out,
    )


if __name__ == "__main__":
    D_IN, H_RNN, N_ACT = 32, 64, 11   # input_shape, args.rnn_hidden_dim, args.n_actions

    key = jax.random.PRNGKey(0)
    k_params, k_x = jax.random.split(key)
    params = init_params(k_params, D_IN, H_RNN, N_ACT)
    kparams = prepare_params(params)          # one-time layout prep (cacheable)

    inputs = jax.random.normal(k_x, (BATCH, D_IN), jnp.float32)   # shape[0] must be 160
    hidden = jnp.zeros((1, H_RNN), jnp.float32)                   # agent init_hidden()

    q, (h_n, c_n) = ntm_agent_forward(inputs, hidden, kparams)
    jax.block_until_ready((q, h_n, c_n))

    assert q.shape == (BATCH, N_ACT)
    assert h_n.shape == (1, BATCH, CTRL) and c_n.shape == (1, BATCH, CTRL)
    assert bool(jnp.all(jnp.isfinite(q)))
    assert bool(jnp.all(jnp.isfinite(h_n))) and bool(jnp.all(jnp.isfinite(c_n)))
    print("KERNEL_OK")
</pallas_src>

<mosaic_0001>
module attributes {stable_mosaic.version = 11 : i64} {
  func.func @ntm_agent_kernel(%arg0: i32, %arg1: memref<80x32xf32, #tpu.memory_space<vmem>>, %arg2: memref<32x64xf32, #tpu.memory_space<vmem>>, %arg3: memref<1x64xf32, #tpu.memory_space<vmem>>, %arg4: memref<64x512xf32, #tpu.memory_space<vmem>>, %arg5: memref<128x512xf32, #tpu.memory_space<vmem>>, %arg6: memref<1x512xf32, #tpu.memory_space<vmem>>, %arg7: memref<80x128xf32, #tpu.memory_space<vmem>>, %arg8: memref<80x128xf32, #tpu.memory_space<vmem>>, %arg9: memref<128x256xf32, #tpu.memory_space<vmem>>, %arg10: memref<1x256xf32, #tpu.memory_space<vmem>>, %arg11: memref<20x128xf32, #tpu.memory_space<vmem>>, %arg12: memref<1x128xf32, #tpu.memory_space<vmem>>, %arg13: memref<128x20xf32, #tpu.memory_space<vmem>>, %arg14: memref<20x128xf32, #tpu.memory_space<vmem>>, %arg15: memref<80x128xf32, #tpu.memory_space<vmem>>, %arg16: memref<80x128xf32, #tpu.memory_space<vmem>>, %arg17: memref<80x128xf32, #tpu.memory_space<vmem>>, %arg18: memref<80x128xf32, #tpu.memory_space<vmem>>) attributes {dimension_semantics = [#tpu.dimension_semantics<parallel>], iteration_bounds = array<i64: 2>, scalar_prefetch = 0 : i64, scratch_operands = 0 : i64, tpu.core_type = #tpu.core_type<tc>, window_params = [{transform_indices = @transform_0, window_bounds = array<i64: 80, 32>}, {pipeline_mode = #tpu.pipeline_mode<synchronous>, transform_indices = @transform_1, window_bounds = array<i64: 32, 64>}, {pipeline_mode = #tpu.pipeline_mode<synchronous>, transform_indices = @transform_2, window_bounds = array<i64: 1, 64>}, {pipeline_mode = #tpu.pipeline_mode<synchronous>, transform_indices = @transform_3, window_bounds = array<i64: 64, 512>}, {pipeline_mode = #tpu.pipeline_mode<synchronous>, transform_indices = @transform_4, window_bounds = array<i64: 128, 512>}, {pipeline_mode = #tpu.pipeline_mode<synchronous>, transform_indices = @transform_5, window_bounds = array<i64: 1, 512>}, {transform_indices = @transform_6, window_bounds = array<i64: 80, 128>}, {transform_indices = @transform_7, window_bounds = array<i64: 80, 128>}, {pipeline_mode = #tpu.pipeline_mode<synchronous>, transform_indices = @transform_8, window_bounds = array<i64: 128, 256>}, {pipeline_mode = #tpu.pipeline_mode<synchronous>, transform_indices = @transform_9, window_bounds = array<i64: 1, 256>}, {pipeline_mode = #tpu.pipeline_mode<synchronous>, transform_indices = @transform_10, window_bounds = array<i64: 20, 128>}, {pipeline_mode = #tpu.pipeline_mode<synchronous>, transform_indices = @transform_11, window_bounds = array<i64: 1, 128>}, {pipeline_mode = #tpu.pipeline_mode<synchronous>, transform_indices = @transform_12, window_bounds = array<i64: 128, 20>}, {pipeline_mode = #tpu.pipeline_mode<synchronous>, transform_indices = @transform_13, window_bounds = array<i64: 20, 128>}, {transform_indices = @transform_14, window_bounds = array<i64: 80, 128>}, {transform_indices = @transform_15, window_bounds = array<i64: 80, 128>}, {transform_indices = @transform_16, window_bounds = array<i64: 80, 128>}, {transform_indices = @transform_17, window_bounds = array<i64: 80, 128>}]} {
    %c0 = arith.constant 0 : index
    %c0_0 = arith.constant 0 : index
    %0 = vector.load %arg1[%c0, %c0_0] : memref<80x32xf32, #tpu.memory_space<vmem>>, vector<80x32xf32>
    %c0_1 = arith.constant 0 : index
    %c0_2 = arith.constant 0 : index
    %1 = vector.load %arg2[%c0_1, %c0_2] : memref<32x64xf32, #tpu.memory_space<vmem>>, vector<32x64xf32>
    %cst = arith.constant dense<0.000000e+00> : vector<80x64xf32>
    %2 = tpu.matmul %0, %1, %cst {dimension_numbers = #tpu.dot_dimension_numbers<[1], [0], [0], [1], [0, 0, 1, 1], [], []>} : vector<80x32xf32>, vector<32x64xf32>, vector<80x64xf32> -> vector<80x64xf32>
    %c0_3 = arith.constant 0 : index
    %c0_4 = arith.constant 0 : index
    %3 = vector.load %arg3[%c0_3, %c0_4] : memref<1x64xf32, #tpu.memory_space<vmem>>, vector<1x64xf32>
    %4 = vector.broadcast %3 : vector<1x64xf32> to vector<80x64xf32>
    %5 = arith.addf %2, %4 : vector<80x64xf32>
    %cst_5 = arith.constant 0.000000e+00 : f32
    %6 = vector.broadcast %cst_5 : f32 to vector<80x64xf32>
    %7 = arith.maximumf %5, %6 : vector<80x64xf32>
    %c0_6 = arith.constant 0 : index
    %c0_7 = arith.constant 0 : index
    %8 = vector.load %arg4[%c0_6, %c0_7] : memref<64x512xf32, #tpu.memory_space<vmem>>, vector<64x512xf32>
    %cst_8 = arith.constant dense<0.000000e+00> : vector<80x512xf32>
    %9 = tpu.matmul %7, %8, %cst_8 {dimension_numbers = #tpu.dot_dimension_numbers<[1], [0], [0], [1], [0, 0, 1, 1], [], []>} : vector<80x64xf32>, vector<64x512xf32>, vector<80x512xf32> -> vector<80x512xf32>
    %c0_9 = arith.constant 0 : index
    %c0_10 = arith.constant 0 : index
    %10 = vector.load %arg7[%c0_9, %c0_10] : memref<80x128xf32, #tpu.memory_space<vmem>>, vector<80x128xf32>
    %c0_11 = arith.constant 0 : index
    %c0_12 = arith.constant 0 : index
    %11 = vector.load %arg5[%c0_11, %c0_12] : memref<128x512xf32, #tpu.memory_space<vmem>>, vector<128x512xf32>
    %cst_13 = arith.constant dense<0.000000e+00> : vector<80x512xf32>
    %12 = tpu.matmul %10, %11, %cst_13 {dimension_numbers = #tpu.dot_dimension_numbers<[1], [0], [0], [1], [0, 0, 1, 1], [], []>} : vector<80x128xf32>, vector<128x512xf32>, vector<80x512xf32> -> vector<80x512xf32>
    %13 = arith.addf %9, %12 : vector<80x512xf32>
    %c0_14 = arith.constant 0 : index
    %c0_15 = arith.constant 0 : index
    %14 = vector.load %arg6[%c0_14, %c0_15] : memref<1x512xf32, #tpu.memory_space<vmem>>, vector<1x512xf32>
    %15 = vector.broadcast %14 : vector<1x512xf32> to vector<80x512xf32>
    %16 = arith.addf %13, %15 : vector<80x512xf32>
    %17 = vector.extract_strided_slice %16 {offsets = [0, 0], sizes = [80, 128], strides = [1, 1]} : vector<80x512xf32> to vector<80x128xf32>
    %cst_16 = arith.constant 0.000000e+00 : f32
    %18 = vector.broadcast %cst_16 : f32 to vector<80x128xf32>
    %19 = arith.subf %18, %17 : vector<80x128xf32>
    %20 = math.exp %19 : vector<80x128xf32>
    %cst_17 = arith.constant 1.000000e+00 : f32
    %21 = vector.broadcast %cst_17 : f32 to vector<80x128xf32>
    %22 = arith.addf %21, %20 : vector<80x128xf32>
    %cst_18 = arith.constant 1.000000e+00 : f32
    %23 = vector.broadcast %cst_18 : f32 to vector<80x128xf32>
    %24 = arith.divf %23, %22 : vector<80x128xf32>
    %25 = vector.extract_strided_slice %16 {offsets = [0, 128], sizes = [80, 128], strides = [1, 1]} : vector<80x512xf32> to vector<80x128xf32>
    %cst_19 = arith.constant 0.000000e+00 : f32
    %26 = vector.broadcast %cst_19 : f32 to vector<80x128xf32>
    %27 = arith.subf %26, %25 : vector<80x128xf32>
    %28 = math.exp %27 : vector<80x128xf32>
    %cst_20 = arith.constant 1.000000e+00 : f32
    %29 = vector.broadcast %cst_20 : f32 to vector<80x128xf32>
    %30 = arith.addf %29, %28 : vector<80x128xf32>
    %cst_21 = arith.constant 1.000000e+00 : f32
    %31 = vector.broadcast %cst_21 : f32 to vector<80x128xf32>
    %32 = arith.divf %31, %30 : vector<80x128xf32>
    %33 = vector.extract_strided_slice %16 {offsets = [0, 256], sizes = [80, 128], strides = [1, 1]} : vector<80x512xf32> to vector<80x128xf32>
    %34 = math.tanh %33 : vector<80x128xf32>
    %35 = vector.extract_strided_slice %16 {offsets = [0, 384], sizes = [80, 128], strides = [1, 1]} : vector<80x512xf32> to vector<80x128xf32>
    %cst_22 = arith.constant 0.000000e+00 : f32
    %36 = vector.broadcast %cst_22 : f32 to vector<80x128xf32>
    %37 = arith.subf %36, %35 : vector<80x128xf32>
    %38 = math.exp %37 : vector<80x128xf32>
    %cst_23 = arith.constant 1.000000e+00 : f32
    %39 = vector.broadcast %cst_23 : f32 to vector<80x128xf32>
    %40 = arith.addf %39, %38 : vector<80x128xf32>
    %cst_24 = arith.constant 1.000000e+00 : f32
    %41 = vector.broadcast %cst_24 : f32 to vector<80x128xf32>
    %42 = arith.divf %41, %40 : vector<80x128xf32>
    %c0_25 = arith.constant 0 : index
    %c0_26 = arith.constant 0 : index
    %43 = vector.load %arg8[%c0_25, %c0_26] : memref<80x128xf32, #tpu.memory_space<vmem>>, vector<80x128xf32>
    %44 = arith.mulf %32, %43 : vector<80x128xf32>
    %45 = arith.mulf %24, %34 : vector<80x128xf32>
    %46 = arith.addf %44, %45 : vector<80x128xf32>
    %47 = math.tanh %46 : vector<80x128xf32>
    %48 = arith.mulf %42, %47 : vector<80x128xf32>
    %c0_27 = arith.constant 0 : index
    %c0_28 = arith.constant 0 : index
    %49 = vector.load %arg9[%c0_27, %c0_28] : memref<128x256xf32, #tpu.memory_space<vmem>>, vector<128x256xf32>
    %cst_29 = arith.constant dense<0.000000e+00> : vector<80x256xf32>
    %50 = tpu.matmul %48, %49, %cst_29 {dimension_numbers = #tpu.dot_dimension_numbers<[1], [0], [0], [1], [0, 0, 1, 1], [], []>} : vector<80x128xf32>, vector<128x256xf32>, vector<80x256xf32> -> vector<80x256xf32>
    %c0_30 = arith.constant 0 : index
    %c0_31 = arith.constant 0 : index
    %51 = vector.load %arg10[%c0_30, %c0_31] : memref<1x256xf32, #tpu.memory_space<vmem>>, vector<1x256xf32>
    %52 = vector.broadcast %51 : vector<1x256xf32> to vector<80x256xf32>
    %53 = arith.addf %50, %52 : vector<80x256xf32>
    %54 = vector.extract_strided_slice %53 {offsets = [0, 0], sizes = [80, 128], strides = [1, 1]} : vector<80x256xf32> to vector<80x128xf32>
    %55 = vector.extract_strided_slice %53 {offsets = [0, 128], sizes = [80, 128], strides = [1, 1]} : vector<80x256xf32> to vector<80x128xf32>
    %56 = vector.extract_strided_slice %54 {offsets = [0, 0], sizes = [80, 20], strides = [1, 1]} : vector<80x128xf32> to vector<80x20xf32>
    %57 = math.tanh %56 : vector<80x20xf32>
    %58 = vector.extract_strided_slice %54 {offsets = [0, 20], sizes = [80, 1], strides = [1, 1]} : vector<80x128xf32> to vector<80x1xf32>
    %cst_32 = arith.constant 0.000000e+00 : f32
    %59 = vector.broadcast %cst_32 : f32 to vector<80x1xf32>
    %60 = arith.maximumf %58, %59 : vector<80x1xf32>
    %61 = vector.broadcast %cst_32 : f32 to vector<80x1xf32>
    %62 = arith.subf %58, %61 : vector<80x1xf32>
    %63 = arith.cmpf one, %62, %62 : vector<80x1xf32>
    %64 = vector.broadcast %cst_32 : f32 to vector<80x1xf32>
    %65 = arith.addf %58, %64 : vector<80x1xf32>
    %66 = math.absf %62 : vector<80x1xf32>
    %cst_33 = arith.constant 0.000000e+00 : f32
    %67 = vector.broadcast %cst_33 : f32 to vector<80x1xf32>
    %68 = arith.subf %67, %66 : vector<80x1xf32>
    %69 = math.exp %68 : vector<80x1xf32>
    %70 = math.log1p %69 : vector<80x1xf32>
    %71 = arith.addf %60, %70 : vector<80x1xf32>
    %72 = arith.select %63, %65, %71 : vector<80x1xi1>, vector<80x1xf32>
    %73 = vector.extract_strided_slice %54 {offsets = [0, 21], sizes = [80, 1], strides = [1, 1]} : vector<80x128xf32> to vector<80x1xf32>
    %cst_34 = arith.constant 0.000000e+00 : f32
    %74 = vector.broadcast %cst_34 : f32 to vector<80x1xf32>
    %75 = arith.subf %74, %73 : vector<80x1xf32>
    %76 = math.exp %75 : vector<80x1xf32>
    %cst_35 = arith.constant 1.000000e+00 : f32
    %77 = vector.broadcast %cst_35 : f32 to vector<80x1xf32>
    %78 = arith.addf %77, %76 : vector<80x1xf32>
    %cst_36 = arith.constant 1.000000e+00 : f32
    %79 = vector.broadcast %cst_36 : f32 to vector<80x1xf32>
    %80 = arith.divf %79, %78 : vector<80x1xf32>
    %81 = vector.extract_strided_slice %54 {offsets = [0, 22], sizes = [80, 3], strides = [1, 1]} : vector<80x128xf32> to vector<80x3xf32>
    %cst_37 = arith.constant dense<0xFF800000> : vector<80xf32>
    %82 = vector.multi_reduction <maximumf>, %81, %cst_37 [1] : vector<80x3xf32> to vector<80xf32>
    %83 = vector.shape_cast %82 : vector<80xf32> to vector<80x1xf32>
    %84 = vector.broadcast %83 : vector<80x1xf32> to vector<80x3xf32>
    %85 = arith.subf %81, %84 : vector<80x3xf32>
    %86 = math.exp %85 : vector<80x3xf32>
    %cst_38 = arith.constant dense<0.000000e+00> : vector<80xf32>
    %87 = vector.multi_reduction <add>, %86, %cst_38 [1] : vector<80x3xf32> to vector<80xf32>
    %88 = vector.shape_cast %87 : vector<80xf32> to vector<80x1xf32>
    %89 = tpu.reciprocal %88 {approx = true} : vector<80x1xf32> -> vector<80x1xf32>
    %90 = vector.broadcast %89 : vector<80x1xf32> to vector<80x3xf32>
    %91 = arith.mulf %86, %90 : vector<80x3xf32>
    %92 = vector.extract_strided_slice %54 {offsets = [0, 25], sizes = [80, 1], strides = [1, 1]} : vector<80x128xf32> to vector<80x1xf32>
    %cst_39 = arith.constant 0.000000e+00 : f32
    %93 = vector.broadcast %cst_39 : f32 to vector<80x1xf32>
    %94 = arith.maximumf %92, %93 : vector<80x1xf32>
    %95 = vector.broadcast %cst_39 : f32 to vector<80x1xf32>
    %96 = arith.subf %92, %95 : vector<80x1xf32>
    %97 = arith.cmpf one, %96, %96 : vector<80x1xf32>
    %98 = vector.broadcast %cst_39 : f32 to vector<80x1xf32>
    %99 = arith.addf %92, %98 : vector<80x1xf32>
    %100 = math.absf %96 : vector<80x1xf32>
    %cst_40 = arith.constant 0.000000e+00 : f32
    %101 = vector.broadcast %cst_40 : f32 to vector<80x1xf32>
    %102 = arith.subf %101, %100 : vector<80x1xf32>
    %103 = math.exp %102 : vector<80x1xf32>
    %104 = math.log1p %103 : vector<80x1xf32>
    %105 = arith.addf %94, %104 : vector<80x1xf32>
    %106 = arith.select %97, %99, %105 : vector<80x1xi1>, vector<80x1xf32>
    %cst_41 = arith.constant 1.000000e+00 : f32
    %107 = vector.broadcast %cst_41 : f32 to vector<80x1xf32>
    %108 = arith.addf %107, %106 : vector<80x1xf32>
    %c0_42 = arith.constant 0 : index
    %c0_43 = arith.constant 0 : index
    %109 = vector.load %arg11[%c0_42, %c0_43] : memref<20x128xf32, #tpu.memory_space<vmem>>, vector<20x128xf32>
    %cst_44 = arith.constant dense<0.000000e+00> : vector<80x128xf32>
    %110 = tpu.matmul %57, %109, %cst_44 {dimension_numbers = #tpu.dot_dimension_numbers<[1], [0], [0], [1], [0, 0, 1, 1], [], []>} : vector<80x20xf32>, vector<20x128xf32>, vector<80x128xf32> -> vector<80x128xf32>
    %111 = arith.mulf %57, %57 : vector<80x20xf32>
    %cst_45 = arith.constant dense<0.000000e+00> : vector<80xf32>
    %112 = vector.multi_reduction <add>, %111, %cst_45 [1] : vector<80x20xf32> to vector<80xf32>
    %113 = vector.shape_cast %112 : vector<80xf32> to vector<80x1xf32>
    %114 = math.sqrt %113 : vector<80x1xf32>
    %c0_46 = arith.constant 0 : index
    %c0_47 = arith.constant 0 : index
    %115 = vector.load %arg12[%c0_46, %c0_47] : memref<1x128xf32, #tpu.memory_space<vmem>>, vector<1x128xf32>
    %116 = vector.broadcast %114 : vector<80x1xf32> to vector<80x128xf32>
    %117 = vector.broadcast %115 : vector<1x128xf32> to vector<80x128xf32>
    %118 = arith.mulf %116, %117 : vector<80x128xf32>
    %cst_48 = arith.constant 9.99999993E-9 : f32
    %119 = vector.broadcast %cst_48 : f32 to vector<80x128xf32>
    %120 = arith.maximumf %118, %119 : vector<80x128xf32>
    %121 = tpu.reciprocal %120 {approx = true} : vector<80x128xf32> -> vector<80x128xf32>
    %122 = arith.mulf %110, %121 : vector<80x128xf32>
    %123 = vector.broadcast %72 : vector<80x1xf32> to vector<80x128xf32>
    %124 = arith.mulf %123, %122 : vector<80x128xf32>
    %cst_49 = arith.constant dense<0xFF800000> : vector<80xf32>
    %125 = vector.multi_reduction <maximumf>, %124, %cst_49 [1] : vector<80x128xf32> to vector<80xf32>
    %126 = vector.shape_cast %125 : vector<80xf32> to vector<80x1xf32>
    %127 = vector.broadcast %126 : vector<80x1xf32> to vector<80x128xf32>
    %128 = arith.subf %124, %127 : vector<80x128xf32>
    %129 = math.exp %128 : vector<80x128xf32>
    %cst_50 = arith.constant dense<0.000000e+00> : vector<80xf32>
    %130 = vector.multi_reduction <add>, %129, %cst_50 [1] : vector<80x128xf32> to vector<80xf32>
    %131 = vector.shape_cast %130 : vector<80xf32> to vector<80x1xf32>
    %132 = tpu.reciprocal %131 {approx = true} : vector<80x1xf32> -> vector<80x1xf32>
    %133 = vector.broadcast %132 : vector<80x1xf32> to vector<80x128xf32>
    %134 = arith.mulf %129, %133 : vector<80x128xf32>
    %135 = vector.broadcast %80 : vector<80x1xf32> to vector<80x128xf32>
    %136 = arith.mulf %135, %134 : vector<80x128xf32>
    %cst_51 = arith.constant 1.000000e+00 : f32
    %137 = vector.broadcast %cst_51 : f32 to vector<80x1xf32>
    %138 = arith.subf %137, %80 : vector<80x1xf32>
    %c0_52 = arith.constant 0 : index
    %c0_53 = arith.constant 0 : index
    %139 = vector.load %arg15[%c0_52, %c0_53] : memref<80x128xf32, #tpu.memory_space<vmem>>, vector<80x128xf32>
    %140 = vector.broadcast %138 : vector<80x1xf32> to vector<80x128xf32>
    %141 = arith.mulf %140, %139 : vector<80x128xf32>
    %142 = arith.addf %136, %141 : vector<80x128xf32>
    %c1_i32 = arith.constant 1 : i32
    %143 = tpu.dynamic_rotate %142 by %c1_i32 dim 1 : vector<80x128xf32>, i32 -> vector<80x128xf32>
    %c127_i32 = arith.constant 127 : i32
    %144 = tpu.dynamic_rotate %142 by %c127_i32 dim 1 : vector<80x128xf32>, i32 -> vector<80x128xf32>
    %145 = vector.extract_strided_slice %91 {offsets = [0, 0], sizes = [80, 1], strides = [1, 1]} : vector<80x3xf32> to vector<80x1xf32>
    %146 = vector.broadcast %145 : vector<80x1xf32> to vector<80x128xf32>
    %147 = arith.mulf %143, %146 : vector<80x128xf32>
    %148 = vector.extract_strided_slice %91 {offsets = [0, 1], sizes = [80, 1], strides = [1, 1]} : vector<80x3xf32> to vector<80x1xf32>
    %149 = vector.broadcast %148 : vector<80x1xf32> to vector<80x128xf32>
    %150 = arith.mulf %142, %149 : vector<80x128xf32>
    %151 = arith.addf %147, %150 : vector<80x128xf32>
    %152 = vector.extract_strided_slice %91 {offsets = [0, 2], sizes = [80, 1], strides = [1, 1]} : vector<80x3xf32> to vector<80x1xf32>
    %153 = vector.broadcast %152 : vector<80x1xf32> to vector<80x128xf32>
    %154 = arith.mulf %144, %153 : vector<80x128xf32>
    %155 = arith.addf %151, %154 : vector<80x128xf32>
    %cst_54 = arith.constant 1.000000e-30 : f32
    %156 = vector.broadcast %cst_54 : f32 to vector<80x128xf32>
    %157 = arith.addf %155, %156 : vector<80x128xf32>
    %158 = math.log %157 : vector<80x128xf32>
    %159 = vector.broadcast %108 : vector<80x1xf32> to vector<80x128xf32>
    %160 = arith.mulf %159, %158 : vector<80x128xf32>
    %161 = math.exp %160 : vector<80x128xf32>
    %cst_55 = arith.constant dense<0.000000e+00> : vector<80xf32>
    %162 = vector.multi_reduction <add>, %161, %cst_55 [1] : vector<80x128xf32> to vector<80xf32>
    %163 = vector.shape_cast %162 : vector<80xf32> to vector<80x1xf32>
    %cst_56 = arith.constant 1.000000e-16 : f32
    %164 = vector.broadcast %cst_56 : f32 to vector<80x1xf32>
    %165 = arith.addf %163, %164 : vector<80x1xf32>
    %166 = tpu.reciprocal %165 {approx = true} : vector<80x1xf32> -> vector<80x1xf32>
    %167 = vector.broadcast %166 : vector<80x1xf32> to vector<80x128xf32>
    %168 = arith.mulf %161, %167 : vector<80x128xf32>
    %c0_57 = arith.constant 0 : index
    %c0_58 = arith.constant 0 : index
    %169 = vector.load %arg13[%c0_57, %c0_58] : memref<128x20xf32, #tpu.memory_space<vmem>>, vector<128x20xf32>
    %cst_59 = arith.constant dense<0.000000e+00> : vector<80x20xf32>
    %170 = tpu.matmul %168, %169, %cst_59 {dimension_numbers = #tpu.dot_dimension_numbers<[1], [0], [0], [1], [0, 0, 1, 1], [], []>} : vector<80x128xf32>, vector<128x20xf32>, vector<80x20xf32> -> vector<80x20xf32>
    %c0_60 = arith.constant 0 : index
    %c0_61 = arith.constant 0 : index
    %171 = vector.load %arg14[%c0_60, %c0_61] : memref<20x128xf32, #tpu.memory_space<vmem>>, vector<20x128xf32>
    %cst_62 = arith.constant dense<0.000000e+00> : vector<80x128xf32>
    %172 = tpu.matmul %170, %171, %cst_62 {dimension_numbers = #tpu.dot_dimension_numbers<[1], [0], [0], [1], [0, 0, 1, 1], [], []>} : vector<80x20xf32>, vector<20x128xf32>, vector<80x128xf32> -> vector<80x128xf32>
    %173 = arith.addf %55, %172 : vector<80x128xf32>
    %cst_63 = arith.constant 0.000000e+00 : f32
    %174 = vector.broadcast %cst_63 : f32 to vector<80x128xf32>
    %175 = arith.subf %174, %173 : vector<80x128xf32>
    %176 = math.exp %175 : vector<80x128xf32>
    %cst_64 = arith.constant 1.000000e+00 : f32
    %177 = vector.broadcast %cst_64 : f32 to vector<80x128xf32>
    %178 = arith.addf %177, %176 : vector<80x128xf32>
    %cst_65 = arith.constant 1.000000e+00 : f32
    %179 = vector.broadcast %cst_65 : f32 to vector<80x128xf32>
    %180 = arith.divf %179, %178 : vector<80x128xf32>
    %c0_66 = arith.constant 0 : index
    %c0_67 = arith.constant 0 : index
    %181 = vector.load %arg16[%c0_66, %c0_67] : memref<80x128xf32, #tpu.memory_space<vmem>>, vector<80x128xf32>
    tpu.vector_store %arg16[%c0_66, %c0_67], %180 {strides = array<i32>} : memref<80x128xf32, #tpu.memory_space<vmem>>, vector<80x128xf32>,
    %c0_68 = arith.constant 0 : index
    %c0_69 = arith.constant 0 : index
    %182 = vector.load %arg17[%c0_68, %c0_69] : memref<80x128xf32, #tpu.memory_space<vmem>>, vector<80x128xf32>
    tpu.vector_store %arg17[%c0_68, %c0_69], %48 {strides = array<i32>} : memref<80x128xf32, #tpu.memory_space<vmem>>, vector<80x128xf32>,
    %c0_70 = arith.constant 0 : index
    %c0_71 = arith.constant 0 : index
    %183 = vector.load %arg18[%c0_70, %c0_71] : memref<80x128xf32, #tpu.memory_space<vmem>>, vector<80x128xf32>
    tpu.vector_store %arg18[%c0_70, %c0_71], %46 {strides = array<i32>} : memref<80x128xf32, #tpu.memory_space<vmem>>, vector<80x128xf32>,
    return
  }
  func.func @transform_0(%arg0: i32) -> (i32, i32) {
    %c0_i32 = arith.constant 0 : i32
    %c0_i32_0 = arith.constant 0 : i32
    return %arg0, %c0_i32 : i32, i32
  }
  func.func @transform_1(%arg0: i32) -> (i32, i32) {
    %c0_i32 = arith.constant 0 : i32
    %c0_i32_0 = arith.constant 0 : i32
    %c0_i32_1 = arith.constant 0 : i32
    return %c0_i32, %c0_i32_0 : i32, i32
  }
  func.func @transform_2(%arg0: i32) -> (i32, i32) {
    %c0_i32 = arith.constant 0 : i32
    %c0_i32_0 = arith.constant 0 : i32
    %c0_i32_1 = arith.constant 0 : i32
    return %c0_i32, %c0_i32_0 : i32, i32
  }
  func.func @transform_3(%arg0: i32) -> (i32, i32) {
    %c0_i32 = arith.constant 0 : i32
    %c0_i32_0 = arith.constant 0 : i32
    %c0_i32_1 = arith.constant 0 : i32
    return %c0_i32, %c0_i32_0 : i32, i32
  }
  func.func @transform_4(%arg0: i32) -> (i32, i32) {
    %c0_i32 = arith.constant 0 : i32
    %c0_i32_0 = arith.constant 0 : i32
    %c0_i32_1 = arith.constant 0 : i32
    return %c0_i32, %c0_i32_0 : i32, i32
  }
  func.func @transform_5(%arg0: i32) -> (i32, i32) {
    %c0_i32 = arith.constant 0 : i32
    %c0_i32_0 = arith.constant 0 : i32
    %c0_i32_1 = arith.constant 0 : i32
    return %c0_i32, %c0_i32_0 : i32, i32
  }
  func.func @transform_6(%arg0: i32) -> (i32, i32) {
    %c0_i32 = arith.constant 0 : i32
    %c0_i32_0 = arith.constant 0 : i32
    return %arg0, %c0_i32 : i32, i32
  }
  func.func @transform_7(%arg0: i32) -> (i32, i32) {
    %c0_i32 = arith.constant 0 : i32
    %c0_i32_0 = arith.constant 0 : i32
    return %arg0, %c0_i32 : i32, i32
  }
  func.func @transform_8(%arg0: i32) -> (i32, i32) {
    %c0_i32 = arith.constant 0 : i32
    %c0_i32_0 = arith.constant 0 : i32
    %c0_i32_1 = arith.constant 0 : i32
    return %c0_i32, %c0_i32_0 : i32, i32
  }
  func.func @transform_9(%arg0: i32) -> (i32, i32) {
    %c0_i32 = arith.constant 0 : i32
    %c0_i32_0 = arith.constant 0 : i32
    %c0_i32_1 = arith.constant 0 : i32
    return %c0_i32, %c0_i32_0 : i32, i32
  }
  func.func @transform_10(%arg0: i32) -> (i32, i32) {
    %c0_i32 = arith.constant 0 : i32
    %c0_i32_0 = arith.constant 0 : i32
    %c0_i32_1 = arith.constant 0 : i32
    return %c0_i32, %c0_i32_0 : i32, i32
  }
  func.func @transform_11(%arg0: i32) -> (i32, i32) {
    %c0_i32 = arith.constant 0 : i32
    %c0_i32_0 = arith.constant 0 : i32
    %c0_i32_1 = arith.constant 0 : i32
    return %c0_i32, %c0_i32_0 : i32, i32
  }
  func.func @transform_12(%arg0: i32) -> (i32, i32) {
    %c0_i32 = arith.constant 0 : i32
    %c0_i32_0 = arith.constant 0 : i32
    %c0_i32_1 = arith.constant 0 : i32
    return %c0_i32, %c0_i32_0 : i32, i32
  }
  func.func @transform_13(%arg0: i32) -> (i32, i32) {
    %c0_i32 = arith.constant 0 : i32
    %c0_i32_0 = arith.constant 0 : i32
    %c0_i32_1 = arith.constant 0 : i32
    return %c0_i32, %c0_i32_0 : i32, i32
  }
  func.func @transform_14(%arg0: i32) -> (i32, i32) {
    %c0_i32 = arith.constant 0 : i32
    %c0_i32_0 = arith.constant 0 : i32
    return %arg0, %c0_i32 : i32, i32
  }
  func.func @transform_15(%arg0: i32) -> (i32, i32) {
    %c0_i32 = arith.constant 0 : i32
    %c0_i32_0 = arith.constant 0 : i32
    return %arg0, %c0_i32 : i32, i32
  }
  func.func @transform_16(%arg0: i32) -> (i32, i32) {
    %c0_i32 = arith.constant 0 : i32
    %c0_i32_0 = arith.constant 0 : i32
    return %arg0, %c0_i32 : i32, i32
  }
  func.func @transform_17(%arg0: i32) -> (i32, i32) {
    %c0_i32 = arith.constant 0 : i32
    %c0_i32_0 = arith.constant 0 : i32
    return %arg0, %c0_i32 : i32, i32
  }
}

</mosaic_0001>

<llo_original>
// kernel: tpu_custom_call.1
$region0: #{tpu_custom_call.1}
  #allocation0 [shape = 'u32[]', space=smem, size = 0x4, offset = 0x4, fixed_abs, tag = 'smem constant byte address 0x4 - core index']
  #allocation1 [shape = 'u32[72,128]{1,0:T(1,128)}', space=vmem, size = 0x9000, scoped, tag = 'internal scratch']
  %s0 = inlined_call_operand.vmem [shape: f32[160,32], index: 0, kind: input, shape index: {}]
  %s1 = inlined_call_operand.vmem [shape: f32[32,64], index: 1, kind: input, shape index: {}]
  %s2 = inlined_call_operand.hbm [shape: f32[1,64], index: 2, kind: input, shape index: {}]
  %s3 = inlined_call_operand.vmem [shape: f32[64,512], index: 3, kind: input, shape index: {}]
  %s4 = inlined_call_operand.hbm [shape: f32[128,512], index: 4, kind: input, shape index: {}]
  %s5 = inlined_call_operand.hbm [shape: f32[1,512], index: 5, kind: input, shape index: {}]
  %s6 = inlined_call_operand.hbm [shape: f32[160,128], index: 6, kind: input, shape index: {}]
  %s7 = inlined_call_operand.hbm [shape: f32[160,128], index: 7, kind: input, shape index: {}]
  %s8 = inlined_call_operand.hbm [shape: f32[128,256], index: 8, kind: input, shape index: {}]
  %s9 = inlined_call_operand.vmem [shape: f32[1,256], index: 9, kind: input, shape index: {}]
  %s10 = inlined_call_operand.vmem [shape: f32[20,128], index: 10, kind: input, shape index: {}]
  %s11 = inlined_call_operand.vmem [shape: f32[1,128], index: 11, kind: input, shape index: {}]
  %s12 = inlined_call_operand.vmem [shape: f32[128,20], index: 12, kind: input, shape index: {}]
  %s13 = inlined_call_operand.hbm [shape: f32[20,128], index: 13, kind: input, shape index: {}]
  %s14 = inlined_call_operand.hbm [shape: f32[160,128], index: 14, kind: input, shape index: {}]
  %s15 = inlined_call_operand.hbm [shape: f32[160,128], index: 15, kind: output, shape index: {0}]
  %s16 = inlined_call_operand.hbm [shape: f32[160,128], index: 16, kind: output, shape index: {1}]
  %s17 = inlined_call_operand.hbm [shape: f32[160,128], index: 17, kind: output, shape index: {2}]
  %18 = xla_tuple %s15, %s16, %s17
  %s19 = sld [smem:[#allocation0]]
  $region141: #{tpu_custom_call.1} parent=0
    _
  %s21 = ssub.s32 1, %s19
  %s22 = scalar_select 0, %s21, %s19
  $region1: #{tpu_custom_call.1} parent=0
    #allocation2 [shape = 'u8[512]{0}', space=vmem, size = 0x400, scoped, tag = 'input window, operand 2, single buffered']
    #allocation3 [shape = 's32[2]{0}', space=sflag, size = 0x8, scoped, tag = 'scoped memory for tpu_custom_call.1']
    #allocation4 [shape = 's32[2]{0}', space=sflag, size = 0x8, scoped, tag = 'scoped memory for tpu_custom_call.1']
    #allocation5 [shape = 'u8[262144]{0}', space=vmem, size = 0x40000, scoped, tag = 'input window, operand 4, single buffered']
    #allocation6 [shape = 's32[1]{0}', space=sflag, size = 0x4, scoped, tag = 'scoped memory for tpu_custom_call.1']
    #allocation7 [shape = 'u8[2048]{0}', space=vmem, size = 0x800, scoped, tag = 'input window, operand 5, single buffered']
    #allocation8 [shape = 'u8[81920]{0}', space=vmem, size = 0x14000, scoped, tag = 'input window, operand 6']
    #allocation9 [shape = 's32[2]{0}', space=sflag, size = 0x8, scoped, tag = 'scoped memory for tpu_custom_call.1']
    #allocation10 [shape = 'u8[81920]{0}', space=vmem, size = 0x14000, scoped, tag = 'input window, operand 7']
    #allocation11 [shape = 'u8[131072]{0}', space=vmem, size = 0x20000, scoped, tag = 'input window, operand 8, single buffered']
    #allocation12 [shape = 's32[1]{0}', space=sflag, size = 0x4, scoped, tag = 'scoped memory for tpu_custom_call.1']
    #allocation13 [shape = 'u8[12288]{0}', space=vmem, size = 0x3000, scoped, tag = 'input window, operand 13, single buffered']
    #allocation14 [shape = 'u8[81920]{0}', space=vmem, size = 0x14000, scoped, tag = 'input window, operand 14']
    #allocation15 [shape = 's32[2]{0}', space=sflag, size = 0x8, scoped, tag = 'scoped memory for tpu_custom_call.1']
    #allocation16 [shape = 'u8[81920]{0}', space=vmem, size = 0x14000, scoped, tag = 'output window, operand 0']
    #allocation17 [shape = 'u8[81920]{0}', space=vmem, size = 0x14000, scoped, tag = 'output window, operand 1']
    #allocation18 [shape = 's32[2]{0}', space=sflag, size = 0x8, scoped, tag = 'scoped memory for tpu_custom_call.1']
    #allocation19 [shape = 'u8[81920]{0}', space=vmem, size = 0x14000, scoped, tag = 'output window, operand 2']
    %23 = vsyncpa [#allocation3], 0
    %24 = vsyncpa [#allocation6], 0
    %25 = vsyncpa [#allocation9], 0
    %s26 = scalar_lea.sflag [#allocation9], 1
    %27 = vsyncpa %s26, 0
    %28 = vsyncpa [#allocation12], 0
    %29 = vsyncpa [#allocation15], 0
    %s30 = scalar_lea.sflag [#allocation15], 1
    %31 = vsyncpa %s30, 0
    %32 = vsyncpa [#allocation4], 0
    %s33 = scalar_lea.sflag [#allocation4], 1
    %34 = vsyncpa %s33, 0
    %35 = vsyncpa [#allocation18], 0
    %s36 = scalar_lea.sflag [#allocation18], 1
    %37 = vsyncpa %s36, 0
    loop: start=0, step=1, limit=4
    $region2: #{tpu_custom_call.1} parent=1 // loop_pre_header
      _
    $region3: #{tpu_custom_call.1} parent=1 // loop_header
      %s39 = sphi 0, %s43
      %p40 = scmp.ge.s32.totalorder %s39, 4
      %s49 = sphi 0, %s51
      %s52 = sphi 0, %s49
      %s53 = sphi 0, %s52
      %s69 = sphi 0, %s53
      %s73 = sphi 0, %s73
      %s75 = sphi 0, %s73
      %s76 = sphi 0, %s75
      %s90 = sphi 0, %s76
      %s94 = sphi 0, %s94
      %s96 = sphi 0, %s94
      %s97 = sphi 0, %s96
      %s111 = sphi 0, %s97
      %s115 = sphi 0, %s115
      %s117 = sphi 0, %s115
      %s118 = sphi 0, %s117
      %s132 = sphi 0, %s118
      %s136 = sphi 0, %s136
      %s138 = sphi 0, %s136
      %s139 = sphi 0, %s138
      %s153 = sphi 0, %s139
      %s157 = sphi 0, %s157
      %s159 = sphi 0, %s157
      %s160 = sphi 0, %s159
      %s174 = sphi 0, %s160
      %s180 = sphi 0, %s182
      %s183 = sphi 0, %s180
      %s184 = sphi 0, %s183
      %s200 = sphi 0, %s184
      %s206 = sphi 0, %s208
      %s209 = sphi 0, %s206
      %s210 = sphi 0, %s209
      %s226 = sphi 0, %s210
      %s230 = sphi 0, %s230
      %s232 = sphi 0, %s230
      %s233 = sphi 0, %s232
      %s247 = sphi 0, %s233
      %s251 = sphi 0, %s251
      %s253 = sphi 0, %s251
      %s254 = sphi 0, %s253
      %s268 = sphi 0, %s254
      %s272 = sphi 0, %s272
      %s274 = sphi 0, %s272
      %s275 = sphi 0, %s274
      %s289 = sphi 0, %s275
      %s293 = sphi 0, %s293
      %s295 = sphi 0, %s293
      %s296 = sphi 0, %s295
      %s310 = sphi 0, %s296
      %s314 = sphi 0, %s314
      %s316 = sphi 0, %s314
      %s317 = sphi 0, %s316
      %s331 = sphi 0, %s317
      %s335 = sphi 0, %s335
      %s337 = sphi 0, %s335
      %s338 = sphi 0, %s337
      %s352 = sphi 0, %s338
      %s358 = sphi 0, %s360
      %s361 = sphi 0, %s358
      %s362 = sphi 0, %s361
      %s378 = sphi 0, %s362
      %s384 = sphi 0, %s386
      %s387 = sphi 0, %s384
      %s388 = sphi 0, %s387
      %s404 = sphi 0, %s388
      %s410 = sphi 0, %s412
      %s413 = sphi 0, %s410
      %s414 = sphi 0, %s413
      %s430 = sphi 0, %s414
      %s436 = sphi 0, %s438
      %s439 = sphi 0, %s436
      %s440 = sphi 0, %s439
      %s456 = sphi 0, %s440
    $region4: #{tpu_custom_call.1} parent=1 // loop_header_branch
      %42 = sbr.rel (%p40) target = $region8
    $region5: #{tpu_custom_call.1} parent=1 // loop_body
      %s44 = ssub.s32 %s39, 1
      %s45 = ssub.s32 %s39, 2
      %s46 = sadd.s32 %s39, 1
      %s47 = ssub.s32 %s39, %s46
      %p48 = scmp.eq.s32.totalorder %s47, 0
      %s50 = sadd.s32 %s49, 1
      %s51 = scalar_select %p48, %s49, %s50
      %p54 = pneg %p48
      %p55 = scmp.eq.s32.totalorder %s39, 1
      %p56 = por %p54, %p55
      %p57 = scmp.ne.s32.totalorder %s49, %s52
      %p58 = scmp.eq.s32.totalorder %s39, 0
      %p59 = por %p57, %p58
      %p60 = scmp.ne.s32.totalorder %s49, %s52
      %p61 = scmp.eq.s32.totalorder %s44, 1
      %p62 = por %p60, %p61
      %p63 = scmp.ne.s32.totalorder %s52, %s53
      %p64 = scmp.eq.s32.totalorder %s44, 0
      %p65 = por %p63, %p64
      %p66 = scmp.ne.s32.totalorder %s52, %s53
      %p67 = scmp.eq.s32.totalorder %s45, 1
      %p68 = por %p66, %p67
      %p70 = scmp.ne.s32.totalorder %s53, %s69
      %p71 = scmp.eq.s32.totalorder %s45, 0
      %p72 = por %p70, %p71
      %s74 = sadd.s32 %s73, 1
      %p77 = scmp.eq.s32.totalorder %s39, 1
      %p78 = scmp.ne.s32.totalorder %s73, %s75
      %p79 = scmp.eq.s32.totalorder %s39, 0
      %p80 = por %p78, %p79
      %p81 = scmp.ne.s32.totalorder %s73, %s75
      %p82 = scmp.eq.s32.totalorder %s44, 1
      %p83 = por %p81, %p82
      %p84 = scmp.ne.s32.totalorder %s75, %s76
      %p85 = scmp.eq.s32.totalorder %s44, 0
      %p86 = por %p84, %p85
      %p87 = scmp.ne.s32.totalorder %s75, %s76
      %p88 = scmp.eq.s32.totalorder %s45, 1
      %p89 = por %p87, %p88
      %p91 = scmp.ne.s32.totalorder %s76, %s90
      %p92 = scmp.eq.s32.totalorder %s45, 0
      %p93 = por %p91, %p92
      %s95 = sadd.s32 %s94, 1
      %p98 = scmp.eq.s32.totalorder %s39, 1
      %p99 = scmp.ne.s32.totalorder %s94, %s96
      %p100 = scmp.eq.s32.totalorder %s39, 0
      %p101 = por %p99, %p100
      %p102 = scmp.ne.s32.totalorder %s94, %s96
      %p103 = scmp.eq.s32.totalorder %s44, 1
      %p104 = por %p102, %p103
      %p105 = scmp.ne.s32.totalorder %s96, %s97
      %p106 = scmp.eq.s32.totalorder %s44, 0
      %p107 = por %p105, %p106
      %p108 = scmp.ne.s32.totalorder %s96, %s97
      %p109 = scmp.eq.s32.totalorder %s45, 1
      %p110 = por %p108, %p109
      %p112 = scmp.ne.s32.totalorder %s97, %s111
      %p113 = scmp.eq.s32.totalorder %s45, 0
      %p114 = por %p112, %p113
      %s116 = sadd.s32 %s115, 1
      %p119 = scmp.eq.s32.totalorder %s39, 1
      %p120 = scmp.ne.s32.totalorder %s115, %s117
      %p121 = scmp.eq.s32.totalorder %s39, 0
      %p122 = por %p120, %p121
      %p123 = scmp.ne.s32.totalorder %s115, %s117
      %p124 = scmp.eq.s32.totalorder %s44, 1
      %p125 = por %p123, %p124
      %p126 = scmp.ne.s32.totalorder %s117, %s118
      %p127 = scmp.eq.s32.totalorder %s44, 0
      %p128 = por %p126, %p127
      %p129 = scmp.ne.s32.totalorder %s117, %s118
      %p130 = scmp.eq.s32.totalorder %s45, 1
      %p131 = por %p129, %p130
      %p133 = scmp.ne.s32.totalorder %s118, %s132
      %p134 = scmp.eq.s32.totalorder %s45, 0
      %p135 = por %p133, %p134
      %s137 = sadd.s32 %s136, 1
      %p140 = scmp.eq.s32.totalorder %s39, 1
      %p141 = scmp.ne.s32.totalorder %s136, %s138
      %p142 = scmp.eq.s32.totalorder %s39, 0
      %p143 = por %p141, %p142
      %p144 = scmp.ne.s32.totalorder %s136, %s138
      %p145 = scmp.eq.s32.totalorder %s44, 1
      %p146 = por %p144, %p145
      %p147 = scmp.ne.s32.totalorder %s138, %s139
      %p148 = scmp.eq.s32.totalorder %s44, 0
      %p149 = por %p147, %p148
      %p150 = scmp.ne.s32.totalorder %s138, %s139
      %p151 = scmp.eq.s32.totalorder %s45, 1
      %p152 = por %p150, %p151
      %p154 = scmp.ne.s32.totalorder %s139, %s153
      %p155 = scmp.eq.s32.totalorder %s45, 0
      %p156 = por %p154, %p155
      %s158 = sadd.s32 %s157, 1
      %p161 = scmp.eq.s32.totalorder %s39, 1
      %p162 = scmp.ne.s32.totalorder %s157, %s159
      %p163 = scmp.eq.s32.totalorder %s39, 0
      %p164 = por %p162, %p163
      %p165 = scmp.ne.s32.totalorder %s157, %s159
      %p166 = scmp.eq.s32.totalorder %s44, 1
      %p167 = por %p165, %p166
      %p168 = scmp.ne.s32.totalorder %s159, %s160
      %p169 = scmp.eq.s32.totalorder %s44, 0
      %p170 = por %p168, %p169
      %p171 = scmp.ne.s32.totalorder %s159, %s160
      %p172 = scmp.eq.s32.totalorder %s45, 1
      %p173 = por %p171, %p172
      %p175 = scmp.ne.s32.totalorder %s160, %s174
      %p176 = scmp.eq.s32.totalorder %s45, 0
      %p177 = por %p175, %p176
      %s178 = ssub.s32 %s39, %s46
      %p179 = scmp.eq.s32.totalorder %s178, 0
      %s181 = sadd.s32 %s180, 1
      %s182 = scalar_select %p179, %s180, %s181
      %p185 = pneg %p179
      %p186 = scmp.eq.s32.totalorder %s39, 1
      %p187 = por %p185, %p186
      %p188 = scmp.ne.s32.totalorder %s180, %s183
      %p189 = scmp.eq.s32.totalorder %s39, 0
      %p190 = por %p188, %p189
      %p191 = scmp.ne.s32.totalorder %s180, %s183
      %p192 = scmp.eq.s32.totalorder %s44, 1
      %p193 = por %p191, %p192
      %p194 = scmp.ne.s32.totalorder %s183, %s184
      %p195 = scmp.eq.s32.totalorder %s44, 0
      %p196 = por %p194, %p195
      %p197 = scmp.ne.s32.totalorder %s183, %s184
      %p198 = scmp.eq.s32.totalorder %s45, 1
      %p199 = por %p197, %p198
      %p201 = scmp.ne.s32.totalorder %s184, %s200
      %p202 = scmp.eq.s32.totalorder %s45, 0
      %p203 = por %p201, %p202
      %s204 = ssub.s32 %s39, %s46
      %p205 = scmp.eq.s32.totalorder %s204, 0
      %s207 = sadd.s32 %s206, 1
      %s208 = scalar_select %p205, %s206, %s207
      %p211 = pneg %p205
      %p212 = scmp.eq.s32.totalorder %s39, 1
      %p213 = por %p211, %p212
      %p214 = scmp.ne.s32.totalorder %s206, %s209
      %p215 = scmp.eq.s32.totalorder %s39, 0
      %p216 = por %p214, %p215
      %p217 = scmp.ne.s32.totalorder %s206, %s209
      %p218 = scmp.eq.s32.totalorder %s44, 1
      %p219 = por %p217, %p218
      %p220 = scmp.ne.s32.totalorder %s209, %s210
      %p221 = scmp.eq.s32.totalorder %s44, 0
      %p222 = por %p220, %p221
      %p223 = scmp.ne.s32.totalorder %s209, %s210
      %p224 = scmp.eq.s32.totalorder %s45, 1
      %p225 = por %p223, %p224
      %p227 = scmp.ne.s32.totalorder %s210, %s226
      %p228 = scmp.eq.s32.totalorder %s45, 0
      %p229 = por %p227, %p228
      %s231 = sadd.s32 %s230, 1
      %p234 = scmp.eq.s32.totalorder %s39, 1
      %p235 = scmp.ne.s32.totalorder %s230, %s232
      %p236 = scmp.eq.s32.totalorder %s39, 0
      %p237 = por %p235, %p236
      %p238 = scmp.ne.s32.totalorder %s230, %s232
      %p239 = scmp.eq.s32.totalorder %s44, 1
      %p240 = por %p238, %p239
      %p241 = scmp.ne.s32.totalorder %s232, %s233
      %p242 = scmp.eq.s32.totalorder %s44, 0
      %p243 = por %p241, %p242
      %p244 = scmp.ne.s32.totalorder %s232, %s233
      %p245 = scmp.eq.s32.totalorder %s45, 1
      %p246 = por %p244, %p245
      %p248 = scmp.ne.s32.totalorder %s233, %s247
      %p249 = scmp.eq.s32.totalorder %s45, 0
      %p250 = por %p248, %p249
      %s252 = sadd.s32 %s251, 1
      %p255 = scmp.eq.s32.totalorder %s39, 1
      %p256 = scmp.ne.s32.totalorder %s251, %s253
      %p257 = scmp.eq.s32.totalorder %s39, 0
      %p258 = por %p256, %p257
      %p259 = scmp.ne.s32.totalorder %s251, %s253
      %p260 = scmp.eq.s32.totalorder %s44, 1
      %p261 = por %p259, %p260
      %p262 = scmp.ne.s32.totalorder %s253, %s254
      %p263 = scmp.eq.s32.totalorder %s44, 0
      %p264 = por %p262, %p263
      %p265 = scmp.ne.s32.totalorder %s253, %s254
      %p266 = scmp.eq.s32.totalorder %s45, 1
      %p267 = por %p265, %p266
      %p269 = scmp.ne.s32.totalorder %s254, %s268
      %p270 = scmp.eq.s32.totalorder %s45, 0
      %p271 = por %p269, %p270
      %s273 = sadd.s32 %s272, 1
      %p276 = scmp.eq.s32.totalorder %s39, 1
      %p277 = scmp.ne.s32.totalorder %s272, %s274
      %p278 = scmp.eq.s32.totalorder %s39, 0
      %p279 = por %p277, %p278
      %p280 = scmp.ne.s32.totalorder %s272, %s274
      %p281 = scmp.eq.s32.totalorder %s44, 1
      %p282 = por %p280, %p281
      %p283 = scmp.ne.s32.totalorder %s274, %s275
      %p284 = scmp.eq.s32.totalorder %s44, 0
      %p285 = por %p283, %p284
      %p286 = scmp.ne.s32.totalorder %s274, %s275
      %p287 = scmp.eq.s32.totalorder %s45, 1
      %p288 = por %p286, %p287
      %p290 = scmp.ne.s32.totalorder %s275, %s289
      %p291 = scmp.eq.s32.totalorder %s45, 0
      %p292 = por %p290, %p291
      %s294 = sadd.s32 %s293, 1
      %p297 = scmp.eq.s32.totalorder %s39, 1
      %p298 = scmp.ne.s32.totalorder %s293, %s295
      %p299 = scmp.eq.s32.totalorder %s39, 0
      %p300 = por %p298, %p299
      %p301 = scmp.ne.s32.totalorder %s293, %s295
      %p302 = scmp.eq.s32.totalorder %s44, 1
      %p303 = por %p301, %p302
      %p304 = scmp.ne.s32.totalorder %s295, %s296
      %p305 = scmp.eq.s32.totalorder %s44, 0
      %p306 = por %p304, %p305
      %p307 = scmp.ne.s32.totalorder %s295, %s296
      %p308 = scmp.eq.s32.totalorder %s45, 1
      %p309 = por %p307, %p308
      %p311 = scmp.ne.s32.totalorder %s296, %s310
      %p312 = scmp.eq.s32.totalorder %s45, 0
      %p313 = por %p311, %p312
      %s315 = sadd.s32 %s314, 1
      %p318 = scmp.eq.s32.totalorder %s39, 1
      %p319 = scmp.ne.s32.totalorder %s314, %s316
      %p320 = scmp.eq.s32.totalorder %s39, 0
      %p321 = por %p319, %p320
      %p322 = scmp.ne.s32.totalorder %s314, %s316
      %p323 = scmp.eq.s32.totalorder %s44, 1
      %p324 = por %p322, %p323
      %p325 = scmp.ne.s32.totalorder %s316, %s317
      %p326 = scmp.eq.s32.totalorder %s44, 0
      %p327 = por %p325, %p326
      %p328 = scmp.ne.s32.totalorder %s316, %s317
      %p329 = scmp.eq.s32.totalorder %s45, 1
      %p330 = por %p328, %p329
      %p332 = scmp.ne.s32.totalorder %s317, %s331
      %p333 = scmp.eq.s32.totalorder %s45, 0
      %p334 = por %p332, %p333
      %s336 = sadd.s32 %s335, 1
      %p339 = scmp.eq.s32.totalorder %s39, 1
      %p340 = scmp.ne.s32.totalorder %s335, %s337
      %p341 = scmp.eq.s32.totalorder %s39, 0
      %p342 = por %p340, %p341
      %p343 = scmp.ne.s32.totalorder %s335, %s337
      %p344 = scmp.eq.s32.totalorder %s44, 1
      %p345 = por %p343, %p344
      %p346 = scmp.ne.s32.totalorder %s337, %s338
      %p347 = scmp.eq.s32.totalorder %s44, 0
      %p348 = por %p346, %p347
      %p349 = scmp.ne.s32.totalorder %s337, %s338
      %p350 = scmp.eq.s32.totalorder %s45, 1
      %p351 = por %p349, %p350
      %p353 = scmp.ne.s32.totalorder %s338, %s352
      %p354 = scmp.eq.s32.totalorder %s45, 0
      %p355 = por %p353, %p354
      %s356 = ssub.s32 %s39, %s46
      %p357 = scmp.eq.s32.totalorder %s356, 0
      %s359 = sadd.s32 %s358, 1
      %s360 = scalar_select %p357, %s358, %s359
      %p363 = pneg %p357
      %p364 = scmp.eq.s32.totalorder %s39, 1
      %p365 = por %p363, %p364
      %p366 = scmp.ne.s32.totalorder %s358, %s361
      %p367 = scmp.eq.s32.totalorder %s39, 0
      %p368 = por %p366, %p367
      %p369 = scmp.ne.s32.totalorder %s358, %s361
      %p370 = scmp.eq.s32.totalorder %s44, 1
      %p371 = por %p369, %p370
      %p372 = scmp.ne.s32.totalorder %s361, %s362
      %p373 = scmp.eq.s32.totalorder %s44, 0
      %p374 = por %p372, %p373
      %p375 = scmp.ne.s32.totalorder %s361, %s362
      %p376 = scmp.eq.s32.totalorder %s45, 1
      %p377 = por %p375, %p376
      %p379 = scmp.ne.s32.totalorder %s362, %s378
      %p380 = scmp.eq.s32.totalorder %s45, 0
      %p381 = por %p379, %p380
      %s382 = ssub.s32 %s39, %s46
      %p383 = scmp.eq.s32.totalorder %s382, 0
      %s385 = sadd.s32 %s384, 1
      %s386 = scalar_select %p383, %s384, %s385
      %p389 = pneg %p383
      %p390 = scmp.eq.s32.totalorder %s39, 1
      %p391 = por %p389, %p390
      %p392 = scmp.ne.s32.totalorder %s384, %s387
      %p393 = scmp.eq.s32.totalorder %s39, 0
      %p394 = por %p392, %p393
      %p395 = scmp.ne.s32.totalorder %s384, %s387
      %p396 = scmp.eq.s32.totalorder %s44, 1
      %p397 = por %p395, %p396
      %p398 = scmp.ne.s32.totalorder %s387, %s388
      %p399 = scmp.eq.s32.totalorder %s44, 0
      %p400 = por %p398, %p399
      %p401 = scmp.ne.s32.totalorder %s387, %s388
      %p402 = scmp.eq.s32.totalorder %s45, 1
      %p403 = por %p401, %p402
      %p405 = scmp.ne.s32.totalorder %s388, %s404
      %p406 = scmp.eq.s32.totalorder %s45, 0
      %p407 = por %p405, %p406
      %s408 = ssub.s32 %s39, %s46
      %p409 = scmp.eq.s32.totalorder %s408, 0
      %s411 = sadd.s32 %s410, 1
      %s412 = scalar_select %p409, %s410, %s411
      %p415 = pneg %p409
      %p416 = scmp.eq.s32.totalorder %s39, 1
      %p417 = por %p415, %p416
      %p418 = scmp.ne.s32.totalorder %s410, %s413
      %p419 = scmp.eq.s32.totalorder %s39, 0
      %p420 = por %p418, %p419
      %p421 = scmp.ne.s32.totalorder %s410, %s413
      %p422 = scmp.eq.s32.totalorder %s44, 1
      %p423 = por %p421, %p422
      %p424 = scmp.ne.s32.totalorder %s413, %s414
      %p425 = scmp.eq.s32.totalorder %s44, 0
      %p426 = por %p424, %p425
      %p427 = scmp.ne.s32.totalorder %s413, %s414
      %p428 = scmp.eq.s32.totalorder %s45, 1
      %p429 = por %p427, %p428
      %p431 = scmp.ne.s32.totalorder %s414, %s430
      %p432 = scmp.eq.s32.totalorder %s45, 0
      %p433 = por %p431, %p432
      %s434 = ssub.s32 %s39, %s46
      %p435 = scmp.eq.s32.totalorder %s434, 0
      %s437 = sadd.s32 %s436, 1
      %s438 = scalar_select %p435, %s436, %s437
      %p441 = pneg %p435
      %p442 = scmp.eq.s32.totalorder %s39, 1
      %p443 = por %p441, %p442
      %p444 = scmp.ne.s32.totalorder %s436, %s439
      %p445 = scmp.eq.s32.totalorder %s39, 0
      %p446 = por %p444, %p445
      %p447 = scmp.ne.s32.totalorder %s436, %s439
      %p448 = scmp.eq.s32.totalorder %s44, 1
      %p449 = por %p447, %p448
      %p450 = scmp.ne.s32.totalorder %s439, %s440
      %p451 = scmp.eq.s32.totalorder %s44, 0
      %p452 = por %p450, %p451
      %p453 = scmp.ne.s32.totalorder %s439, %s440
      %p454 = scmp.eq.s32.totalorder %s45, 1
      %p455 = por %p453, %p454
      %p457 = scmp.ne.s32.totalorder %s440, %s456
      %p458 = scmp.eq.s32.totalorder %s45, 0
      %p459 = por %p457, %p458
      %p460 = scmp.le.s32.totalorder 1, %s39
      %p461 = scmp.lt.s32.totalorder %s39, 3
      %p462 = pnand %p460, %p461
      %p463 = pneg %p462
      // Predicated region
      $region9: #{tpu_custom_call.1} parent=5 // pred_check
        _
      $region10: #{tpu_custom_call.1} parent=5 // pred_check_branch
        %465 = sbr.rel (%p462) target = $region12
      $region11: #{tpu_custom_call.1} parent=5 // pred_region
        %s466 = ssub.s32 %s39, 1
        // Predicated region
        $region13: #{tpu_custom_call.1} parent=11 // pred_check
          %p467 = pneg %p86
        $region14: #{tpu_custom_call.1} parent=11 // pred_check_branch
          %469 = sbr.rel (%p467) target = $region16
        $region15: #{tpu_custom_call.1} parent=11 // pred_region
          _
        $region16: #{tpu_custom_call.1} parent=11 // pred_fallthru
          _
        // Predicated region
        $region17: #{tpu_custom_call.1} parent=11 // pred_check
          %p470 = pneg %p107
        $region18: #{tpu_custom_call.1} parent=11 // pred_check_branch
          %472 = sbr.rel (%p470) target = $region20
        $region19: #{tpu_custom_call.1} parent=11 // pred_region
          %474 = vsyncadd [#allocation3], 0
          %s476 = sshll.u32 %s2, 4
          %s477 = int_to_ptr.hbm [resolvable:$true] %s476
          %s478 = sshll.u32 [#allocation2], 4
          %s479 = int_to_ptr.vmem [resolvable:$true] %s478
          %481 = dma.hbm_to_vmem [thread:$0]  %s477, 16, %s479, [#allocation3]
        $region20: #{tpu_custom_call.1} parent=11 // pred_fallthru
          _
        // Predicated region
        $region21: #{tpu_custom_call.1} parent=11 // pred_check
          %p482 = pneg %p128
        $region22: #{tpu_custom_call.1} parent=11 // pred_check_branch
          %484 = sbr.rel (%p482) target = $region24
        $region23: #{tpu_custom_call.1} parent=11 // pred_region
          _
        $region24: #{tpu_custom_call.1} parent=11 // pred_fallthru
          _
        // Predicated region
        $region25: #{tpu_custom_call.1} parent=11 // pred_check
          %p485 = pneg %p149
        $region26: #{tpu_custom_call.1} parent=11 // pred_check_branch
          %487 = sbr.rel (%p485) target = $region28
        $region27: #{tpu_custom_call.1} parent=11 // pred_region
          %489 = vsyncadd [#allocation6], 0
          %s490 = sshll.u32 %s4, 4
          %s491 = int_to_ptr.hbm [resolvable:$true] %s490
          %s492 = sshll.u32 [#allocation5], 4
          %s493 = int_to_ptr.vmem [resolvable:$true] %s492
          %498 = dma.hbm_to_vmem [thread:$0]  %s491, 8192, %s493, [#allocation6], 512, 512, 32
        $region28: #{tpu_custom_call.1} parent=11 // pred_fallthru
          _
        // Predicated region
        $region29: #{tpu_custom_call.1} parent=11 // pred_check
          %p499 = pneg %p170
        $region30: #{tpu_custom_call.1} parent=11 // pred_check_branch
          %501 = sbr.rel (%p499) target = $region32
        $region31: #{tpu_custom_call.1} parent=11 // pred_region
          %503 = vsyncadd [#allocation6], 0
          %s505 = sshll.u32 %s5, 4
          %s506 = int_to_ptr.hbm [resolvable:$true] %s505
          %s507 = sshll.u32 [#allocation7], 4
          %s508 = int_to_ptr.vmem [resolvable:$true] %s507
          %510 = dma.hbm_to_vmem [thread:$0]  %s506, 64, %s508, [#allocation6]
        $region32: #{tpu_custom_call.1} parent=11 // pred_fallthru
          _
        // Predicated region
        $region33: #{tpu_custom_call.1} parent=11 // pred_check
          %p511 = pneg %p243
        $region34: #{tpu_custom_call.1} parent=11 // pred_check_branch
          %513 = sbr.rel (%p511) target = $region36
        $region35: #{tpu_custom_call.1} parent=11 // pred_region
          %515 = vsyncadd [#allocation12], 0
          %s516 = sshll.u32 %s8, 4
          %s517 = int_to_ptr.hbm [resolvable:$true] %s516
          %s518 = sshll.u32 [#allocation11], 4
          %s519 = int_to_ptr.vmem [resolvable:$true] %s518
          %524 = dma.hbm_to_vmem [thread:$0]  %s517, 4096, %s519, [#allocation12], 256, 256, 16
        $region36: #{tpu_custom_call.1} parent=11 // pred_fallthru
          _
        // Predicated region
        $region37: #{tpu_custom_call.1} parent=11 // pred_check
          %p525 = pneg %p264
        $region38: #{tpu_custom_call.1} parent=11 // pred_check_branch
          %527 = sbr.rel (%p525) target = $region40
        $region39: #{tpu_custom_call.1} parent=11 // pred_region
          _
        $region40: #{tpu_custom_call.1} parent=11 // pred_fallthru
          _
        // Predicated region
        $region41: #{tpu_custom_call.1} parent=11 // pred_check
          %p528 = pneg %p285
        $region42: #{tpu_custom_call.1} parent=11 // pred_check_branch
          %530 = sbr.rel (%p528) target = $region44
        $region43: #{tpu_custom_call.1} parent=11 // pred_region
          _
        $region44: #{tpu_custom_call.1} parent=11 // pred_fallthru
          _
        // Predicated region
        $region45: #{tpu_custom_call.1} parent=11 // pred_check
          %p531 = pneg %p306
        $region46: #{tpu_custom_call.1} parent=11 // pred_check_branch
          %533 = sbr.rel (%p531) target = $region48
        $region47: #{tpu_custom_call.1} parent=11 // pred_region
          _
        $region48: #{tpu_custom_call.1} parent=11 // pred_fallthru
          _
        // Predicated region
        $region49: #{tpu_custom_call.1} parent=11 // pred_check
          %p534 = pneg %p327
        $region50: #{tpu_custom_call.1} parent=11 // pred_check_branch
          %536 = sbr.rel (%p534) target = $region52
        $region51: #{tpu_custom_call.1} parent=11 // pred_region
          _
        $region52: #{tpu_custom_call.1} parent=11 // pred_fallthru
          _
        // Predicated region
        $region53: #{tpu_custom_call.1} parent=11 // pred_check
          %p537 = pneg %p348
        $region54: #{tpu_custom_call.1} parent=11 // pred_check_branch
          %539 = sbr.rel (%p537) target = $region56
        $region55: #{tpu_custom_call.1} parent=11 // pred_region
          %541 = vsyncadd [#allocation12], 0
          %s542 = sshll.u32 %s13, 4
          %s543 = int_to_ptr.hbm [resolvable:$true] %s542
          %s544 = sshll.u32 [#allocation13], 4
          %s545 = int_to_ptr.vmem [resolvable:$true] %s544
          %550 = dma.hbm_to_vmem [thread:$0]  %s543, 384, %s545, [#allocation12], 128, 128, 8
        $region56: #{tpu_custom_call.1} parent=11 // pred_fallthru
          _
      $region12: #{tpu_custom_call.1} parent=5 // pred_fallthru
        _
      %p551 = scmp.lt.s32.totalorder %s39, 2
      // Predicated region
      $region57: #{tpu_custom_call.1} parent=5 // pred_check
        %p552 = pneg %p551
      $region58: #{tpu_custom_call.1} parent=5 // pred_check_branch
        %554 = sbr.rel (%p552) target = $region60
      $region59: #{tpu_custom_call.1} parent=5 // pred_region
        // Predicated region
        $region61: #{tpu_custom_call.1} parent=59 // pred_check
          %p555 = pneg %p59
        $region62: #{tpu_custom_call.1} parent=59 // pred_check_branch
          %557 = sbr.rel (%p555) target = $region64
        $region63: #{tpu_custom_call.1} parent=59 // pred_region
          %s558 = smul.u32 10, %s39
          %p559 = scmp.lt.s32.totalorder %s558, 19
          %s560 = scalar_select %p559, %s558, 19
          %s561 = smul.addr %s560, 8
          %s562 = scalar_lea.vmem %s0, %s561
          %s563 = smul.u32 10, %s39
        $region64: #{tpu_custom_call.1} parent=59 // pred_fallthru
          _
        // Predicated region
        $region65: #{tpu_custom_call.1} parent=59 // pred_check
          %p564 = pneg %p190
        $region66: #{tpu_custom_call.1} parent=59 // pred_check_branch
          %566 = sbr.rel (%p564) target = $region68
        $region67: #{tpu_custom_call.1} parent=59 // pred_region
          %s567 = sand.u32 %s39, 1
          %s568 = scalar_lea.sflag [#allocation9], %s567
          %s569 = sand.u32 %s180, 1
          %s570 = smul.addr %s569, 80
          %s571 = scalar_lea.vmem [#allocation8], %s570
          %s572 = smul.u32 10, %s39
          %574 = vsyncadd %s568, 0
          %s575 = smul.addr %s572, 8
          %s576 = scalar_lea.hbm %s6, %s575
          %s577 = sshll.u32 %s576, 4
          %s578 = int_to_ptr.hbm [resolvable:$true] %s577
          %s579 = sshll.u32 %s571, 4
          %s580 = int_to_ptr.vmem [resolvable:$true] %s579
          %585 = dma.hbm_to_vmem [thread:$0]  %s578, 1280, %s580, %s568, 128, 128, 8
        $region68: #{tpu_custom_call.1} parent=59 // pred_fallthru
          _
        // Predicated region
        $region69: #{tpu_custom_call.1} parent=59 // pred_check
          %p586 = pneg %p216
        $region70: #{tpu_custom_call.1} parent=59 // pred_check_branch
          %588 = sbr.rel (%p586) target = $region72
        $region71: #{tpu_custom_call.1} parent=59 // pred_region
          %s589 = sand.u32 %s39, 1
          %s590 = scalar_lea.sflag [#allocation9], %s589
          %s591 = sand.u32 %s206, 1
          %s592 = smul.addr %s591, 80
          %s593 = scalar_lea.vmem [#allocation10], %s592
          %s594 = smul.u32 10, %s39
          %596 = vsyncadd %s590, 0
          %s597 = smul.addr %s594, 8
          %s598 = scalar_lea.hbm %s7, %s597
          %s599 = sshll.u32 %s598, 4
          %s600 = int_to_ptr.hbm [resolvable:$true] %s599
          %s601 = sshll.u32 %s593, 4
          %s602 = int_to_ptr.vmem [resolvable:$true] %s601
          %607 = dma.hbm_to_vmem [thread:$0]  %s600, 1280, %s602, %s590, 128, 128, 8
        $region72: #{tpu_custom_call.1} parent=59 // pred_fallthru
          _
        // Predicated region
        $region73: #{tpu_custom_call.1} parent=59 // pred_check
          %p608 = pneg %p368
        $region74: #{tpu_custom_call.1} parent=59 // pred_check_branch
          %610 = sbr.rel (%p608) target = $region76
        $region75: #{tpu_custom_call.1} parent=59 // pred_region
          %s611 = sand.u32 %s358, 1
          %s612 = scalar_lea.sflag [#allocation15], %s611
          %s613 = sand.u32 %s358, 1
          %s614 = smul.addr %s613, 80
          %s615 = scalar_lea.vmem [#allocation14], %s614
          %s616 = smul.u32 10, %s39
          %618 = vsyncadd %s612, 0
          %s619 = smul.addr %s616, 8
          %s620 = scalar_lea.hbm %s14, %s619
          %s621 = sshll.u32 %s620, 4
          %s622 = int_to_ptr.hbm [resolvable:$true] %s621
          %s623 = sshll.u32 %s615, 4
          %s624 = int_to_ptr.vmem [resolvable:$true] %s623
          %629 = dma.hbm_to_vmem [thread:$0]  %s622, 1280, %s624, %s612, 128, 128, 8
        $region76: #{tpu_custom_call.1} parent=59 // pred_fallthru
          _
      $region60: #{tpu_custom_call.1} parent=5 // pred_fallthru
        _
      %p630 = scmp.le.s32.totalorder 1, %s39
      %p631 = scmp.lt.s32.totalorder %s39, 3
      %p632 = pnand %p630, %p631
      %p633 = pneg %p632
      // Predicated region
      $region77: #{tpu_custom_call.1} parent=5 // pred_check
        _
      $region78: #{tpu_custom_call.1} parent=5 // pred_check_branch
        %635 = sbr.rel (%p632) target = $region80
      $region79: #{tpu_custom_call.1} parent=5 // pred_region
        %s636 = ssub.s32 %s39, 1
        // Predicated region
        $region81: #{tpu_custom_call.1} parent=79 // pred_check
          %p637 = pneg %p107
        $region82: #{tpu_custom_call.1} parent=79 // pred_check_branch
          %639 = sbr.rel (%p637) target = $region84
        $region83: #{tpu_custom_call.1} parent=79 // pred_region
          %641 = dma.done [#allocation3], 16
        $region84: #{tpu_custom_call.1} parent=79 // pred_fallthru
          _
        // Predicated region
        $region85: #{tpu_custom_call.1} parent=79 // pred_check
          %p642 = pneg %p149
        $region86: #{tpu_custom_call.1} parent=79 // pred_check_branch
          %644 = sbr.rel (%p642) target = $region88
        $region87: #{tpu_custom_call.1} parent=79 // pred_region
          %646 = dma.done [#allocation6], 8192
        $region88: #{tpu_custom_call.1} parent=79 // pred_fallthru
          _
        // Predicated region
        $region89: #{tpu_custom_call.1} parent=79 // pred_check
          %p647 = pneg %p170
        $region90: #{tpu_custom_call.1} parent=79 // pred_check_branch
          %649 = sbr.rel (%p647) target = $region92
        $region91: #{tpu_custom_call.1} parent=79 // pred_region
          %651 = dma.done [#allocation6], 64
        $region92: #{tpu_custom_call.1} parent=79 // pred_fallthru
          _
        %s652 = sand.u32 %s44, 1
        %s653 = scalar_lea.sflag [#allocation9], %s652
        %s654 = sand.u32 %s183, 1
        %s655 = smul.addr %s654, 80
        %s656 = scalar_lea.vmem [#allocation8], %s655
        // Predicated region
        $region93: #{tpu_custom_call.1} parent=79 // pred_check
          %p657 = pneg %p196
        $region94: #{tpu_custom_call.1} parent=79 // pred_check_branch
          %659 = sbr.rel (%p657) target = $region96
        $region95: #{tpu_custom_call.1} parent=79 // pred_region
          %661 = dma.done %s653, 1280
        $region96: #{tpu_custom_call.1} parent=79 // pred_fallthru
          _
        %s662 = sand.u32 %s44, 1
        %s663 = scalar_lea.sflag [#allocation9], %s662
        %s664 = sand.u32 %s209, 1
        %s665 = smul.addr %s664, 80
        %s666 = scalar_lea.vmem [#allocation10], %s665
        // Predicated region
        $region97: #{tpu_custom_call.1} parent=79 // pred_check
          %p667 = pneg %p222
        $region98: #{tpu_custom_call.1} parent=79 // pred_check_branch
          %669 = sbr.rel (%p667) target = $region100
        $region99: #{tpu_custom_call.1} parent=79 // pred_region
          %671 = dma.done %s663, 1280
        $region100: #{tpu_custom_call.1} parent=79 // pred_fallthru
          _
        // Predicated region
        $region101: #{tpu_custom_call.1} parent=79 // pred_check
          %p672 = pneg %p243
        $region102: #{tpu_custom_call.1} parent=79 // pred_check_branch
          %674 = sbr.rel (%p672) target = $region104
        $region103: #{tpu_custom_call.1} parent=79 // pred_region
          %676 = dma.done [#allocation12], 4096
        $region104: #{tpu_custom_call.1} parent=79 // pred_fallthru
          _
        // Predicated region
        $region105: #{tpu_custom_call.1} parent=79 // pred_check
          %p677 = pneg %p348
        $region106: #{tpu_custom_call.1} parent=79 // pred_check_branch
          %679 = sbr.rel (%p677) target = $region108
        $region107: #{tpu_custom_call.1} parent=79 // pred_region
          %681 = dma.done [#allocation12], 384
        $region108: #{tpu_custom_call.1} parent=79 // pred_fallthru
          _
        %s682 = sand.u32 %s361, 1
        %s683 = scalar_lea.sflag [#allocation15], %s682
        %s684 = sand.u32 %s361, 1
        %s685 = smul.addr %s684, 80
        %s686 = scalar_lea.vmem [#allocation14], %s685
        // Predicated region
        $region109: #{tpu_custom_call.1} parent=79 // pred_check
          %p687 = pneg %p374
        $region110: #{tpu_custom_call.1} parent=79 // pred_check_branch
          %689 = sbr.rel (%p687) target = $region112
        $region111: #{tpu_custom_call.1} parent=79 // pred_region
          %691 = dma.done %s683, 1280
        $region112: #{tpu_custom_call.1} parent=79 // pred_fallthru
          _
        %s692 = smul.u32 10, %s44
        %p693 = scmp.lt.s32.totalorder %s692, 19
        %s694 = scalar_select %p693, %s692, 19
        %s695 = smul.addr %s694, 8
        %s696 = scalar_lea.vmem %s0, %s695
        %p697 = pneg %p65
        %p698 = pneg %p62
        %p699 = pneg %p86
        %p700 = pneg %p83
        %p701 = pneg %p107
        %p702 = pneg %p104
        %p703 = pneg %p128
        %p704 = pneg %p125
        %p705 = pneg %p149
        %p706 = pneg %p146
        %p707 = pneg %p170
        %p708 = pneg %p167
        %s709 = sand.u32 %s44, 1
        %s710 = scalar_lea.sflag [#allocation9], %s709
        %s711 = sand.u32 %s183, 1
        %s712 = smul.addr %s711, 80
        %s713 = scalar_lea.vmem [#allocation8], %s712
        %p714 = pneg %p196
        %p715 = pneg %p193
        %s716 = sand.u32 %s44, 1
        %s717 = scalar_lea.sflag [#allocation9], %s716
        %s718 = sand.u32 %s209, 1
        %s719 = smul.addr %s718, 80
        %s720 = scalar_lea.vmem [#allocation10], %s719
        %p721 = pneg %p222
        %p722 = pneg %p219
        %p723 = pneg %p243
        %p724 = pneg %p240
        %p725 = pneg %p264
        %p726 = pneg %p261
        %p727 = pneg %p285
        %p728 = pneg %p282
        %p729 = pneg %p306
        %p730 = pneg %p303
        %p731 = pneg %p327
        %p732 = pneg %p324
        %p733 = pneg %p348
        %p734 = pneg %p345
        %s735 = sand.u32 %s361, 1
        %s736 = scalar_lea.sflag [#allocation15], %s735
        %s737 = sand.u32 %s361, 1
        %s738 = smul.addr %s737, 80
        %s739 = scalar_lea.vmem [#allocation14], %s738
        %p740 = pneg %p374
        %p741 = pneg %p371
        %p742 = pneg %p400
        %p743 = pneg %p397
        %s744 = sand.u32 %s387, 1
        %s745 = scalar_lea.sflag [#allocation4], %s744
        %s746 = sand.u32 %s387, 1
        %s747 = smul.addr %s746, 80
        %s748 = scalar_lea.vmem [#allocation16], %s747
        %p749 = pneg %p426
        %p750 = pneg %p423
        %s751 = sand.u32 %s44, 1
        %s752 = scalar_lea.sflag [#allocation18], %s751
        %s753 = sand.u32 %s413, 1
        %s754 = smul.addr %s753, 80
        %s755 = scalar_lea.vmem [#allocation17], %s754
        %p756 = pneg %p452
        %p757 = pneg %p449
        %s758 = sand.u32 %s44, 1
        %s759 = scalar_lea.sflag [#allocation18], %s758
        %s760 = sand.u32 %s439, 1
        %s761 = smul.addr %s760, 80
        %s762 = scalar_lea.vmem [#allocation19], %s761
        %s763 = smul.u32 10, %s44
        %p764 = scmp.lt.s32.totalorder %s763, 19
        %s765 = scalar_select %p764, %s763, 19
        %s766 = smul.addr %s765, 8
        %s767 = scalar_lea.vmem %s0, %s766
        %s768 = smul.u32 10, %s44
        %s769 = smul.u32 10, %s44
        %s770 = smul.u32 10, %s44
        %s771 = smul.u32 10, %s44
        %s772 = smul.u32 10, %s44
        %s773 = smul.u32 10, %s44
        %s774 = smul.u32 10, %s44
        %v775 = vld [vmem:[%s767] sm:$0xff]
        %v776 = vld [vmem:[%s767 + $0x8] sm:$0xff]
        %v777 = vld [vmem:[%s767 + $0x10] sm:$0xff]
        %v778 = vld [vmem:[%s767 + $0x18] sm:$0xff]
        %v779 = vld [vmem:[%s767 + $0x20] sm:$0xff]
        %v780 = vld [vmem:[%s767 + $0x28] sm:$0xff]
        %v781 = vld [vmem:[%s767 + $0x30] sm:$0xff]
        %v782 = vld [vmem:[%s767 + $0x38] sm:$0xff]
        %v783 = vld [vmem:[%s767 + $0x40] sm:$0xff]
        %v784 = vld [vmem:[%s767 + $0x48] sm:$0xff]
        %v785 = vld [vmem:[%s1] sm:$0xff]
        %v786 = vld [vmem:[%s1 + $0x8] sm:$0xff]
        %v787 = vld [vmem:[%s1 + $0x10] sm:$0xff]
        %v788 = vld [vmem:[%s1 + $0x18] sm:$0xff]
        %v789 = vld [vmem:[#allocation2] sm:$0x1]
        %v791 = vperm.slane %v789, 0
        %vm793 = vcmask 261120
        %v795 = vsel %vm793, %v775, 0
        %v798 = vsel %vm793, %v776, 0
        %v801 = vsel %vm793, %v777, 0
        %v804 = vsel %vm793, %v778, 0
        %v807 = vsel %vm793, %v779, 0
        %v810 = vsel %vm793, %v780, 0
        %v813 = vsel %vm793, %v781, 0
        %v816 = vsel %vm793, %v782, 0
        %v819 = vsel %vm793, %v783, 0
        %v822 = vsel %vm793, %v784, 0
        %824 = vmatpush.msra.mxu0 0.0
        %825 = vmatpush.msra.mxu0 0.0
        %826 = vmatpush.msra.mxu0 0.0
        %827 = vmatpush.msra.mxu0 0.0
        %828 = vmatpush.msra.mxu0 0.0
        %829 = vmatpush.msra.mxu0 0.0
        %830 = vmatpush.msra.mxu0 0.0
        %831 = vmatpush.msra.mxu0 0.0
        %832 = vmatpush.msra.mxu0 0.0
        %833 = vmatpush.msra.mxu0 0.0
        %834 = vmatpush.msra.mxu0 0.0
        %835 = vmatpush.msra.mxu0 0.0
        %836 = vmatpush.msra.mxu0 %v788
        %837 = vmatpush.msra.mxu0 %v787
        %838 = vmatpush.msra.mxu0 %v786
        %839 = vmatpush.msra.mxu0 %v785
        %840 = vmatmul.f32.gmra.mxu0 %v795
        %v841 = vpop.f32.mrf.mxu0
        %v842 = vadd.f32 %v791, %v841
        %843 = vmatmul.f32.gmra.mxu0 %v798
        %v844 = vpop.f32.mrf.mxu0
        %v845 = vadd.f32 %v791, %v844
        %846 = vmatmul.f32.gmra.mxu0 %v801
        %v847 = vpop.f32.mrf.mxu0
        %v848 = vadd.f32 %v791, %v847
        %849 = vmatmul.f32.gmra.mxu0 %v804
        %v850 = vpop.f32.mrf.mxu0
        %v851 = vadd.f32 %v791, %v850
        %852 = vmatmul.f32.gmra.mxu0 %v807
        %v853 = vpop.f32.mrf.mxu0
        %v854 = vadd.f32 %v791, %v853
        %855 = vmatmul.f32.gmra.mxu0 %v810
        %v856 = vpop.f32.mrf.mxu0
        %v857 = vadd.f32 %v791, %v856
        %858 = vmatmul.f32.gmra.mxu0 %v813
        %v859 = vpop.f32.mrf.mxu0
        %v860 = vadd.f32 %v791, %v859
        %861 = vmatmul.f32.gmra.mxu0 %v816
        %v862 = vpop.f32.mrf.mxu0
        %v863 = vadd.f32 %v791, %v862
        %864 = vmatmul.f32.gmra.mxu0 %v819
        %v865 = vpop.f32.mrf.mxu0
        %v866 = vadd.f32 %v791, %v865
        %867 = vmatmul.f32.gmra.mxu0 %v822
        %v868 = vpop.f32.mrf.mxu0
        %v869 = vadd.f32 %v791, %v868
        %870 = vdwg.mxu0
        %v871 = vmax.f32 %v842, 0.0
        %v872 = vmax.f32 %v845, 0.0
        %v873 = vmax.f32 %v848, 0.0
        %v874 = vmax.f32 %v851, 0.0
        %v875 = vmax.f32 %v854, 0.0
        %v876 = vmax.f32 %v857, 0.0
        %v877 = vmax.f32 %v860, 0.0
        %v878 = vmax.f32 %v863, 0.0
        %v879 = vmax.f32 %v866, 0.0
        %v880 = vmax.f32 %v869, 0.0
        %v881 = vld [vmem:[%s3] sm:$0xff]
        %v882 = vld [vmem:[%s3 + $0x8] sm:$0xff]
        %v883 = vld [vmem:[%s3 + $0x10] sm:$0xff]
        %v884 = vld [vmem:[%s3 + $0x18] sm:$0xff]
        %v885 = vld [vmem:[%s3 + $0x20] sm:$0xff]
        %v886 = vld [vmem:[%s3 + $0x28] sm:$0xff]
        %v887 = vld [vmem:[%s3 + $0x30] sm:$0xff]
        %v888 = vld [vmem:[%s3 + $0x38] sm:$0xff]
        %v889 = vld [vmem:[%s3 + $0x40] sm:$0xff]
        %v890 = vld [vmem:[%s3 + $0x48] sm:$0xff]
        %v891 = vld [vmem:[%s3 + $0x50] sm:$0xff]
        %v892 = vld [vmem:[%s3 + $0x58] sm:$0xff]
        %v893 = vld [vmem:[%s3 + $0x60] sm:$0xff]
        %v894 = vld [vmem:[%s3 + $0x68] sm:$0xff]
        %v895 = vld [vmem:[%s3 + $0x70] sm:$0xff]
        %v896 = vld [vmem:[%s3 + $0x78] sm:$0xff]
        %v897 = vld [vmem:[%s3 + $0x80] sm:$0xff]
        %v898 = vld [vmem:[%s3 + $0x88] sm:$0xff]
        %v899 = vld [vmem:[%s3 + $0x90] sm:$0xff]
        %v900 = vld [vmem:[%s3 + $0x98] sm:$0xff]
        %v901 = vld [vmem:[%s3 + $0xa0] sm:$0xff]
        %v902 = vld [vmem:[%s3 + $0xa8] sm:$0xff]
        %v903 = vld [vmem:[%s3 + $0xb0] sm:$0xff]
        %v904 = vld [vmem:[%s3 + $0xb8] sm:$0xff]
        %v905 = vld [vmem:[%s3 + $0xc0] sm:$0xff]
        %v906 = vld [vmem:[%s3 + $0xc8] sm:$0xff]
        %v907 = vld [vmem:[%s3 + $0xd0] sm:$0xff]
        %v908 = vld [vmem:[%s3 + $0xd8] sm:$0xff]
        %v909 = vld [vmem:[%s3 + $0xe0] sm:$0xff]
        %v910 = vld [vmem:[%s3 + $0xe8] sm:$0xff]
        %v911 = vld [vmem:[%s3 + $0xf0] sm:$0xff]
        %v912 = vld [vmem:[%s3 + $0xf8] sm:$0xff]
        %v913 = vld [vmem:[%s656] sm:$0xff]
        %v914 = vld [vmem:[%s656 + $0x8] sm:$0xff]
        %v915 = vld [vmem:[%s656 + $0x10] sm:$0xff]
        %v916 = vld [vmem:[%s656 + $0x18] sm:$0xff]
        %v917 = vld [vmem:[%s656 + $0x20] sm:$0xff]
        %v918 = vld [vmem:[%s656 + $0x28] sm:$0xff]
        %v919 = vld [vmem:[%s656 + $0x30] sm:$0xff]
        %v920 = vld [vmem:[%s656 + $0x38] sm:$0xff]
        %v921 = vld [vmem:[%s656 + $0x40] sm:$0xff]
        %v922 = vld [vmem:[%s656 + $0x48] sm:$0xff]
        %v923 = vld [vmem:[#allocation5] sm:$0xff]
        %v924 = vld [vmem:[#allocation5 + $0x8] sm:$0xff]
        %v925 = vld [vmem:[#allocation5 + $0x10] sm:$0xff]
        %v926 = vld [vmem:[#allocation5 + $0x18] sm:$0xff]
        %v927 = vld [vmem:[#allocation5 + $0x20] sm:$0xff]
        %v928 = vld [vmem:[#allocation5 + $0x28] sm:$0xff]
        %v929 = vld [vmem:[#allocation5 + $0x30] sm:$0xff]
        %v930 = vld [vmem:[#allocation5 + $0x38] sm:$0xff]
        %v931 = vld [vmem:[#allocation5 + $0x40] sm:$0xff]
        %v932 = vld [vmem:[#allocation5 + $0x48] sm:$0xff]
        %v933 = vld [vmem:[#allocation5 + $0x50] sm:$0xff]
        %v934 = vld [vmem:[#allocation5 + $0x58] sm:$0xff]
        %v935 = vld [vmem:[#allocation5 + $0x60] sm:$0xff]
        %v936 = vld [vmem:[#allocation5 + $0x68] sm:$0xff]
        %v937 = vld [vmem:[#allocation5 + $0x70] sm:$0xff]
        %v938 = vld [vmem:[#allocation5 + $0x78] sm:$0xff]
        %v939 = vld [vmem:[#allocation5 + $0x80] sm:$0xff]
        %v940 = vld [vmem:[#allocation5 + $0x88] sm:$0xff]
        %v941 = vld [vmem:[#allocation5 + $0x90] sm:$0xff]
        %v942 = vld [vmem:[#allocation5 + $0x98] sm:$0xff]
        %v943 = vld [vmem:[#allocation5 + $0xa0] sm:$0xff]
        %v944 = vld [vmem:[#allocation5 + $0xa8] sm:$0xff]
        %v945 = vld [vmem:[#allocation5 + $0xb0] sm:$0xff]
        %v946 = vld [vmem:[#allocation5 + $0xb8] sm:$0xff]
        %v947 = vld [vmem:[#allocation5 + $0xc0] sm:$0xff]
        %v948 = vld [vmem:[#allocation5 + $0xc8] sm:$0xff]
        %v949 = vld [vmem:[#allocation5 + $0xd0] sm:$0xff]
        %v950 = vld [vmem:[#allocation5 + $0xd8] sm:$0xff]
        %v951 = vld [vmem:[#allocation5 + $0xe0] sm:$0xff]
        %v952 = vld [vmem:[#allocation5 + $0xe8] sm:$0xff]
        %v953 = vld [vmem:[#allocation5 + $0xf0] sm:$0xff]
        %v954 = vld [vmem:[#allocation5 + $0xf8] sm:$0xff]
        %v955 = vld [vmem:[#allocation5 + $0x100] sm:$0xff]
        %v956 = vld [vmem:[#allocation5 + $0x108] sm:$0xff]
        %v957 = vld [vmem:[#allocation5 + $0x110] sm:$0xff]
        %v958 = vld [vmem:[#allocation5 + $0x118] sm:$0xff]
        %v959 = vld [vmem:[#allocation5 + $0x120] sm:$0xff]
        %v960 = vld [vmem:[#allocation5 + $0x128] sm:$0xff]
        %v961 = vld [vmem:[#allocation5 + $0x130] sm:$0xff]
        %v962 = vld [vmem:[#allocation5 + $0x138] sm:$0xff]
        %v963 = vld [vmem:[#allocation5 + $0x140] sm:$0xff]
        %v964 = vld [vmem:[#allocation5 + $0x148] sm:$0xff]
        %v965 = vld [vmem:[#allocation5 + $0x150] sm:$0xff]
        %v966 = vld [vmem:[#allocation5 + $0x158] sm:$0xff]
        %v967 = vld [vmem:[#allocation5 + $0x160] sm:$0xff]
        %v968 = vld [vmem:[#allocation5 + $0x168] sm:$0xff]
        %v969 = vld [vmem:[#allocation5 + $0x170] sm:$0xff]
        %v970 = vld [vmem:[#allocation5 + $0x178] sm:$0xff]
        %v971 = vld [vmem:[#allocation5 + $0x180] sm:$0xff]
        %v972 = vld [vmem:[#allocation5 + $0x188] sm:$0xff]
        %v973 = vld [vmem:[#allocation5 + $0x190] sm:$0xff]
        %v974 = vld [vmem:[#allocation5 + $0x198] sm:$0xff]
        %v975 = vld [vmem:[#allocation5 + $0x1a0] sm:$0xff]
        %v976 = vld [vmem:[#allocation5 + $0x1a8] sm:$0xff]
        %v977 = vld [vmem:[#allocation5 + $0x1b0] sm:$0xff]
        %v978 = vld [vmem:[#allocation5 + $0x1b8] sm:$0xff]
        %v979 = vld [vmem:[#allocation5 + $0x1c0] sm:$0xff]
        %v980 = vld [vmem:[#allocation5 + $0x1c8] sm:$0xff]
        %v981 = vld [vmem:[#allocation5 + $0x1d0] sm:$0xff]
        %v982 = vld [vmem:[#allocation5 + $0x1d8] sm:$0xff]
        %v983 = vld [vmem:[#allocation5 + $0x1e0] sm:$0xff]
        %v984 = vld [vmem:[#allocation5 + $0x1e8] sm:$0xff]
        %v985 = vld [vmem:[#allocation5 + $0x1f0] sm:$0xff]
        %v986 = vld [vmem:[#allocation5 + $0x1f8] sm:$0xff]
        %987 = vmatpush.msra.mxu0 %v983
        %988 = vmatpush.msra.mxu0 %v979
        %989 = vmatpush.msra.mxu0 %v975
        %990 = vmatpush.msra.mxu0 %v971
        %991 = vmatpush.msra.mxu0 %v967
        %992 = vmatpush.msra.mxu0 %v963
        %993 = vmatpush.msra.mxu0 %v959
        %994 = vmatpush.msra.mxu0 %v955
        %995 = vmatpush.msra.mxu0 %v951
        %996 = vmatpush.msra.mxu0 %v947
        %997 = vmatpush.msra.mxu0 %v943
        %998 = vmatpush.msra.mxu0 %v939
        %999 = vmatpush.msra.mxu0 %v935
        %1000 = vmatpush.msra.mxu0 %v931
        %1001 = vmatpush.msra.mxu0 %v927
        %1002 = vmatpush.msra.mxu0 %v923
        %1003 = vmatmul.f32.gmra.mxu0 %v913
        %v1004 = vpop.f32.mrf.mxu0
        %v1005 = vadd.f32 0.0, %v1004
        %1006 = vmatmul.f32.gmra.mxu0 %v914
        %v1007 = vpop.f32.mrf.mxu0
        %v1008 = vadd.f32 0.0, %v1007
        %1009 = vmatmul.f32.gmra.mxu0 %v915
        %v1010 = vpop.f32.mrf.mxu0
        %v1011 = vadd.f32 0.0, %v1010
        %1012 = vmatmul.f32.gmra.mxu0 %v916
        %v1013 = vpop.f32.mrf.mxu0
        %v1014 = vadd.f32 0.0, %v1013
        %1015 = vmatmul.f32.gmra.mxu0 %v917
        %v1016 = vpop.f32.mrf.mxu0
        %v1017 = vadd.f32 0.0, %v1016
        %1018 = vmatmul.f32.gmra.mxu0 %v918
        %v1019 = vpop.f32.mrf.mxu0
        %v1020 = vadd.f32 0.0, %v1019
        %1021 = vmatmul.f32.gmra.mxu0 %v919
        %v1022 = vpop.f32.mrf.mxu0
        %v1023 = vadd.f32 0.0, %v1022
        %1024 = vmatmul.f32.gmra.mxu0 %v920
        %v1025 = vpop.f32.mrf.mxu0
        %v1026 = vadd.f32 0.0, %v1025
        %1027 = vmatmul.f32.gmra.mxu0 %v921
        %v1028 = vpop.f32.mrf.mxu0
        %v1029 = vadd.f32 0.0, %v1028
        %1030 = vmatmul.f32.gmra.mxu0 %v922
        %v1031 = vpop.f32.mrf.mxu0
        %v1032 = vadd.f32 0.0, %v1031
        %1033 = vdwg.mxu0
        %1034 = vmatpush.msra.mxu0 %v984
        %1035 = vmatpush.msra.mxu0 %v980
        %1036 = vmatpush.msra.mxu0 %v976
        %1037 = vmatpush.msra.mxu0 %v972
        %1038 = vmatpush.msra.mxu0 %v968
        %1039 = vmatpush.msra.mxu0 %v964
        %1040 = vmatpush.msra.mxu0 %v960
        %1041 = vmatpush.msra.mxu0 %v956
        %1042 = vmatpush.msra.mxu0 %v952
        %1043 = vmatpush.msra.mxu0 %v948
        %1044 = vmatpush.msra.mxu0 %v944
        %1045 = vmatpush.msra.mxu0 %v940
        %1046 = vmatpush.msra.mxu0 %v936
        %1047 = vmatpush.msra.mxu0 %v932
        %1048 = vmatpush.msra.mxu0 %v928
        %1049 = vmatpush.msra.mxu0 %v924
        %1050 = vmatmul.f32.gmra.mxu0 %v913
        %v1051 = vpop.f32.mrf.mxu0
        %v1052 = vadd.f32 0.0, %v1051
        %1053 = vmatmul.f32.gmra.mxu0 %v914
        %v1054 = vpop.f32.mrf.mxu0
        %v1055 = vadd.f32 0.0, %v1054
        %1056 = vmatmul.f32.gmra.mxu0 %v915
        %v1057 = vpop.f32.mrf.mxu0
        %v1058 = vadd.f32 0.0, %v1057
        %1059 = vmatmul.f32.gmra.mxu0 %v916
        %v1060 = vpop.f32.mrf.mxu0
        %v1061 = vadd.f32 0.0, %v1060
        %1062 = vmatmul.f32.gmra.mxu0 %v917
        %v1063 = vpop.f32.mrf.mxu0
        %v1064 = vadd.f32 0.0, %v1063
        %1065 = vmatmul.f32.gmra.mxu0 %v918
        %v1066 = vpop.f32.mrf.mxu0
        %v1067 = vadd.f32 0.0, %v1066
        %1068 = vmatmul.f32.gmra.mxu0 %v919
        %v1069 = vpop.f32.mrf.mxu0
        %v1070 = vadd.f32 0.0, %v1069
        %1071 = vmatmul.f32.gmra.mxu0 %v920
        %v1072 = vpop.f32.mrf.mxu0
        %v1073 = vadd.f32 0.0, %v1072
        %1074 = vmatmul.f32.gmra.mxu0 %v921
        %v1075 = vpop.f32.mrf.mxu0
        %v1076 = vadd.f32 0.0, %v1075
        %1077 = vmatmul.f32.gmra.mxu0 %v922
        %v1078 = vpop.f32.mrf.mxu0
        %v1079 = vadd.f32 0.0, %v1078
        %1080 = vdwg.mxu0
        %1081 = vmatpush.msra.mxu0 %v985
        %1082 = vmatpush.msra.mxu0 %v981
        %1083 = vmatpush.msra.mxu0 %v977
        %1084 = vmatpush.msra.mxu0 %v973
        %1085 = vmatpush.msra.mxu0 %v969
        %1086 = vmatpush.msra.mxu0 %v965
        %1087 = vmatpush.msra.mxu0 %v961
        %1088 = vmatpush.msra.mxu0 %v957
        %1089 = vmatpush.msra.mxu0 %v953
        %1090 = vmatpush.msra.mxu0 %v949
        %1091 = vmatpush.msra.mxu0 %v945
        %1092 = vmatpush.msra.mxu0 %v941
        %1093 = vmatpush.msra.mxu0 %v937
        %1094 = vmatpush.msra.mxu0 %v933
        %1095 = vmatpush.msra.mxu0 %v929
        %1096 = vmatpush.msra.mxu0 %v925
        %1097 = vmatmul.f32.gmra.mxu0 %v913
        %v1098 = vpop.f32.mrf.mxu0
        %v1099 = vadd.f32 0.0, %v1098
        %1100 = vmatmul.f32.gmra.mxu0 %v914
        %v1101 = vpop.f32.mrf.mxu0
        %v1102 = vadd.f32 0.0, %v1101
        %1103 = vmatmul.f32.gmra.mxu0 %v915
        %v1104 = vpop.f32.mrf.mxu0
        %v1105 = vadd.f32 0.0, %v1104
        %1106 = vmatmul.f32.gmra.mxu0 %v916
        %v1107 = vpop.f32.mrf.mxu0
        %v1108 = vadd.f32 0.0, %v1107
        %1109 = vmatmul.f32.gmra.mxu0 %v917
        %v1110 = vpop.f32.mrf.mxu0
        %v1111 = vadd.f32 0.0, %v1110
        %1112 = vmatmul.f32.gmra.mxu0 %v918
        %v1113 = vpop.f32.mrf.mxu0
        %v1114 = vadd.f32 0.0, %v1113
        %1115 = vmatmul.f32.gmra.mxu0 %v919
        %v1116 = vpop.f32.mrf.mxu0
        %v1117 = vadd.f32 0.0, %v1116
        %1118 = vmatmul.f32.gmra.mxu0 %v920
        %v1119 = vpop.f32.mrf.mxu0
        %v1120 = vadd.f32 0.0, %v1119
        %1121 = vmatmul.f32.gmra.mxu0 %v921
        %v1122 = vpop.f32.mrf.mxu0
        %v1123 = vadd.f32 0.0, %v1122
        %1124 = vmatmul.f32.gmra.mxu0 %v922
        %v1125 = vpop.f32.mrf.mxu0
        %v1126 = vadd.f32 0.0, %v1125
        %1127 = vdwg.mxu0
        %1128 = vmatpush.msra.mxu0 %v986
        %1129 = vmatpush.msra.mxu0 %v982
        %1130 = vmatpush.msra.mxu0 %v978
        %1131 = vmatpush.msra.mxu0 %v974
        %1132 = vmatpush.msra.mxu0 %v970
        %1133 = vmatpush.msra.mxu0 %v966
        %1134 = vmatpush.msra.mxu0 %v962
        %1135 = vmatpush.msra.mxu0 %v958
        %1136 = vmatpush.msra.mxu0 %v954
        %1137 = vmatpush.msra.mxu0 %v950
        %1138 = vmatpush.msra.mxu0 %v946
        %1139 = vmatpush.msra.mxu0 %v942
        %1140 = vmatpush.msra.mxu0 %v938
        %1141 = vmatpush.msra.mxu0 %v934
        %1142 = vmatpush.msra.mxu0 %v930
        %1143 = vmatpush.msra.mxu0 %v926
        %1144 = vmatmul.f32.gmra.mxu0 %v913
        %v1145 = vpop.f32.mrf.mxu0
        %v1146 = vadd.f32 0.0, %v1145
        %1147 = vmatmul.f32.gmra.mxu0 %v914
        %v1148 = vpop.f32.mrf.mxu0
        %v1149 = vadd.f32 0.0, %v1148
        %1150 = vmatmul.f32.gmra.mxu0 %v915
        %v1151 = vpop.f32.mrf.mxu0
        %v1152 = vadd.f32 0.0, %v1151
        %1153 = vmatmul.f32.gmra.mxu0 %v916
        %v1154 = vpop.f32.mrf.mxu0
        %v1155 = vadd.f32 0.0, %v1154
        %1156 = vmatmul.f32.gmra.mxu0 %v917
        %v1157 = vpop.f32.mrf.mxu0
        %v1158 = vadd.f32 0.0, %v1157
        %1159 = vmatmul.f32.gmra.mxu0 %v918
        %v1160 = vpop.f32.mrf.mxu0
        %v1161 = vadd.f32 0.0, %v1160
        %1162 = vmatmul.f32.gmra.mxu0 %v919
        %v1163 = vpop.f32.mrf.mxu0
        %v1164 = vadd.f32 0.0, %v1163
        %1165 = vmatmul.f32.gmra.mxu0 %v920
        %v1166 = vpop.f32.mrf.mxu0
        %v1167 = vadd.f32 0.0, %v1166
        %1168 = vmatmul.f32.gmra.mxu0 %v921
        %v1169 = vpop.f32.mrf.mxu0
        %v1170 = vadd.f32 0.0, %v1169
        %1171 = vmatmul.f32.gmra.mxu0 %v922
        %v1172 = vpop.f32.mrf.mxu0
        %v1173 = vadd.f32 0.0, %v1172
        %1174 = vdwg.mxu0
        %vm1175 = vcmask 523264
        %v1177 = vsel %vm1175, %v871, 0
        %v1180 = vsel %vm1175, %v872, 0
        %v1183 = vsel %vm1175, %v873, 0
        %v1186 = vsel %vm1175, %v874, 0
        %v1189 = vsel %vm1175, %v875, 0
        %v1192 = vsel %vm1175, %v876, 0
        %v1195 = vsel %vm1175, %v877, 0
        %v1198 = vsel %vm1175, %v878, 0
        %v1201 = vsel %vm1175, %v879, 0
        %v1204 = vsel %vm1175, %v880, 0
        %1206 = vmatpush.msra.mxu0 0.0
        %1207 = vmatpush.msra.mxu0 0.0
        %1208 = vmatpush.msra.mxu0 0.0
        %1209 = vmatpush.msra.mxu0 0.0
        %1210 = vmatpush.msra.mxu0 0.0
        %1211 = vmatpush.msra.mxu0 0.0
        %1212 = vmatpush.msra.mxu0 0.0
        %1213 = vmatpush.msra.mxu0 0.0
        %1214 = vmatpush.msra.mxu0 %v909
        %1215 = vmatpush.msra.mxu0 %v905
        %1216 = vmatpush.msra.mxu0 %v901
        %1217 = vmatpush.msra.mxu0 %v897
        %1218 = vmatpush.msra.mxu0 %v893
        %1219 = vmatpush.msra.mxu0 %v889
        %1220 = vmatpush.msra.mxu0 %v885
        %1221 = vmatpush.msra.mxu0 %v881
        %1222 = vmatmul.f32.gmra.mxu0 %v1177
        %v1223 = vpop.f32.mrf.mxu0
        %v1224 = vadd.f32 %v1005, %v1223
        %1225 = vmatmul.f32.gmra.mxu0 %v1180
        %v1226 = vpop.f32.mrf.mxu0
        %v1227 = vadd.f32 %v1008, %v1226
        %1228 = vmatmul.f32.gmra.mxu0 %v1183
        %v1229 = vpop.f32.mrf.mxu0
        %v1230 = vadd.f32 %v1011, %v1229
        %1231 = vmatmul.f32.gmra.mxu0 %v1186
        %v1232 = vpop.f32.mrf.mxu0
        %v1233 = vadd.f32 %v1014, %v1232
        %1234 = vmatmul.f32.gmra.mxu0 %v1189
        %v1235 = vpop.f32.mrf.mxu0
        %v1236 = vadd.f32 %v1017, %v1235
        %1237 = vmatmul.f32.gmra.mxu0 %v1192
        %v1238 = vpop.f32.mrf.mxu0
        %v1239 = vadd.f32 %v1020, %v1238
        %1240 = vmatmul.f32.gmra.mxu0 %v1195
        %v1241 = vpop.f32.mrf.mxu0
        %v1242 = vadd.f32 %v1023, %v1241
        %1243 = vmatmul.f32.gmra.mxu0 %v1198
        %v1244 = vpop.f32.mrf.mxu0
        %v1245 = vadd.f32 %v1026, %v1244
        %1246 = vmatmul.f32.gmra.mxu0 %v1201
        %v1247 = vpop.f32.mrf.mxu0
        %v1248 = vadd.f32 %v1029, %v1247
        %1249 = vmatmul.f32.gmra.mxu0 %v1204
        %v1250 = vpop.f32.mrf.mxu0
        %v1251 = vadd.f32 %v1032, %v1250
        %1252 = vdwg.mxu0
        %1253 = vmatpush.msra.mxu0 0.0
        %1254 = vmatpush.msra.mxu0 0.0
        %1255 = vmatpush.msra.mxu0 0.0
        %1256 = vmatpush.msra.mxu0 0.0
        %1257 = vmatpush.msra.mxu0 0.0
        %1258 = vmatpush.msra.mxu0 0.0
        %1259 = vmatpush.msra.mxu0 0.0
        %1260 = vmatpush.msra.mxu0 0.0
        %1261 = vmatpush.msra.mxu0 %v910
        %1262 = vmatpush.msra.mxu0 %v906
        %1263 = vmatpush.msra.mxu0 %v902
        %1264 = vmatpush.msra.mxu0 %v898
        %1265 = vmatpush.msra.mxu0 %v894
        %1266 = vmatpush.msra.mxu0 %v890
        %1267 = vmatpush.msra.mxu0 %v886
        %1268 = vmatpush.msra.mxu0 %v882
        %1269 = vmatmul.f32.gmra.mxu0 %v1177
        %v1270 = vpop.f32.mrf.mxu0
        %v1271 = vadd.f32 %v1052, %v1270
        %1272 = vmatmul.f32.gmra.mxu0 %v1180
        %v1273 = vpop.f32.mrf.mxu0
        %v1274 = vadd.f32 %v1055, %v1273
        %1275 = vmatmul.f32.gmra.mxu0 %v1183
        %v1276 = vpop.f32.mrf.mxu0
        %v1277 = vadd.f32 %v1058, %v1276
        %1278 = vmatmul.f32.gmra.mxu0 %v1186
        %v1279 = vpop.f32.mrf.mxu0
        %v1280 = vadd.f32 %v1061, %v1279
        %1281 = vmatmul.f32.gmra.mxu0 %v1189
        %v1282 = vpop.f32.mrf.mxu0
        %v1283 = vadd.f32 %v1064, %v1282
        %1284 = vmatmul.f32.gmra.mxu0 %v1192
        %v1285 = vpop.f32.mrf.mxu0
        %v1286 = vadd.f32 %v1067, %v1285
        %1287 = vmatmul.f32.gmra.mxu0 %v1195
        %v1288 = vpop.f32.mrf.mxu0
        %v1289 = vadd.f32 %v1070, %v1288
        %1290 = vmatmul.f32.gmra.mxu0 %v1198
        %v1291 = vpop.f32.mrf.mxu0
        %v1292 = vadd.f32 %v1073, %v1291
        %1293 = vmatmul.f32.gmra.mxu0 %v1201
        %v1294 = vpop.f32.mrf.mxu0
        %v1295 = vadd.f32 %v1076, %v1294
        %1296 = vmatmul.f32.gmra.mxu0 %v1204
        %v1297 = vpop.f32.mrf.mxu0
        %v1298 = vadd.f32 %v1079, %v1297
        %1299 = vdwg.mxu0
        %1300 = vmatpush.msra.mxu0 0.0
        %1301 = vmatpush.msra.mxu0 0.0
        %1302 = vmatpush.msra.mxu0 0.0
        %1303 = vmatpush.msra.mxu0 0.0
        %1304 = vmatpush.msra.mxu0 0.0
        %1305 = vmatpush.msra.mxu0 0.0
        %1306 = vmatpush.msra.mxu0 0.0
        %1307 = vmatpush.msra.mxu0 0.0
        %1308 = vmatpush.msra.mxu0 %v911
        %1309 = vmatpush.msra.mxu0 %v907
        %1310 = vmatpush.msra.mxu0 %v903
        %1311 = vmatpush.msra.mxu0 %v899
        %1312 = vmatpush.msra.mxu0 %v895
        %1313 = vmatpush.msra.mxu0 %v891
        %1314 = vmatpush.msra.mxu0 %v887
        %1315 = vmatpush.msra.mxu0 %v883
        %1316 = vmatmul.f32.gmra.mxu0 %v1177
        %v1317 = vpop.f32.mrf.mxu0
        %v1318 = vadd.f32 %v1099, %v1317
        %1319 = vmatmul.f32.gmra.mxu0 %v1180
        %v1320 = vpop.f32.mrf.mxu0
        %v1321 = vadd.f32 %v1102, %v1320
        %1322 = vmatmul.f32.gmra.mxu0 %v1183
        %v1323 = vpop.f32.mrf.mxu0
        %v1324 = vadd.f32 %v1105, %v1323
        %1325 = vmatmul.f32.gmra.mxu0 %v1186
        %v1326 = vpop.f32.mrf.mxu0
        %v1327 = vadd.f32 %v1108, %v1326
        %1328 = vmatmul.f32.gmra.mxu0 %v1189
        %v1329 = vpop.f32.mrf.mxu0
        %v1330 = vadd.f32 %v1111, %v1329
        %1331 = vmatmul.f32.gmra.mxu0 %v1192
        %v1332 = vpop.f32.mrf.mxu0
        %v1333 = vadd.f32 %v1114, %v1332
        %1334 = vmatmul.f32.gmra.mxu0 %v1195
        %v1335 = vpop.f32.mrf.mxu0
        %v1336 = vadd.f32 %v1117, %v1335
        %1337 = vmatmul.f32.gmra.mxu0 %v1198
        %v1338 = vpop.f32.mrf.mxu0
        %v1339 = vadd.f32 %v1120, %v1338
        %1340 = vmatmul.f32.gmra.mxu0 %v1201
        %v1341 = vpop.f32.mrf.mxu0
        %v1342 = vadd.f32 %v1123, %v1341
        %1343 = vmatmul.f32.gmra.mxu0 %v1204
        %v1344 = vpop.f32.mrf.mxu0
        %v1345 = vadd.f32 %v1126, %v1344
        %1346 = vdwg.mxu0
        %1347 = vmatpush.msra.mxu0 0.0
        %1348 = vmatpush.msra.mxu0 0.0
        %1349 = vmatpush.msra.mxu0 0.0
        %1350 = vmatpush.msra.mxu0 0.0
        %1351 = vmatpush.msra.mxu0 0.0
        %1352 = vmatpush.msra.mxu0 0.0
        %1353 = vmatpush.msra.mxu0 0.0
        %1354 = vmatpush.msra.mxu0 0.0
        %1355 = vmatpush.msra.mxu0 %v912
        %1356 = vmatpush.msra.mxu0 %v908
        %1357 = vmatpush.msra.mxu0 %v904
        %1358 = vmatpush.msra.mxu0 %v900
        %1359 = vmatpush.msra.mxu0 %v896
        %1360 = vmatpush.msra.mxu0 %v892
        %1361 = vmatpush.msra.mxu0 %v888
        %1362 = vmatpush.msra.mxu0 %v884
        %1363 = vmatmul.f32.gmra.mxu0 %v1177
        %v1364 = vpop.f32.mrf.mxu0
        %v1365 = vadd.f32 %v1146, %v1364
        %1366 = vmatmul.f32.gmra.mxu0 %v1180
        %v1367 = vpop.f32.mrf.mxu0
        %v1368 = vadd.f32 %v1149, %v1367
        %1369 = vmatmul.f32.gmra.mxu0 %v1183
        %v1370 = vpop.f32.mrf.mxu0
        %v1371 = vadd.f32 %v1152, %v1370
        %1372 = vmatmul.f32.gmra.mxu0 %v1186
        %v1373 = vpop.f32.mrf.mxu0
        %v1374 = vadd.f32 %v1155, %v1373
        %1375 = vmatmul.f32.gmra.mxu0 %v1189
        %v1376 = vpop.f32.mrf.mxu0
        %v1377 = vadd.f32 %v1158, %v1376
        %1378 = vmatmul.f32.gmra.mxu0 %v1192
        %v1379 = vpop.f32.mrf.mxu0
        %v1380 = vadd.f32 %v1161, %v1379
        %1381 = vmatmul.f32.gmra.mxu0 %v1195
        %v1382 = vpop.f32.mrf.mxu0
        %v1383 = vadd.f32 %v1164, %v1382
        %1384 = vmatmul.f32.gmra.mxu0 %v1198
        %v1385 = vpop.f32.mrf.mxu0
        %v1386 = vadd.f32 %v1167, %v1385
        %1387 = vmatmul.f32.gmra.mxu0 %v1201
        %v1388 = vpop.f32.mrf.mxu0
        %v1389 = vadd.f32 %v1170, %v1388
        %1390 = vmatmul.f32.gmra.mxu0 %v1204
        %v1391 = vpop.f32.mrf.mxu0
        %v1392 = vadd.f32 %v1173, %v1391
        %1393 = vdwg.mxu0
        %v1394 = vld [vmem:[#allocation7] sm:$0xf]
        %v1396 = vperm.slane %v1394, 0
        %v1397 = vperm.slane %v1394, 1
        %v1398 = vperm.slane %v1394, 2
        %v1399 = vperm.slane %v1394, 3
        %v1404 = vadd.f32 %v1224, %v1396
        %v1405 = vadd.f32 %v1271, %v1397
        %v1406 = vadd.f32 %v1318, %v1398
        %v1407 = vadd.f32 %v1365, %v1399
        %v1408 = vadd.f32 %v1227, %v1396
        %v1409 = vadd.f32 %v1274, %v1397
        %v1410 = vadd.f32 %v1321, %v1398
        %v1411 = vadd.f32 %v1368, %v1399
        %v1412 = vadd.f32 %v1230, %v1396
        %v1413 = vadd.f32 %v1277, %v1397
        %v1414 = vadd.f32 %v1324, %v1398
        %v1415 = vadd.f32 %v1371, %v1399
        %v1416 = vadd.f32 %v1233, %v1396
        %v1417 = vadd.f32 %v1280, %v1397
        %v1418 = vadd.f32 %v1327, %v1398
        %v1419 = vadd.f32 %v1374, %v1399
        %v1420 = vadd.f32 %v1236, %v1396
        %v1421 = vadd.f32 %v1283, %v1397
        %v1422 = vadd.f32 %v1330, %v1398
        %v1423 = vadd.f32 %v1377, %v1399
        %v1424 = vadd.f32 %v1239, %v1396
        %v1425 = vadd.f32 %v1286, %v1397
        %v1426 = vadd.f32 %v1333, %v1398
        %v1427 = vadd.f32 %v1380, %v1399
        %v1428 = vadd.f32 %v1242, %v1396
        %v1429 = vadd.f32 %v1289, %v1397
        %v1430 = vadd.f32 %v1336, %v1398
        %v1431 = vadd.f32 %v1383, %v1399
        %v1432 = vadd.f32 %v1245, %v1396
        %v1433 = vadd.f32 %v1292, %v1397
        %v1434 = vadd.f32 %v1339, %v1398
        %v1435 = vadd.f32 %v1386, %v1399
        %v1436 = vadd.f32 %v1248, %v1396
        %v1437 = vadd.f32 %v1295, %v1397
        %v1438 = vadd.f32 %v1342, %v1398
        %v1439 = vadd.f32 %v1389, %v1399
        %v1440 = vadd.f32 %v1251, %v1396
        %v1441 = vadd.f32 %v1298, %v1397
        %v1442 = vadd.f32 %v1345, %v1398
        %v1443 = vadd.f32 %v1392, %v1399
        %v1444 = vsub.f32 0.0, %v1404
        %v1445 = vsub.f32 0.0, %v1408
        %v1446 = vsub.f32 0.0, %v1412
        %v1447 = vsub.f32 0.0, %v1416
        %v1448 = vsub.f32 0.0, %v1420
        %v1449 = vsub.f32 0.0, %v1424
        %v1450 = vsub.f32 0.0, %v1428
        %v1451 = vsub.f32 0.0, %v1432
        %v1452 = vsub.f32 0.0, %v1436
        %v1453 = vsub.f32 0.0, %v1440
        %v1454 = vmul.f32 %v1444, 1.442695
        %v1455 = vpow.pop %v1454
        %v1456 = vmul.f32 %v1445, 1.442695
        %v1457 = vpow.pop %v1456
        %v1458 = vmul.f32 %v1446, 1.442695
        %v1459 = vpow.pop %v1458
        %v1460 = vmul.f32 %v1447, 1.442695
        %v1461 = vpow.pop %v1460
        %v1462 = vmul.f32 %v1448, 1.442695
        %v1463 = vpow.pop %v1462
        %v1464 = vmul.f32 %v1449, 1.442695
        %v1465 = vpow.pop %v1464
        %v1466 = vmul.f32 %v1450, 1.442695
        %v1467 = vpow.pop %v1466
        %v1468 = vmul.f32 %v1451, 1.442695
        %v1469 = vpow.pop %v1468
        %v1470 = vmul.f32 %v1452, 1.442695
        %v1471 = vpow.pop %v1470
        %v1472 = vmul.f32 %v1453, 1.442695
        %v1473 = vpow.pop %v1472
        %v1474 = vadd.f32 %v1455, 1.0
        %v1475 = vadd.f32 %v1457, 1.0
        %v1476 = vadd.f32 %v1459, 1.0
        %v1477 = vadd.f32 %v1461, 1.0
        %v1478 = vadd.f32 %v1463, 1.0
        %v1479 = vadd.f32 %v1465, 1.0
        %v1480 = vadd.f32 %v1467, 1.0
        %v1481 = vadd.f32 %v1469, 1.0
        %v1482 = vadd.f32 %v1471, 1.0
        %v1483 = vadd.f32 %v1473, 1.0
        %v1484 = vrcp.pop %v1474
        %v1485 = vmul.f32 %v1474, %v1484
        %v1486 = vsub.f32 1.0, %v1485
        %v1487 = vmul.f32 %v1484, %v1486
        %v1488 = vadd.f32 %v1484, %v1487
        %vm1489 = vweird.f32 %v1474
        %vm1490 = vweird.f32 %v1484
        %vm1491 = vmor %vm1489, %vm1490
        %v1492 = vsel %vm1491, %v1484, %v1488
        %v1493 = vand.u32 2147483647, %v1474
        %vm1494 = vcmp.eq.f32.partialorder %v1493, 8.507059e+37
        %v1495 = vand.u32 %v1474, 2147483648
        %v1496 = vor.u32 1.1754944e-38, %v1495
        %v1497 = vsel %vm1494, %v1496, %v1492
        %v1498 = vmul.f32 1.0, %v1497
        %v1499 = vrcp.pop %v1475
        %v1500 = vmul.f32 %v1475, %v1499
        %v1501 = vsub.f32 1.0, %v1500
        %v1502 = vmul.f32 %v1499, %v1501
        %v1503 = vadd.f32 %v1499, %v1502
        %vm1504 = vweird.f32 %v1475
        %vm1505 = vweird.f32 %v1499
        %vm1506 = vmor %vm1504, %vm1505
        %v1507 = vsel %vm1506, %v1499, %v1503
        %v1508 = vand.u32 2147483647, %v1475
        %vm1509 = vcmp.eq.f32.partialorder %v1508, 8.507059e+37
        %v1510 = vand.u32 %v1475, 2147483648
        %v1511 = vor.u32 1.1754944e-38, %v1510
        %v1512 = vsel %vm1509, %v1511, %v1507
        %v1513 = vmul.f32 1.0, %v1512
        %v1514 = vrcp.pop %v1476
        %v1515 = vmul.f32 %v1476, %v1514
        %v1516 = vsub.f32 1.0, %v1515
        %v1517 = vmul.f32 %v1514, %v1516
        %v1518 = vadd.f32 %v1514, %v1517
        %vm1519 = vweird.f32 %v1476
        %vm1520 = vweird.f32 %v1514
        %vm1521 = vmor %vm1519, %vm1520
        %v1522 = vsel %vm1521, %v1514, %v1518
        %v1523 = vand.u32 2147483647, %v1476
        %vm1524 = vcmp.eq.f32.partialorder %v1523, 8.507059e+37
        %v1525 = vand.u32 %v1476, 2147483648
        %v1526 = vor.u32 1.1754944e-38, %v1525
        %v1527 = vsel %vm1524, %v1526, %v1522
        %v1528 = vmul.f32 1.0, %v1527
        %v1529 = vrcp.pop %v1477
        %v1530 = vmul.f32 %v1477, %v1529
        %v1531 = vsub.f32 1.0, %v1530
        %v1532 = vmul.f32 %v1529, %v1531
        %v1533 = vadd.f32 %v1529, %v1532
        %vm1534 = vweird.f32 %v1477
        %vm1535 = vweird.f32 %v1529
        %vm1536 = vmor %vm1534, %vm1535
        %v1537 = vsel %vm1536, %v1529, %v1533
        %v1538 = vand.u32 2147483647, %v1477
        %vm1539 = vcmp.eq.f32.partialorder %v1538, 8.507059e+37
        %v1540 = vand.u32 %v1477, 2147483648
        %v1541 = vor.u32 1.1754944e-38, %v1540
        %v1542 = vsel %vm1539, %v1541, %v1537
        %v1543 = vmul.f32 1.0, %v1542
        %v1544 = vrcp.pop %v1478
        %v1545 = vmul.f32 %v1478, %v1544
        %v1546 = vsub.f32 1.0, %v1545
        %v1547 = vmul.f32 %v1544, %v1546
        %v1548 = vadd.f32 %v1544, %v1547
        %vm1549 = vweird.f32 %v1478
        %vm1550 = vweird.f32 %v1544
        %vm1551 = vmor %vm1549, %vm1550
        %v1552 = vsel %vm1551, %v1544, %v1548
        %v1553 = vand.u32 2147483647, %v1478
        %vm1554 = vcmp.eq.f32.partialorder %v1553, 8.507059e+37
        %v1555 = vand.u32 %v1478, 2147483648
        %v1556 = vor.u32 1.1754944e-38, %v1555
        %v1557 = vsel %vm1554, %v1556, %v1552
        %v1558 = vmul.f32 1.0, %v1557
        %v1559 = vrcp.pop %v1479
        %v1560 = vmul.f32 %v1479, %v1559
        %v1561 = vsub.f32 1.0, %v1560
        %v1562 = vmul.f32 %v1559, %v1561
        %v1563 = vadd.f32 %v1559, %v1562
        %vm1564 = vweird.f32 %v1479
        %vm1565 = vweird.f32 %v1559
        %vm1566 = vmor %vm1564, %vm1565
        %v1567 = vsel %vm1566, %v1559, %v1563
        %v1568 = vand.u32 2147483647, %v1479
        %vm1569 = vcmp.eq.f32.partialorder %v1568, 8.507059e+37
        %v1570 = vand.u32 %v1479, 2147483648
        %v1571 = vor.u32 1.1754944e-38, %v1570
        %v1572 = vsel %vm1569, %v1571, %v1567
        %v1573 = vmul.f32 1.0, %v1572
        %v1574 = vrcp.pop %v1480
        %v1575 = vmul.f32 %v1480, %v1574
        %v1576 = vsub.f32 1.0, %v1575
        %v1577 = vmul.f32 %v1574, %v1576
        %v1578 = vadd.f32 %v1574, %v1577
        %vm1579 = vweird.f32 %v1480
        %vm1580 = vweird.f32 %v1574
        %vm1581 = vmor %vm1579, %vm1580
        %v1582 = vsel %vm1581, %v1574, %v1578
        %v1583 = vand.u32 2147483647, %v1480
        %vm1584 = vcmp.eq.f32.partialorder %v1583, 8.507059e+37
        %v1585 = vand.u32 %v1480, 2147483648
        %v1586 = vor.u32 1.1754944e-38, %v1585
        %v1587 = vsel %vm1584, %v1586, %v1582
        %v1588 = vmul.f32 1.0, %v1587
        %v1589 = vrcp.pop %v1481
        %v1590 = vmul.f32 %v1481, %v1589
        %v1591 = vsub.f32 1.0, %v1590
        %v1592 = vmul.f32 %v1589, %v1591
        %v1593 = vadd.f32 %v1589, %v1592
        %vm1594 = vweird.f32 %v1481
        %vm1595 = vweird.f32 %v1589
        %vm1596 = vmor %vm1594, %vm1595
        %v1597 = vsel %vm1596, %v1589, %v1593
        %v1598 = vand.u32 2147483647, %v1481
        %vm1599 = vcmp.eq.f32.partialorder %v1598, 8.507059e+37
        %v1600 = vand.u32 %v1481, 2147483648
        %v1601 = vor.u32 1.1754944e-38, %v1600
        %v1602 = vsel %vm1599, %v1601, %v1597
        %v1603 = vmul.f32 1.0, %v1602
        %v1604 = vrcp.pop %v1482
        %v1605 = vmul.f32 %v1482, %v1604
        %v1606 = vsub.f32 1.0, %v1605
        %v1607 = vmul.f32 %v1604, %v1606
        %v1608 = vadd.f32 %v1604, %v1607
        %vm1609 = vweird.f32 %v1482
        %vm1610 = vweird.f32 %v1604
        %vm1611 = vmor %vm1609, %vm1610
        %v1612 = vsel %vm1611, %v1604, %v1608
        %v1613 = vand.u32 2147483647, %v1482
        %vm1614 = vcmp.eq.f32.partialorder %v1613, 8.507059e+37
        %v1615 = vand.u32 %v1482, 2147483648
        %v1616 = vor.u32 1.1754944e-38, %v1615
        %v1617 = vsel %vm1614, %v1616, %v1612
        %v1618 = vmul.f32 1.0, %v1617
        %v1619 = vrcp.pop %v1483
        %v1620 = vmul.f32 %v1483, %v1619
        %v1621 = vsub.f32 1.0, %v1620
        %v1622 = vmul.f32 %v1619, %v1621
        %v1623 = vadd.f32 %v1619, %v1622
        %vm1624 = vweird.f32 %v1483
        %vm1625 = vweird.f32 %v1619
        %vm1626 = vmor %vm1624, %vm1625
        %v1627 = vsel %vm1626, %v1619, %v1623
        %v1628 = vand.u32 2147483647, %v1483
        %vm1629 = vcmp.eq.f32.partialorder %v1628, 8.507059e+37
        %v1630 = vand.u32 %v1483, 2147483648
        %v1631 = vor.u32 1.1754944e-38, %v1630
        %v1632 = vsel %vm1629, %v1631, %v1627
        %v1633 = vmul.f32 1.0, %v1632
        %v1634 = vsub.f32 0.0, %v1405
        %v1635 = vsub.f32 0.0, %v1409
        %v1636 = vsub.f32 0.0, %v1413
        %v1637 = vsub.f32 0.0, %v1417
        %v1638 = vsub.f32 0.0, %v1421
        %v1639 = vsub.f32 0.0, %v1425
        %v1640 = vsub.f32 0.0, %v1429
        %v1641 = vsub.f32 0.0, %v1433
        %v1642 = vsub.f32 0.0, %v1437
        %v1643 = vsub.f32 0.0, %v1441
        %v1644 = vmul.f32 %v1634, 1.442695
        %v1645 = vpow.pop %v1644
        %v1646 = vmul.f32 %v1635, 1.442695
        %v1647 = vpow.pop %v1646
        %v1648 = vmul.f32 %v1636, 1.442695
        %v1649 = vpow.pop %v1648
        %v1650 = vmul.f32 %v1637, 1.442695
        %v1651 = vpow.pop %v1650
        %v1652 = vmul.f32 %v1638, 1.442695
        %v1653 = vpow.pop %v1652
        %v1654 = vmul.f32 %v1639, 1.442695
        %v1655 = vpow.pop %v1654
        %v1656 = vmul.f32 %v1640, 1.442695
        %v1657 = vpow.pop %v1656
        %v1658 = vmul.f32 %v1641, 1.442695
        %v1659 = vpow.pop %v1658
        %v1660 = vmul.f32 %v1642, 1.442695
        %v1661 = vpow.pop %v1660
        %v1662 = vmul.f32 %v1643, 1.442695
        %v1663 = vpow.pop %v1662
        %v1664 = vadd.f32 %v1645, 1.0
        %v1665 = vadd.f32 %v1647, 1.0
        %v1666 = vadd.f32 %v1649, 1.0
        %v1667 = vadd.f32 %v1651, 1.0
        %v1668 = vadd.f32 %v1653, 1.0
        %v1669 = vadd.f32 %v1655, 1.0
        %v1670 = vadd.f32 %v1657, 1.0
        %v1671 = vadd.f32 %v1659, 1.0
        %v1672 = vadd.f32 %v1661, 1.0
        %v1673 = vadd.f32 %v1663, 1.0
        %v1674 = vrcp.pop %v1664
        %v1675 = vmul.f32 %v1664, %v1674
        %v1676 = vsub.f32 1.0, %v1675
        %v1677 = vmul.f32 %v1674, %v1676
        %v1678 = vadd.f32 %v1674, %v1677
        %vm1679 = vweird.f32 %v1664
        %vm1680 = vweird.f32 %v1674
        %vm1681 = vmor %vm1679, %vm1680
        %v1682 = vsel %vm1681, %v1674, %v1678
        %v1683 = vand.u32 2147483647, %v1664
        %vm1684 = vcmp.eq.f32.partialorder %v1683, 8.507059e+37
        %v1685 = vand.u32 %v1664, 2147483648
        %v1686 = vor.u32 1.1754944e-38, %v1685
        %v1687 = vsel %vm1684, %v1686, %v1682
        %v1688 = vmul.f32 1.0, %v1687
        %v1689 = vrcp.pop %v1665
        %v1690 = vmul.f32 %v1665, %v1689
        %v1691 = vsub.f32 1.0, %v1690
        %v1692 = vmul.f32 %v1689, %v1691
        %v1693 = vadd.f32 %v1689, %v1692
        %vm1694 = vweird.f32 %v1665
        %vm1695 = vweird.f32 %v1689
        %vm1696 = vmor %vm1694, %vm1695
        %v1697 = vsel %vm1696, %v1689, %v1693
        %v1698 = vand.u32 2147483647, %v1665
        %vm1699 = vcmp.eq.f32.partialorder %v1698, 8.507059e+37
        %v1700 = vand.u32 %v1665, 2147483648
        %v1701 = vor.u32 1.1754944e-38, %v1700
        %v1702 = vsel %vm1699, %v1701, %v1697
        %v1703 = vmul.f32 1.0, %v1702
        %v1704 = vrcp.pop %v1666
        %v1705 = vmul.f32 %v1666, %v1704
        %v1706 = vsub.f32 1.0, %v1705
        %v1707 = vmul.f32 %v1704, %v1706
        %v1708 = vadd.f32 %v1704, %v1707
        %vm1709 = vweird.f32 %v1666
        %vm1710 = vweird.f32 %v1704
        %vm1711 = vmor %vm1709, %vm1710
        %v1712 = vsel %vm1711, %v1704, %v1708
        %v1713 = vand.u32 2147483647, %v1666
        %vm1714 = vcmp.eq.f32.partialorder %v1713, 8.507059e+37
        %v1715 = vand.u32 %v1666, 2147483648
        %v1716 = vor.u32 1.1754944e-38, %v1715
        %v1717 = vsel %vm1714, %v1716, %v1712
        %v1718 = vmul.f32 1.0, %v1717
        %v1719 = vrcp.pop %v1667
        %v1720 = vmul.f32 %v1667, %v1719
        %v1721 = vsub.f32 1.0, %v1720
        %v1722 = vmul.f32 %v1719, %v1721
        %v1723 = vadd.f32 %v1719, %v1722
        %vm1724 = vweird.f32 %v1667
        %vm1725 = vweird.f32 %v1719
        %vm1726 = vmor %vm1724, %vm1725
        %v1727 = vsel %vm1726, %v1719, %v1723
        %v1728 = vand.u32 2147483647, %v1667
        %vm1729 = vcmp.eq.f32.partialorder %v1728, 8.507059e+37
        %v1730 = vand.u32 %v1667, 2147483648
        %v1731 = vor.u32 1.1754944e-38, %v1730
        %v1732 = vsel %vm1729, %v1731, %v1727
        %v1733 = vmul.f32 1.0, %v1732
        %v1734 = vrcp.pop %v1668
        %v1735 = vmul.f32 %v1668, %v1734
        %v1736 = vsub.f32 1.0, %v1735
        %v1737 = vmul.f32 %v1734, %v1736
        %v1738 = vadd.f32 %v1734, %v1737
        %vm1739 = vweird.f32 %v1668
        %vm1740 = vweird.f32 %v1734
        %vm1741 = vmor %vm1739, %vm1740
        %v1742 = vsel %vm1741, %v1734, %v1738
        %v1743 = vand.u32 2147483647, %v1668
        %vm1744 = vcmp.eq.f32.partialorder %v1743, 8.507059e+37
        %v1745 = vand.u32 %v1668, 2147483648
        %v1746 = vor.u32 1.1754944e-38, %v1745
        %v1747 = vsel %vm1744, %v1746, %v1742
        %v1748 = vmul.f32 1.0, %v1747
        %v1749 = vrcp.pop %v1669
        %v1750 = vmul.f32 %v1669, %v1749
        %v1751 = vsub.f32 1.0, %v1750
        %v1752 = vmul.f32 %v1749, %v1751
        %v1753 = vadd.f32 %v1749, %v1752
        %vm1754 = vweird.f32 %v1669
        %vm1755 = vweird.f32 %v1749
        %vm1756 = vmor %vm1754, %vm1755
        %v1757 = vsel %vm1756, %v1749, %v1753
        %v1758 = vand.u32 2147483647, %v1669
        %vm1759 = vcmp.eq.f32.partialorder %v1758, 8.507059e+37
        %v1760 = vand.u32 %v1669, 2147483648
        %v1761 = vor.u32 1.1754944e-38, %v1760
        %v1762 = vsel %vm1759, %v1761, %v1757
        %v1763 = vmul.f32 1.0, %v1762
        %v1764 = vrcp.pop %v1670
        %v1765 = vmul.f32 %v1670, %v1764
        %v1766 = vsub.f32 1.0, %v1765
        %v1767 = vmul.f32 %v1764, %v1766
        %v1768 = vadd.f32 %v1764, %v1767
        %vm1769 = vweird.f32 %v1670
        %vm1770 = vweird.f32 %v1764
        %vm1771 = vmor %vm1769, %vm1770
        %v1772 = vsel %vm1771, %v1764, %v1768
        %v1773 = vand.u32 2147483647, %v1670
        %vm1774 = vcmp.eq.f32.partialorder %v1773, 8.507059e+37
        %v1775 = vand.u32 %v1670, 2147483648
        %v1776 = vor.u32 1.1754944e-38, %v1775
        %v1777 = vsel %vm1774, %v1776, %v1772
        %v1778 = vmul.f32 1.0, %v1777
        %v1779 = vrcp.pop %v1671
        %v1780 = vmul.f32 %v1671, %v1779
        %v1781 = vsub.f32 1.0, %v1780
        %v1782 = vmul.f32 %v1779, %v1781
        %v1783 = vadd.f32 %v1779, %v1782
        %vm1784 = vweird.f32 %v1671
        %vm1785 = vweird.f32 %v1779
        %vm1786 = vmor %vm1784, %vm1785
        %v1787 = vsel %vm1786, %v1779, %v1783
        %v1788 = vand.u32 2147483647, %v1671
        %vm1789 = vcmp.eq.f32.partialorder %v1788, 8.507059e+37
        %v1790 = vand.u32 %v1671, 2147483648
        %v1791 = vor.u32 1.1754944e-38, %v1790
        %v1792 = vsel %vm1789, %v1791, %v1787
        %v1793 = vmul.f32 1.0, %v1792
        %v1794 = vrcp.pop %v1672
        %v1795 = vmul.f32 %v1672, %v1794
        %v1796 = vsub.f32 1.0, %v1795
        %v1797 = vmul.f32 %v1794, %v1796
        %v1798 = vadd.f32 %v1794, %v1797
        %vm1799 = vweird.f32 %v1672
        %vm1800 = vweird.f32 %v1794
        %vm1801 = vmor %vm1799, %vm1800
        %v1802 = vsel %vm1801, %v1794, %v1798
        %v1803 = vand.u32 2147483647, %v1672
        %vm1804 = vcmp.eq.f32.partialorder %v1803, 8.507059e+37
        %v1805 = vand.u32 %v1672, 2147483648
        %v1806 = vor.u32 1.1754944e-38, %v1805
        %v1807 = vsel %vm1804, %v1806, %v1802
        %v1808 = vmul.f32 1.0, %v1807
        %v1809 = vrcp.pop %v1673
        %v1810 = vmul.f32 %v1673, %v1809
        %v1811 = vsub.f32 1.0, %v1810
        %v1812 = vmul.f32 %v1809, %v1811
        %v1813 = vadd.f32 %v1809, %v1812
        %vm1814 = vweird.f32 %v1673
        %vm1815 = vweird.f32 %v1809
        %vm1816 = vmor %vm1814, %vm1815
        %v1817 = vsel %vm1816, %v1809, %v1813
        %v1818 = vand.u32 2147483647, %v1673
        %vm1819 = vcmp.eq.f32.partialorder %v1818, 8.507059e+37
        %v1820 = vand.u32 %v1673, 2147483648
        %v1821 = vor.u32 1.1754944e-38, %v1820
        %v1822 = vsel %vm1819, %v1821, %v1817
        %v1823 = vmul.f32 1.0, %v1822
        %v1824 = vtanh.pop %v1406
        %v1825 = vtanh.pop %v1410
        %v1826 = vtanh.pop %v1414
        %v1827 = vtanh.pop %v1418
        %v1828 = vtanh.pop %v1422
        %v1829 = vtanh.pop %v1426
        %v1830 = vtanh.pop %v1430
        %v1831 = vtanh.pop %v1434
        %v1832 = vtanh.pop %v1438
        %v1833 = vtanh.pop %v1442
        %v1834 = vsub.f32 0.0, %v1407
        %v1835 = vsub.f32 0.0, %v1411
        %v1836 = vsub.f32 0.0, %v1415
        %v1837 = vsub.f32 0.0, %v1419
        %v1838 = vsub.f32 0.0, %v1423
        %v1839 = vsub.f32 0.0, %v1427
        %v1840 = vsub.f32 0.0, %v1431
        %v1841 = vsub.f32 0.0, %v1435
        %v1842 = vsub.f32 0.0, %v1439
        %v1843 = vsub.f32 0.0, %v1443
        %v1844 = vmul.f32 %v1834, 1.442695
        %v1845 = vpow.pop %v1844
        %v1846 = vmul.f32 %v1835, 1.442695
        %v1847 = vpow.pop %v1846
        %v1848 = vmul.f32 %v1836, 1.442695
        %v1849 = vpow.pop %v1848
        %v1850 = vmul.f32 %v1837, 1.442695
        %v1851 = vpow.pop %v1850
        %v1852 = vmul.f32 %v1838, 1.442695
        %v1853 = vpow.pop %v1852
        %v1854 = vmul.f32 %v1839, 1.442695
        %v1855 = vpow.pop %v1854
        %v1856 = vmul.f32 %v1840, 1.442695
        %v1857 = vpow.pop %v1856
        %v1858 = vmul.f32 %v1841, 1.442695
        %v1859 = vpow.pop %v1858
        %v1860 = vmul.f32 %v1842, 1.442695
        %v1861 = vpow.pop %v1860
        %v1862 = vmul.f32 %v1843, 1.442695
        %v1863 = vpow.pop %v1862
        %v1864 = vadd.f32 %v1845, 1.0
        %v1865 = vadd.f32 %v1847, 1.0
        %v1866 = vadd.f32 %v1849, 1.0
        %v1867 = vadd.f32 %v1851, 1.0
        %v1868 = vadd.f32 %v1853, 1.0
        %v1869 = vadd.f32 %v1855, 1.0
        %v1870 = vadd.f32 %v1857, 1.0
        %v1871 = vadd.f32 %v1859, 1.0
        %v1872 = vadd.f32 %v1861, 1.0
        %v1873 = vadd.f32 %v1863, 1.0
        %v1874 = vrcp.pop %v1864
        %v1875 = vmul.f32 %v1864, %v1874
        %v1876 = vsub.f32 1.0, %v1875
        %v1877 = vmul.f32 %v1874, %v1876
        %v1878 = vadd.f32 %v1874, %v1877
        %vm1879 = vweird.f32 %v1864
        %vm1880 = vweird.f32 %v1874
        %vm1881 = vmor %vm1879, %vm1880
        %v1882 = vsel %vm1881, %v1874, %v1878
        %v1883 = vand.u32 2147483647, %v1864
        %vm1884 = vcmp.eq.f32.partialorder %v1883, 8.507059e+37
        %v1885 = vand.u32 %v1864, 2147483648
        %v1886 = vor.u32 1.1754944e-38, %v1885
        %v1887 = vsel %vm1884, %v1886, %v1882
        %v1888 = vmul.f32 1.0, %v1887
        %v1889 = vrcp.pop %v1865
        %v1890 = vmul.f32 %v1865, %v1889
        %v1891 = vsub.f32 1.0, %v1890
        %v1892 = vmul.f32 %v1889, %v1891
        %v1893 = vadd.f32 %v1889, %v1892
        %vm1894 = vweird.f32 %v1865
        %vm1895 = vweird.f32 %v1889
        %vm1896 = vmor %vm1894, %vm1895
        %v1897 = vsel %vm1896, %v1889, %v1893
        %v1898 = vand.u32 2147483647, %v1865
        %vm1899 = vcmp.eq.f32.partialorder %v1898, 8.507059e+37
        %v1900 = vand.u32 %v1865, 2147483648
        %v1901 = vor.u32 1.1754944e-38, %v1900
        %v1902 = vsel %vm1899, %v1901, %v1897
        %v1903 = vmul.f32 1.0, %v1902
        %v1904 = vrcp.pop %v1866
        %v1905 = vmul.f32 %v1866, %v1904
        %v1906 = vsub.f32 1.0, %v1905
        %v1907 = vmul.f32 %v1904, %v1906
        %v1908 = vadd.f32 %v1904, %v1907
        %vm1909 = vweird.f32 %v1866
        %vm1910 = vweird.f32 %v1904
        %vm1911 = vmor %vm1909, %vm1910
        %v1912 = vsel %vm1911, %v1904, %v1908
        %v1913 = vand.u32 2147483647, %v1866
        %vm1914 = vcmp.eq.f32.partialorder %v1913, 8.507059e+37
        %v1915 = vand.u32 %v1866, 2147483648
        %v1916 = vor.u32 1.1754944e-38, %v1915
        %v1917 = vsel %vm1914, %v1916, %v1912
        %v1918 = vmul.f32 1.0, %v1917
        %v1919 = vrcp.pop %v1867
        %v1920 = vmul.f32 %v1867, %v1919
        %v1921 = vsub.f32 1.0, %v1920
        %v1922 = vmul.f32 %v1919, %v1921
        %v1923 = vadd.f32 %v1919, %v1922
        %vm1924 = vweird.f32 %v1867
        %vm1925 = vweird.f32 %v1919
        %vm1926 = vmor %vm1924, %vm1925
        %v1927 = vsel %vm1926, %v1919, %v1923
        %v1928 = vand.u32 2147483647, %v1867
        %vm1929 = vcmp.eq.f32.partialorder %v1928, 8.507059e+37
        %v1930 = vand.u32 %v1867, 2147483648
        %v1931 = vor.u32 1.1754944e-38, %v1930
        %v1932 = vsel %vm1929, %v1931, %v1927
        %v1933 = vmul.f32 1.0, %v1932
        %v1934 = vrcp.pop %v1868
        %v1935 = vmul.f32 %v1868, %v1934
        %v1936 = vsub.f32 1.0, %v1935
        %v1937 = vmul.f32 %v1934, %v1936
        %v1938 = vadd.f32 %v1934, %v1937
        %vm1939 = vweird.f32 %v1868
        %vm1940 = vweird.f32 %v1934
        %vm1941 = vmor %vm1939, %vm1940
        %v1942 = vsel %vm1941, %v1934, %v1938
        %v1943 = vand.u32 2147483647, %v1868
        %vm1944 = vcmp.eq.f32.partialorder %v1943, 8.507059e+37
        %v1945 = vand.u32 %v1868, 2147483648
        %v1946 = vor.u32 1.1754944e-38, %v1945
        %v1947 = vsel %vm1944, %v1946, %v1942
        %v1948 = vmul.f32 1.0, %v1947
        %v1949 = vrcp.pop %v1869
        %v1950 = vmul.f32 %v1869, %v1949
        %v1951 = vsub.f32 1.0, %v1950
        %v1952 = vmul.f32 %v1949, %v1951
        %v1953 = vadd.f32 %v1949, %v1952
        %vm1954 = vweird.f32 %v1869
        %vm1955 = vweird.f32 %v1949
        %vm1956 = vmor %vm1954, %vm1955
        %v1957 = vsel %vm1956, %v1949, %v1953
        %v1958 = vand.u32 2147483647, %v1869
        %vm1959 = vcmp.eq.f32.partialorder %v1958, 8.507059e+37
        %v1960 = vand.u32 %v1869, 2147483648
        %v1961 = vor.u32 1.1754944e-38, %v1960
        %v1962 = vsel %vm1959, %v1961, %v1957
        %v1963 = vmul.f32 1.0, %v1962
        %v1964 = vrcp.pop %v1870
        %v1965 = vmul.f32 %v1870, %v1964
        %v1966 = vsub.f32 1.0, %v1965
        %v1967 = vmul.f32 %v1964, %v1966
        %v1968 = vadd.f32 %v1964, %v1967
        %vm1969 = vweird.f32 %v1870
        %vm1970 = vweird.f32 %v1964
        %vm1971 = vmor %vm1969, %vm1970
        %v1972 = vsel %vm1971, %v1964, %v1968
        %v1973 = vand.u32 2147483647, %v1870
        %vm1974 = vcmp.eq.f32.partialorder %v1973, 8.507059e+37
        %v1975 = vand.u32 %v1870, 2147483648
        %v1976 = vor.u32 1.1754944e-38, %v1975
        %v1977 = vsel %vm1974, %v1976, %v1972
        %v1978 = vmul.f32 1.0, %v1977
        %v1979 = vrcp.pop %v1871
        %v1980 = vmul.f32 %v1871, %v1979
        %v1981 = vsub.f32 1.0, %v1980
        %v1982 = vmul.f32 %v1979, %v1981
        %v1983 = vadd.f32 %v1979, %v1982
        %vm1984 = vweird.f32 %v1871
        %vm1985 = vweird.f32 %v1979
        %vm1986 = vmor %vm1984, %vm1985
        %v1987 = vsel %vm1986, %v1979, %v1983
        %v1988 = vand.u32 2147483647, %v1871
        %vm1989 = vcmp.eq.f32.partialorder %v1988, 8.507059e+37
        %v1990 = vand.u32 %v1871, 2147483648
        %v1991 = vor.u32 1.1754944e-38, %v1990
        %v1992 = vsel %vm1989, %v1991, %v1987
        %v1993 = vmul.f32 1.0, %v1992
        %v1994 = vrcp.pop %v1872
        %v1995 = vmul.f32 %v1872, %v1994
        %v1996 = vsub.f32 1.0, %v1995
        %v1997 = vmul.f32 %v1994, %v1996
        %v1998 = vadd.f32 %v1994, %v1997
        %vm1999 = vweird.f32 %v1872
        %vm2000 = vweird.f32 %v1994
        %vm2001 = vmor %vm1999, %vm2000
        %v2002 = vsel %vm2001, %v1994, %v1998
        %v2003 = vand.u32 2147483647, %v1872
        %vm2004 = vcmp.eq.f32.partialorder %v2003, 8.507059e+37
        %v2005 = vand.u32 %v1872, 2147483648
        %v2006 = vor.u32 1.1754944e-38, %v2005
        %v2007 = vsel %vm2004, %v2006, %v2002
        %v2008 = vmul.f32 1.0, %v2007
        %v2009 = vrcp.pop %v1873
        %v2010 = vmul.f32 %v1873, %v2009
        %v2011 = vsub.f32 1.0, %v2010
        %v2012 = vmul.f32 %v2009, %v2011
        %v2013 = vadd.f32 %v2009, %v2012
        %vm2014 = vweird.f32 %v1873
        %vm2015 = vweird.f32 %v2009
        %vm2016 = vmor %vm2014, %vm2015
        %v2017 = vsel %vm2016, %v2009, %v2013
        %v2018 = vand.u32 2147483647, %v1873
        %vm2019 = vcmp.eq.f32.partialorder %v2018, 8.507059e+37
        %v2020 = vand.u32 %v1873, 2147483648
        %v2021 = vor.u32 1.1754944e-38, %v2020
        %v2022 = vsel %vm2019, %v2021, %v2017
        %v2023 = vmul.f32 1.0, %v2022
        %v2024 = vld [vmem:[%s666] sm:$0xff]
        %v2025 = vld [vmem:[%s666 + $0x8] sm:$0xff]
        %v2026 = vld [vmem:[%s666 + $0x10] sm:$0xff]
        %v2027 = vld [vmem:[%s666 + $0x18] sm:$0xff]
        %v2028 = vld [vmem:[%s666 + $0x20] sm:$0xff]
        %v2029 = vld [vmem:[%s666 + $0x28] sm:$0xff]
        %v2030 = vld [vmem:[%s666 + $0x30] sm:$0xff]
        %v2031 = vld [vmem:[%s666 + $0x38] sm:$0xff]
        %v2032 = vld [vmem:[%s666 + $0x40] sm:$0xff]
        %v2033 = vld [vmem:[%s666 + $0x48] sm:$0xff]
        %v2034 = vmul.f32 %v1688, %v2024
        %v2035 = vmul.f32 %v1703, %v2025
        %v2036 = vmul.f32 %v1718, %v2026
        %v2037 = vmul.f32 %v1733, %v2027
        %v2038 = vmul.f32 %v1748, %v2028
        %v2039 = vmul.f32 %v1763, %v2029
        %v2040 = vmul.f32 %v1778, %v2030
        %v2041 = vmul.f32 %v1793, %v2031
        %v2042 = vmul.f32 %v1808, %v2032
        %v2043 = vmul.f32 %v1823, %v2033
        %v2044 = vmul.f32 %v1498, %v1824
        %v2045 = vmul.f32 %v1513, %v1825
        %v2046 = vmul.f32 %v1528, %v1826
        %v2047 = vmul.f32 %v1543, %v1827
        %v2048 = vmul.f32 %v1558, %v1828
        %v2049 = vmul.f32 %v1573, %v1829
        %v2050 = vmul.f32 %v1588, %v1830
        %v2051 = vmul.f32 %v1603, %v1831
        %v2052 = vmul.f32 %v1618, %v1832
        %v2053 = vmul.f32 %v1633, %v1833
        %v2054 = vadd.f32 %v2034, %v2044
        %v2055 = vadd.f32 %v2035, %v2045
        %v2056 = vadd.f32 %v2036, %v2046
        %v2057 = vadd.f32 %v2037, %v2047
        %v2058 = vadd.f32 %v2038, %v2048
        %v2059 = vadd.f32 %v2039, %v2049
        %v2060 = vadd.f32 %v2040, %v2050
        %v2061 = vadd.f32 %v2041, %v2051
        %v2062 = vadd.f32 %v2042, %v2052
        %v2063 = vadd.f32 %v2043, %v2053
        %v2064 = vtanh.pop %v2054
        %v2065 = vtanh.pop %v2055
        %v2066 = vtanh.pop %v2056
        %v2067 = vtanh.pop %v2057
        %v2068 = vtanh.pop %v2058
        %v2069 = vtanh.pop %v2059
        %v2070 = vtanh.pop %v2060
        %v2071 = vtanh.pop %v2061
        %v2072 = vtanh.pop %v2062
        %v2073 = vtanh.pop %v2063
        %v2074 = vmul.f32 %v1888, %v2064
        %v2075 = vmul.f32 %v1903, %v2065
        %v2076 = vmul.f32 %v1918, %v2066
        %v2077 = vmul.f32 %v1933, %v2067
        %v2078 = vmul.f32 %v1948, %v2068
        %v2079 = vmul.f32 %v1963, %v2069
        %v2080 = vmul.f32 %v1978, %v2070
        %v2081 = vmul.f32 %v1993, %v2071
        %v2082 = vmul.f32 %v2008, %v2072
        %v2083 = vmul.f32 %v2023, %v2073
        %v2084 = vld [vmem:[#allocation11] sm:$0xff]
        %v2085 = vld [vmem:[#allocation11 + $0x8] sm:$0xff]
        %v2086 = vld [vmem:[#allocation11 + $0x10] sm:$0xff]
        %v2087 = vld [vmem:[#allocation11 + $0x18] sm:$0xff]
        %v2088 = vld [vmem:[#allocation11 + $0x20] sm:$0xff]
        %v2089 = vld [vmem:[#allocation11 + $0x28] sm:$0xff]
        %v2090 = vld [vmem:[#allocation11 + $0x30] sm:$0xff]
        %v2091 = vld [vmem:[#allocation11 + $0x38] sm:$0xff]
        %v2092 = vld [vmem:[#allocation11 + $0x40] sm:$0xff]
        %v2093 = vld [vmem:[#allocation11 + $0x48] sm:$0xff]
        %v2094 = vld [vmem:[#allocation11 + $0x50] sm:$0xff]
        %v2095 = vld [vmem:[#allocation11 + $0x58] sm:$0xff]
        %v2096 = vld [vmem:[#allocation11 + $0x60] sm:$0xff]
        %v2097 = vld [vmem:[#allocation11 + $0x68] sm:$0xff]
        %v2098 = vld [vmem:[#allocation11 + $0x70] sm:$0xff]
        %v2099 = vld [vmem:[#allocation11 + $0x78] sm:$0xff]
        %v2100 = vld [vmem:[#allocation11 + $0x80] sm:$0xff]
        %v2101 = vld [vmem:[#allocation11 + $0x88] sm:$0xff]
        %v2102 = vld [vmem:[#allocation11 + $0x90] sm:$0xff]
        %v2103 = vld [vmem:[#allocation11 + $0x98] sm:$0xff]
        %v2104 = vld [vmem:[#allocation11 + $0xa0] sm:$0xff]
        %v2105 = vld [vmem:[#allocation11 + $0xa8] sm:$0xff]
        %v2106 = vld [vmem:[#allocation11 + $0xb0] sm:$0xff]
        %v2107 = vld [vmem:[#allocation11 + $0xb8] sm:$0xff]
        %v2108 = vld [vmem:[#allocation11 + $0xc0] sm:$0xff]
        %v2109 = vld [vmem:[#allocation11 + $0xc8] sm:$0xff]
        %v2110 = vld [vmem:[#allocation11 + $0xd0] sm:$0xff]
        %v2111 = vld [vmem:[#allocation11 + $0xd8] sm:$0xff]
        %v2112 = vld [vmem:[#allocation11 + $0xe0] sm:$0xff]
        %v2113 = vld [vmem:[#allocation11 + $0xe8] sm:$0xff]
        %v2114 = vld [vmem:[#allocation11 + $0xf0] sm:$0xff]
        %v2115 = vld [vmem:[#allocation11 + $0xf8] sm:$0xff]
        %v2116 = vld [vmem:[%s9] sm:$0x3]
        %v2118 = vperm.slane %v2116, 0
        %v2119 = vperm.slane %v2116, 1
        %2122 = vmatpush.msra.mxu0 %v2114
        %2123 = vmatpush.msra.mxu0 %v2112
        %2124 = vmatpush.msra.mxu0 %v2110
        %2125 = vmatpush.msra.mxu0 %v2108
        %2126 = vmatpush.msra.mxu0 %v2106
        %2127 = vmatpush.msra.mxu0 %v2104
        %2128 = vmatpush.msra.mxu0 %v2102
        %2129 = vmatpush.msra.mxu0 %v2100
        %2130 = vmatpush.msra.mxu0 %v2098
        %2131 = vmatpush.msra.mxu0 %v2096
        %2132 = vmatpush.msra.mxu0 %v2094
        %2133 = vmatpush.msra.mxu0 %v2092
        %2134 = vmatpush.msra.mxu0 %v2090
        %2135 = vmatpush.msra.mxu0 %v2088
        %2136 = vmatpush.msra.mxu0 %v2086
        %2137 = vmatpush.msra.mxu0 %v2084
        %2138 = vmatmul.f32.gmra.mxu0 %v2074
        %v2139 = vpop.f32.mrf.mxu0
        %v2140 = vadd.f32 %v2118, %v2139
        %2141 = vmatmul.f32.gmra.mxu0 %v2075
        %v2142 = vpop.f32.mrf.mxu0
        %v2143 = vadd.f32 %v2118, %v2142
        %2144 = vmatmul.f32.gmra.mxu0 %v2076
        %v2145 = vpop.f32.mrf.mxu0
        %v2146 = vadd.f32 %v2118, %v2145
        %2147 = vmatmul.f32.gmra.mxu0 %v2077
        %v2148 = vpop.f32.mrf.mxu0
        %v2149 = vadd.f32 %v2118, %v2148
        %2150 = vmatmul.f32.gmra.mxu0 %v2078
        %v2151 = vpop.f32.mrf.mxu0
        %v2152 = vadd.f32 %v2118, %v2151
        %2153 = vmatmul.f32.gmra.mxu0 %v2079
        %v2154 = vpop.f32.mrf.mxu0
        %v2155 = vadd.f32 %v2118, %v2154
        %2156 = vmatmul.f32.gmra.mxu0 %v2080
        %v2157 = vpop.f32.mrf.mxu0
        %v2158 = vadd.f32 %v2118, %v2157
        %2159 = vmatmul.f32.gmra.mxu0 %v2081
        %v2160 = vpop.f32.mrf.mxu0
        %v2161 = vadd.f32 %v2118, %v2160
        %2162 = vmatmul.f32.gmra.mxu0 %v2082
        %v2163 = vpop.f32.mrf.mxu0
        %v2164 = vadd.f32 %v2118, %v2163
        %2165 = vmatmul.f32.gmra.mxu0 %v2083
        %v2166 = vpop.f32.mrf.mxu0
        %v2167 = vadd.f32 %v2118, %v2166
        %2168 = vdwg.mxu0
        %2169 = vmatpush.msra.mxu0 %v2115
        %2170 = vmatpush.msra.mxu0 %v2113
        %2171 = vmatpush.msra.mxu0 %v2111
        %2172 = vmatpush.msra.mxu0 %v2109
        %2173 = vmatpush.msra.mxu0 %v2107
        %2174 = vmatpush.msra.mxu0 %v2105
        %2175 = vmatpush.msra.mxu0 %v2103
        %2176 = vmatpush.msra.mxu0 %v2101
        %2177 = vmatpush.msra.mxu0 %v2099
        %2178 = vmatpush.msra.mxu0 %v2097
        %2179 = vmatpush.msra.mxu0 %v2095
        %2180 = vmatpush.msra.mxu0 %v2093
        %2181 = vmatpush.msra.mxu0 %v2091
        %2182 = vmatpush.msra.mxu0 %v2089
        %2183 = vmatpush.msra.mxu0 %v2087
        %2184 = vmatpush.msra.mxu0 %v2085
        %2185 = vmatmul.f32.gmra.mxu0 %v2074
        %v2186 = vpop.f32.mrf.mxu0
        %v2187 = vadd.f32 %v2119, %v2186
        %2188 = vmatmul.f32.gmra.mxu0 %v2075
        %v2189 = vpop.f32.mrf.mxu0
        %v2190 = vadd.f32 %v2119, %v2189
        %2191 = vmatmul.f32.gmra.mxu0 %v2076
        %v2192 = vpop.f32.mrf.mxu0
        %v2193 = vadd.f32 %v2119, %v2192
        %2194 = vmatmul.f32.gmra.mxu0 %v2077
        %v2195 = vpop.f32.mrf.mxu0
        %v2196 = vadd.f32 %v2119, %v2195
        %2197 = vmatmul.f32.gmra.mxu0 %v2078
        %v2198 = vpop.f32.mrf.mxu0
        %v2199 = vadd.f32 %v2119, %v2198
        %2200 = vmatmul.f32.gmra.mxu0 %v2079
        %v2201 = vpop.f32.mrf.mxu0
        %v2202 = vadd.f32 %v2119, %v2201
        %2203 = vmatmul.f32.gmra.mxu0 %v2080
        %v2204 = vpop.f32.mrf.mxu0
        %v2205 = vadd.f32 %v2119, %v2204
        %2206 = vmatmul.f32.gmra.mxu0 %v2081
        %v2207 = vpop.f32.mrf.mxu0
        %v2208 = vadd.f32 %v2119, %v2207
        %2209 = vmatmul.f32.gmra.mxu0 %v2082
        %v2210 = vpop.f32.mrf.mxu0
        %v2211 = vadd.f32 %v2119, %v2210
        %2212 = vmatmul.f32.gmra.mxu0 %v2083
        %v2213 = vpop.f32.mrf.mxu0
        %v2214 = vadd.f32 %v2119, %v2213
        %2215 = vdwg.mxu0
        %v2216 = vtanh.pop %v2140
        %v2217 = vtanh.pop %v2143
        %v2218 = vtanh.pop %v2146
        %v2219 = vtanh.pop %v2149
        %v2220 = vtanh.pop %v2152
        %v2221 = vtanh.pop %v2155
        %v2222 = vtanh.pop %v2158
        %v2223 = vtanh.pop %v2161
        %v2224 = vtanh.pop %v2164
        %v2225 = vtanh.pop %v2167
        %v2226 = vmax.f32 %v2140, 0.0
        %v2227 = vmax.f32 %v2143, 0.0
        %v2228 = vmax.f32 %v2146, 0.0
        %v2229 = vmax.f32 %v2149, 0.0
        %v2230 = vmax.f32 %v2152, 0.0
        %v2231 = vmax.f32 %v2155, 0.0
        %v2232 = vmax.f32 %v2158, 0.0
        %v2233 = vmax.f32 %v2161, 0.0
        %v2234 = vmax.f32 %v2164, 0.0
        %v2235 = vmax.f32 %v2167, 0.0
        %vm2236 = vcmp.ne.f32.partialorder %v2140, %v2140
        %vm2237 = vcmp.ne.f32.partialorder %v2143, %v2143
        %vm2238 = vcmp.ne.f32.partialorder %v2146, %v2146
        %vm2239 = vcmp.ne.f32.partialorder %v2149, %v2149
        %vm2240 = vcmp.ne.f32.partialorder %v2152, %v2152
        %vm2241 = vcmp.ne.f32.partialorder %v2155, %v2155
        %vm2242 = vcmp.ne.f32.partialorder %v2158, %v2158
        %vm2243 = vcmp.ne.f32.partialorder %v2161, %v2161
        %vm2244 = vcmp.ne.f32.partialorder %v2164, %v2164
        %vm2245 = vcmp.ne.f32.partialorder %v2167, %v2167
        %v2246 = vadd.f32 %v2140, 0.0
        %v2247 = vadd.f32 %v2143, 0.0
        %v2248 = vadd.f32 %v2146, 0.0
        %v2249 = vadd.f32 %v2149, 0.0
        %v2250 = vadd.f32 %v2152, 0.0
        %v2251 = vadd.f32 %v2155, 0.0
        %v2252 = vadd.f32 %v2158, 0.0
        %v2253 = vadd.f32 %v2161, 0.0
        %v2254 = vadd.f32 %v2164, 0.0
        %v2255 = vadd.f32 %v2167, 0.0
        %v2256 = vand.u32 2147483647, %v2140
        %v2257 = vand.u32 2147483647, %v2143
        %v2258 = vand.u32 2147483647, %v2146
        %v2259 = vand.u32 2147483647, %v2149
        %v2260 = vand.u32 2147483647, %v2152
        %v2261 = vand.u32 2147483647, %v2155
        %v2262 = vand.u32 2147483647, %v2158
        %v2263 = vand.u32 2147483647, %v2161
        %v2264 = vand.u32 2147483647, %v2164
        %v2265 = vand.u32 2147483647, %v2167
        %v2266 = vsub.f32 0.0, %v2256
        %v2267 = vsub.f32 0.0, %v2257
        %v2268 = vsub.f32 0.0, %v2258
        %v2269 = vsub.f32 0.0, %v2259
        %v2270 = vsub.f32 0.0, %v2260
        %v2271 = vsub.f32 0.0, %v2261
        %v2272 = vsub.f32 0.0, %v2262
        %v2273 = vsub.f32 0.0, %v2263
        %v2274 = vsub.f32 0.0, %v2264
        %v2275 = vsub.f32 0.0, %v2265
        %v2276 = vmul.f32 %v2266, 1.442695
        %v2277 = vpow.pop %v2276
        %v2278 = vmul.f32 %v2267, 1.442695
        %v2279 = vpow.pop %v2278
        %v2280 = vmul.f32 %v2268, 1.442695
        %v2281 = vpow.pop %v2280
        %v2282 = vmul.f32 %v2269, 1.442695
        %v2283 = vpow.pop %v2282
        %v2284 = vmul.f32 %v2270, 1.442695
        %v2285 = vpow.pop %v2284
        %v2286 = vmul.f32 %v2271, 1.442695
        %v2287 = vpow.pop %v2286
        %v2288 = vmul.f32 %v2272, 1.442695
        %v2289 = vpow.pop %v2288
        %v2290 = vmul.f32 %v2273, 1.442695
        %v2291 = vpow.pop %v2290
        %v2292 = vmul.f32 %v2274, 1.442695
        %v2293 = vpow.pop %v2292
        %v2294 = vmul.f32 %v2275, 1.442695
        %v2295 = vpow.pop %v2294
        %v2296 = vadd.f32 %v2277, 1.0
        %v2297 = vlog2.pop %v2296
        %v2298 = vmul.f32 %v2297, 0.6931472
        %v2299 = vmul.f32 -0.5, %v2277
        %v2300 = vadd.f32 %v2299, 1.0
        %v2301 = vmul.f32 %v2300, %v2277
        %v2302 = vand.u32 2147483647, %v2277
        %vm2303 = vcmp.lt.f32.partialorder %v2302, 0.0004427343
        %v2304 = vsel %vm2303, %v2301, %v2298
        %v2305 = vadd.f32 %v2279, 1.0
        %v2306 = vlog2.pop %v2305
        %v2307 = vmul.f32 %v2306, 0.6931472
        %v2308 = vmul.f32 -0.5, %v2279
        %v2309 = vadd.f32 %v2308, 1.0
        %v2310 = vmul.f32 %v2309, %v2279
        %v2311 = vand.u32 2147483647, %v2279
        %vm2312 = vcmp.lt.f32.partialorder %v2311, 0.0004427343
        %v2313 = vsel %vm2312, %v2310, %v2307
        %v2314 = vadd.f32 %v2281, 1.0
        %v2315 = vlog2.pop %v2314
        %v2316 = vmul.f32 %v2315, 0.6931472
        %v2317 = vmul.f32 -0.5, %v2281
        %v2318 = vadd.f32 %v2317, 1.0
        %v2319 = vmul.f32 %v2318, %v2281
        %v2320 = vand.u32 2147483647, %v2281
        %vm2321 = vcmp.lt.f32.partialorder %v2320, 0.0004427343
        %v2322 = vsel %vm2321, %v2319, %v2316
        %v2323 = vadd.f32 %v2283, 1.0
        %v2324 = vlog2.pop %v2323
        %v2325 = vmul.f32 %v2324, 0.6931472
        %v2326 = vmul.f32 -0.5, %v2283
        %v2327 = vadd.f32 %v2326, 1.0
        %v2328 = vmul.f32 %v2327, %v2283
        %v2329 = vand.u32 2147483647, %v2283
        %vm2330 = vcmp.lt.f32.partialorder %v2329, 0.0004427343
        %v2331 = vsel %vm2330, %v2328, %v2325
        %v2332 = vadd.f32 %v2285, 1.0
        %v2333 = vlog2.pop %v2332
        %v2334 = vmul.f32 %v2333, 0.6931472
        %v2335 = vmul.f32 -0.5, %v2285
        %v2336 = vadd.f32 %v2335, 1.0
        %v2337 = vmul.f32 %v2336, %v2285
        %v2338 = vand.u32 2147483647, %v2285
        %vm2339 = vcmp.lt.f32.partialorder %v2338, 0.0004427343
        %v2340 = vsel %vm2339, %v2337, %v2334
        %v2341 = vadd.f32 %v2287, 1.0
        %v2342 = vlog2.pop %v2341
        %v2343 = vmul.f32 %v2342, 0.6931472
        %v2344 = vmul.f32 -0.5, %v2287
        %v2345 = vadd.f32 %v2344, 1.0
        %v2346 = vmul.f32 %v2345, %v2287
        %v2347 = vand.u32 2147483647, %v2287
        %vm2348 = vcmp.lt.f32.partialorder %v2347, 0.0004427343
        %v2349 = vsel %vm2348, %v2346, %v2343
        %v2350 = vadd.f32 %v2289, 1.0
        %v2351 = vlog2.pop %v2350
        %v2352 = vmul.f32 %v2351, 0.6931472
        %v2353 = vmul.f32 -0.5, %v2289
        %v2354 = vadd.f32 %v2353, 1.0
        %v2355 = vmul.f32 %v2354, %v2289
        %v2356 = vand.u32 2147483647, %v2289
        %vm2357 = vcmp.lt.f32.partialorder %v2356, 0.0004427343
        %v2358 = vsel %vm2357, %v2355, %v2352
        %v2359 = vadd.f32 %v2291, 1.0
        %v2360 = vlog2.pop %v2359
        %v2361 = vmul.f32 %v2360, 0.6931472
        %v2362 = vmul.f32 -0.5, %v2291
        %v2363 = vadd.f32 %v2362, 1.0
        %v2364 = vmul.f32 %v2363, %v2291
        %v2365 = vand.u32 2147483647, %v2291
        %vm2366 = vcmp.lt.f32.partialorder %v2365, 0.0004427343
        %v2367 = vsel %vm2366, %v2364, %v2361
        %v2368 = vadd.f32 %v2293, 1.0
        %v2369 = vlog2.pop %v2368
        %v2370 = vmul.f32 %v2369, 0.6931472
        %v2371 = vmul.f32 -0.5, %v2293
        %v2372 = vadd.f32 %v2371, 1.0
        %v2373 = vmul.f32 %v2372, %v2293
        %v2374 = vand.u32 2147483647, %v2293
        %vm2375 = vcmp.lt.f32.partialorder %v2374, 0.0004427343
        %v2376 = vsel %vm2375, %v2373, %v2370
        %v2377 = vadd.f32 %v2295, 1.0
        %v2378 = vlog2.pop %v2377
        %v2379 = vmul.f32 %v2378, 0.6931472
        %v2380 = vmul.f32 -0.5, %v2295
        %v2381 = vadd.f32 %v2380, 1.0
        %v2382 = vmul.f32 %v2381, %v2295
        %v2383 = vand.u32 2147483647, %v2295
        %vm2384 = vcmp.lt.f32.partialorder %v2383, 0.0004427343
        %v2385 = vsel %vm2384, %v2382, %v2379
        %v2386 = vadd.f32 %v2226, %v2304
        %v2387 = vadd.f32 %v2227, %v2313
        %v2388 = vadd.f32 %v2228, %v2322
        %v2389 = vadd.f32 %v2229, %v2331
        %v2390 = vadd.f32 %v2230, %v2340
        %v2391 = vadd.f32 %v2231, %v2349
        %v2392 = vadd.f32 %v2232, %v2358
        %v2393 = vadd.f32 %v2233, %v2367
        %v2394 = vadd.f32 %v2234, %v2376
        %v2395 = vadd.f32 %v2235, %v2385
        %v2396 = vsel %vm2236, %v2246, %v2386
        %v2397 = vsel %vm2237, %v2247, %v2387
        %v2398 = vsel %vm2238, %v2248, %v2388
        %v2399 = vsel %vm2239, %v2249, %v2389
        %v2400 = vsel %vm2240, %v2250, %v2390
        %v2401 = vsel %vm2241, %v2251, %v2391
        %v2402 = vsel %vm2242, %v2252, %v2392
        %v2403 = vsel %vm2243, %v2253, %v2393
        %v2404 = vsel %vm2244, %v2254, %v2394
        %v2405 = vsel %vm2245, %v2255, %v2395
        %v2406 = vsub.f32 0.0, %v2140
        %v2407 = vsub.f32 0.0, %v2143
        %v2408 = vsub.f32 0.0, %v2146
        %v2409 = vsub.f32 0.0, %v2149
        %v2410 = vsub.f32 0.0, %v2152
        %v2411 = vsub.f32 0.0, %v2155
        %v2412 = vsub.f32 0.0, %v2158
        %v2413 = vsub.f32 0.0, %v2161
        %v2414 = vsub.f32 0.0, %v2164
        %v2415 = vsub.f32 0.0, %v2167
        %v2416 = vmul.f32 %v2406, 1.442695
        %v2417 = vpow.pop %v2416
        %v2418 = vmul.f32 %v2407, 1.442695
        %v2419 = vpow.pop %v2418
        %v2420 = vmul.f32 %v2408, 1.442695
        %v2421 = vpow.pop %v2420
        %v2422 = vmul.f32 %v2409, 1.442695
        %v2423 = vpow.pop %v2422
        %v2424 = vmul.f32 %v2410, 1.442695
        %v2425 = vpow.pop %v2424
        %v2426 = vmul.f32 %v2411, 1.442695
        %v2427 = vpow.pop %v2426
        %v2428 = vmul.f32 %v2412, 1.442695
        %v2429 = vpow.pop %v2428
        %v2430 = vmul.f32 %v2413, 1.442695
        %v2431 = vpow.pop %v2430
        %v2432 = vmul.f32 %v2414, 1.442695
        %v2433 = vpow.pop %v2432
        %v2434 = vmul.f32 %v2415, 1.442695
        %v2435 = vpow.pop %v2434
        %v2436 = vadd.f32 %v2417, 1.0
        %v2437 = vadd.f32 %v2419, 1.0
        %v2438 = vadd.f32 %v2421, 1.0
        %v2439 = vadd.f32 %v2423, 1.0
        %v2440 = vadd.f32 %v2425, 1.0
        %v2441 = vadd.f32 %v2427, 1.0
        %v2442 = vadd.f32 %v2429, 1.0
        %v2443 = vadd.f32 %v2431, 1.0
        %v2444 = vadd.f32 %v2433, 1.0
        %v2445 = vadd.f32 %v2435, 1.0
        %v2446 = vrcp.pop %v2436
        %v2447 = vmul.f32 %v2436, %v2446
        %v2448 = vsub.f32 1.0, %v2447
        %v2449 = vmul.f32 %v2446, %v2448
        %v2450 = vadd.f32 %v2446, %v2449
        %vm2451 = vweird.f32 %v2436
        %vm2452 = vweird.f32 %v2446
        %vm2453 = vmor %vm2451, %vm2452
        %v2454 = vsel %vm2453, %v2446, %v2450
        %v2455 = vand.u32 2147483647, %v2436
        %vm2456 = vcmp.eq.f32.partialorder %v2455, 8.507059e+37
        %v2457 = vand.u32 %v2436, 2147483648
        %v2458 = vor.u32 1.1754944e-38, %v2457
        %v2459 = vsel %vm2456, %v2458, %v2454
        %v2460 = vmul.f32 1.0, %v2459
        %v2461 = vrcp.pop %v2437
        %v2462 = vmul.f32 %v2437, %v2461
        %v2463 = vsub.f32 1.0, %v2462
        %v2464 = vmul.f32 %v2461, %v2463
        %v2465 = vadd.f32 %v2461, %v2464
        %vm2466 = vweird.f32 %v2437
        %vm2467 = vweird.f32 %v2461
        %vm2468 = vmor %vm2466, %vm2467
        %v2469 = vsel %vm2468, %v2461, %v2465
        %v2470 = vand.u32 2147483647, %v2437
        %vm2471 = vcmp.eq.f32.partialorder %v2470, 8.507059e+37
        %v2472 = vand.u32 %v2437, 2147483648
        %v2473 = vor.u32 1.1754944e-38, %v2472
        %v2474 = vsel %vm2471, %v2473, %v2469
        %v2475 = vmul.f32 1.0, %v2474
        %v2476 = vrcp.pop %v2438
        %v2477 = vmul.f32 %v2438, %v2476
        %v2478 = vsub.f32 1.0, %v2477
        %v2479 = vmul.f32 %v2476, %v2478
        %v2480 = vadd.f32 %v2476, %v2479
        %vm2481 = vweird.f32 %v2438
        %vm2482 = vweird.f32 %v2476
        %vm2483 = vmor %vm2481, %vm2482
        %v2484 = vsel %vm2483, %v2476, %v2480
        %v2485 = vand.u32 2147483647, %v2438
        %vm2486 = vcmp.eq.f32.partialorder %v2485, 8.507059e+37
        %v2487 = vand.u32 %v2438, 2147483648
        %v2488 = vor.u32 1.1754944e-38, %v2487
        %v2489 = vsel %vm2486, %v2488, %v2484
        %v2490 = vmul.f32 1.0, %v2489
        %v2491 = vrcp.pop %v2439
        %v2492 = vmul.f32 %v2439, %v2491
        %v2493 = vsub.f32 1.0, %v2492
        %v2494 = vmul.f32 %v2491, %v2493
        %v2495 = vadd.f32 %v2491, %v2494
        %vm2496 = vweird.f32 %v2439
        %vm2497 = vweird.f32 %v2491
        %vm2498 = vmor %vm2496, %vm2497
        %v2499 = vsel %vm2498, %v2491, %v2495
        %v2500 = vand.u32 2147483647, %v2439
        %vm2501 = vcmp.eq.f32.partialorder %v2500, 8.507059e+37
        %v2502 = vand.u32 %v2439, 2147483648
        %v2503 = vor.u32 1.1754944e-38, %v2502
        %v2504 = vsel %vm2501, %v2503, %v2499
        %v2505 = vmul.f32 1.0, %v2504
        %v2506 = vrcp.pop %v2440
        %v2507 = vmul.f32 %v2440, %v2506
        %v2508 = vsub.f32 1.0, %v2507
        %v2509 = vmul.f32 %v2506, %v2508
        %v2510 = vadd.f32 %v2506, %v2509
        %vm2511 = vweird.f32 %v2440
        %vm2512 = vweird.f32 %v2506
        %vm2513 = vmor %vm2511, %vm2512
        %v2514 = vsel %vm2513, %v2506, %v2510
        %v2515 = vand.u32 2147483647, %v2440
        %vm2516 = vcmp.eq.f32.partialorder %v2515, 8.507059e+37
        %v2517 = vand.u32 %v2440, 2147483648
        %v2518 = vor.u32 1.1754944e-38, %v2517
        %v2519 = vsel %vm2516, %v2518, %v2514
        %v2520 = vmul.f32 1.0, %v2519
        %v2521 = vrcp.pop %v2441
        %v2522 = vmul.f32 %v2441, %v2521
        %v2523 = vsub.f32 1.0, %v2522
        %v2524 = vmul.f32 %v2521, %v2523
        %v2525 = vadd.f32 %v2521, %v2524
        %vm2526 = vweird.f32 %v2441
        %vm2527 = vweird.f32 %v2521
        %vm2528 = vmor %vm2526, %vm2527
        %v2529 = vsel %vm2528, %v2521, %v2525
        %v2530 = vand.u32 2147483647, %v2441
        %vm2531 = vcmp.eq.f32.partialorder %v2530, 8.507059e+37
        %v2532 = vand.u32 %v2441, 2147483648
        %v2533 = vor.u32 1.1754944e-38, %v2532
        %v2534 = vsel %vm2531, %v2533, %v2529
        %v2535 = vmul.f32 1.0, %v2534
        %v2536 = vrcp.pop %v2442
        %v2537 = vmul.f32 %v2442, %v2536
        %v2538 = vsub.f32 1.0, %v2537
        %v2539 = vmul.f32 %v2536, %v2538
        %v2540 = vadd.f32 %v2536, %v2539
        %vm2541 = vweird.f32 %v2442
        %vm2542 = vweird.f32 %v2536
        %vm2543 = vmor %vm2541, %vm2542
        %v2544 = vsel %vm2543, %v2536, %v2540
        %v2545 = vand.u32 2147483647, %v2442
        %vm2546 = vcmp.eq.f32.partialorder %v2545, 8.507059e+37
        %v2547 = vand.u32 %v2442, 2147483648
        %v2548 = vor.u32 1.1754944e-38, %v2547
        %v2549 = vsel %vm2546, %v2548, %v2544
        %v2550 = vmul.f32 1.0, %v2549
        %v2551 = vrcp.pop %v2443
        %v2552 = vmul.f32 %v2443, %v2551
        %v2553 = vsub.f32 1.0, %v2552
        %v2554 = vmul.f32 %v2551, %v2553
        %v2555 = vadd.f32 %v2551, %v2554
        %vm2556 = vweird.f32 %v2443
        %vm2557 = vweird.f32 %v2551
        %vm2558 = vmor %vm2556, %vm2557
        %v2559 = vsel %vm2558, %v2551, %v2555
        %v2560 = vand.u32 2147483647, %v2443
        %vm2561 = vcmp.eq.f32.partialorder %v2560, 8.507059e+37
        %v2562 = vand.u32 %v2443, 2147483648
        %v2563 = vor.u32 1.1754944e-38, %v2562
        %v2564 = vsel %vm2561, %v2563, %v2559
        %v2565 = vmul.f32 1.0, %v2564
        %v2566 = vrcp.pop %v2444
        %v2567 = vmul.f32 %v2444, %v2566
        %v2568 = vsub.f32 1.0, %v2567
        %v2569 = vmul.f32 %v2566, %v2568
        %v2570 = vadd.f32 %v2566, %v2569
        %vm2571 = vweird.f32 %v2444
        %vm2572 = vweird.f32 %v2566
        %vm2573 = vmor %vm2571, %vm2572
        %v2574 = vsel %vm2573, %v2566, %v2570
        %v2575 = vand.u32 2147483647, %v2444
        %vm2576 = vcmp.eq.f32.partialorder %v2575, 8.507059e+37
        %v2577 = vand.u32 %v2444, 2147483648
        %v2578 = vor.u32 1.1754944e-38, %v2577
        %v2579 = vsel %vm2576, %v2578, %v2574
        %v2580 = vmul.f32 1.0, %v2579
        %v2581 = vrcp.pop %v2445
        %v2582 = vmul.f32 %v2445, %v2581
        %v2583 = vsub.f32 1.0, %v2582
        %v2584 = vmul.f32 %v2581, %v2583
        %v2585 = vadd.f32 %v2581, %v2584
        %vm2586 = vweird.f32 %v2445
        %vm2587 = vweird.f32 %v2581
        %vm2588 = vmor %vm2586, %vm2587
        %v2589 = vsel %vm2588, %v2581, %v2585
        %v2590 = vand.u32 2147483647, %v2445
        %vm2591 = vcmp.eq.f32.partialorder %v2590, 8.507059e+37
        %v2592 = vand.u32 %v2445, 2147483648
        %v2593 = vor.u32 1.1754944e-38, %v2592
        %v2594 = vsel %vm2591, %v2593, %v2589
        %v2595 = vmul.f32 1.0, %v2594
        %vm2596 = vcmask 203952
        %v2597 = vsel %vm2596, %v2140, -inf
        %2598 = vmax.xlane.f32.xlu0 %v2597
        %v2599 = vpop.xlane.xlu0 %2598
        %v2600 = vsel %vm2596, %v2143, -inf
        %2601 = vmax.xlane.f32.xlu0 %v2600
        %v2602 = vpop.xlane.xlu0 %2601
        %v2603 = vsel %vm2596, %v2146, -inf
        %2604 = vmax.xlane.f32.xlu0 %v2603
        %v2605 = vpop.xlane.xlu0 %2604
        %v2606 = vsel %vm2596, %v2149, -inf
        %2607 = vmax.xlane.f32.xlu0 %v2606
        %v2608 = vpop.xlane.xlu0 %2607
        %v2609 = vsel %vm2596, %v2152, -inf
        %2610 = vmax.xlane.f32.xlu0 %v2609
        %v2611 = vpop.xlane.xlu0 %2610
        %v2612 = vsel %vm2596, %v2155, -inf
        %2613 = vmax.xlane.f32.xlu0 %v2612
        %v2614 = vpop.xlane.xlu0 %2613
        %v2615 = vsel %vm2596, %v2158, -inf
        %2616 = vmax.xlane.f32.xlu0 %v2615
        %v2617 = vpop.xlane.xlu0 %2616
        %v2618 = vsel %vm2596, %v2161, -inf
        %2619 = vmax.xlane.f32.xlu0 %v2618
        %v2620 = vpop.xlane.xlu0 %2619
        %v2621 = vsel %vm2596, %v2164, -inf
        %2622 = vmax.xlane.f32.xlu0 %v2621
        %v2623 = vpop.xlane.xlu0 %2622
        %v2624 = vsel %vm2596, %v2167, -inf
        %2625 = vmax.xlane.f32.xlu0 %v2624
        %v2626 = vpop.xlane.xlu0 %2625
        %v2627 = vsub.f32 %v2140, %v2599
        %v2628 = vsub.f32 %v2143, %v2602
        %v2629 = vsub.f32 %v2146, %v2605
        %v2630 = vsub.f32 %v2149, %v2608
        %v2631 = vsub.f32 %v2152, %v2611
        %v2632 = vsub.f32 %v2155, %v2614
        %v2633 = vsub.f32 %v2158, %v2617
        %v2634 = vsub.f32 %v2161, %v2620
        %v2635 = vsub.f32 %v2164, %v2623
        %v2636 = vsub.f32 %v2167, %v2626
        %v2637 = vmul.f32 %v2627, 1.442695
        %v2638 = vpow.pop %v2637
        %v2639 = vmul.f32 %v2628, 1.442695
        %v2640 = vpow.pop %v2639
        %v2641 = vmul.f32 %v2629, 1.442695
        %v2642 = vpow.pop %v2641
        %v2643 = vmul.f32 %v2630, 1.442695
        %v2644 = vpow.pop %v2643
        %v2645 = vmul.f32 %v2631, 1.442695
        %v2646 = vpow.pop %v2645
        %v2647 = vmul.f32 %v2632, 1.442695
        %v2648 = vpow.pop %v2647
        %v2649 = vmul.f32 %v2633, 1.442695
        %v2650 = vpow.pop %v2649
        %v2651 = vmul.f32 %v2634, 1.442695
        %v2652 = vpow.pop %v2651
        %v2653 = vmul.f32 %v2635, 1.442695
        %v2654 = vpow.pop %v2653
        %v2655 = vmul.f32 %v2636, 1.442695
        %v2656 = vpow.pop %v2655
        %2667 = vrot.lane.b32.xlu0 %v2638, 106
        %v2668 = vpop.permute.xlu0 %2667
        %2669 = vrot.lane.b32.xlu0 %v2640, 106
        %v2670 = vpop.permute.xlu0 %2669
        %2671 = vrot.lane.b32.xlu0 %v2642, 106
        %v2672 = vpop.permute.xlu0 %2671
        %2673 = vrot.lane.b32.xlu0 %v2644, 106
        %v2674 = vpop.permute.xlu0 %2673
        %2675 = vrot.lane.b32.xlu0 %v2646, 106
        %v2676 = vpop.permute.xlu0 %2675
        %2677 = vrot.lane.b32.xlu0 %v2648, 106
        %v2678 = vpop.permute.xlu0 %2677
        %2679 = vrot.lane.b32.xlu0 %v2650, 106
        %v2680 = vpop.permute.xlu0 %2679
        %2681 = vrot.lane.b32.xlu0 %v2652, 106
        %v2682 = vpop.permute.xlu0 %2681
        %2683 = vrot.lane.b32.xlu0 %v2654, 106
        %v2684 = vpop.permute.xlu0 %2683
        %2685 = vrot.lane.b32.xlu0 %v2656, 106
        %v2686 = vpop.permute.xlu0 %2685
        %vm2697 = vcmask 23552
        %v2698 = vsel %vm2697, %v2668, 0.0
        %2699 = vadd.xlane.f32.xlu0 %v2698
        %v2700 = vpop.xlane.xlu0 %2699
        %v2701 = vsel %vm2697, %v2670, 0.0
        %2702 = vadd.xlane.f32.xlu0 %v2701
        %v2703 = vpop.xlane.xlu0 %2702
        %v2704 = vsel %vm2697, %v2672, 0.0
        %2705 = vadd.xlane.f32.xlu0 %v2704
        %v2706 = vpop.xlane.xlu0 %2705
        %v2707 = vsel %vm2697, %v2674, 0.0
        %2708 = vadd.xlane.f32.xlu0 %v2707
        %v2709 = vpop.xlane.xlu0 %2708
        %v2710 = vsel %vm2697, %v2676, 0.0
        %2711 = vadd.xlane.f32.xlu0 %v2710
        %v2712 = vpop.xlane.xlu0 %2711
        %v2713 = vsel %vm2697, %v2678, 0.0
        %2714 = vadd.xlane.f32.xlu0 %v2713
        %v2715 = vpop.xlane.xlu0 %2714
        %v2716 = vsel %vm2697, %v2680, 0.0
        %2717 = vadd.xlane.f32.xlu0 %v2716
        %v2718 = vpop.xlane.xlu0 %2717
        %v2719 = vsel %vm2697, %v2682, 0.0
        %2720 = vadd.xlane.f32.xlu0 %v2719
        %v2721 = vpop.xlane.xlu0 %2720
        %v2722 = vsel %vm2697, %v2684, 0.0
        %2723 = vadd.xlane.f32.xlu0 %v2722
        %v2724 = vpop.xlane.xlu0 %2723
        %v2725 = vsel %vm2697, %v2686, 0.0
        %2726 = vadd.xlane.f32.xlu0 %v2725
        %v2727 = vpop.xlane.xlu0 %2726
        %v2728 = vrcp.pop %v2700
        %v2729 = vrcp.pop %v2703
        %v2730 = vrcp.pop %v2706
        %v2731 = vrcp.pop %v2709
        %v2732 = vrcp.pop %v2712
        %v2733 = vrcp.pop %v2715
        %v2734 = vrcp.pop %v2718
        %v2735 = vrcp.pop %v2721
        %v2736 = vrcp.pop %v2724
        %v2737 = vrcp.pop %v2727
        %v2738 = vmul.f32 %v2638, %v2728
        %v2739 = vmul.f32 %v2640, %v2729
        %v2740 = vmul.f32 %v2642, %v2730
        %v2741 = vmul.f32 %v2644, %v2731
        %v2742 = vmul.f32 %v2646, %v2732
        %v2743 = vmul.f32 %v2648, %v2733
        %v2744 = vmul.f32 %v2650, %v2734
        %v2745 = vmul.f32 %v2652, %v2735
        %v2746 = vmul.f32 %v2654, %v2736
        %v2747 = vmul.f32 %v2656, %v2737
        %v2748 = vadd.f32 %v2396, 1.0
        %v2749 = vadd.f32 %v2397, 1.0
        %v2750 = vadd.f32 %v2398, 1.0
        %v2751 = vadd.f32 %v2399, 1.0
        %v2752 = vadd.f32 %v2400, 1.0
        %v2753 = vadd.f32 %v2401, 1.0
        %v2754 = vadd.f32 %v2402, 1.0
        %v2755 = vadd.f32 %v2403, 1.0
        %v2756 = vadd.f32 %v2404, 1.0
        %v2757 = vadd.f32 %v2405, 1.0
        %v2758 = vld [vmem:[%s10] sm:$0xff]
        %v2759 = vld [vmem:[%s10 + $0x8] sm:$0xff]
        %v2760 = vld [vmem:[%s10 + $0x10] sm:$0xf]
        %vm2761 = vcmask 162816
        %v2763 = vsel %vm2761, %v2216, 0
        %v2766 = vsel %vm2761, %v2217, 0
        %v2769 = vsel %vm2761, %v2218, 0
        %v2772 = vsel %vm2761, %v2219, 0
        %v2775 = vsel %vm2761, %v2220, 0
        %v2778 = vsel %vm2761, %v2221, 0
        %v2781 = vsel %vm2761, %v2222, 0
        %v2784 = vsel %vm2761, %v2223, 0
        %v2787 = vsel %vm2761, %v2224, 0
        %v2790 = vsel %vm2761, %v2225, 0
        %vm2792 = vcmask 1043456
        %v2794 = vsel %vm2792, %v2760, 0
        %2796 = vmatpush.msra.mxu0 0.0
        %2797 = vmatpush.msra.mxu0 0.0
        %2798 = vmatpush.msra.mxu0 0.0
        %2799 = vmatpush.msra.mxu0 0.0
        %2800 = vmatpush.msra.mxu0 0.0
        %2801 = vmatpush.msra.mxu0 0.0
        %2802 = vmatpush.msra.mxu0 0.0
        %2803 = vmatpush.msra.mxu0 0.0
        %2804 = vmatpush.msra.mxu0 0.0
        %2805 = vmatpush.msra.mxu0 0.0
        %2806 = vmatpush.msra.mxu0 0.0
        %2807 = vmatpush.msra.mxu0 0.0
        %2808 = vmatpush.msra.mxu0 0.0
        %2809 = vmatpush.msra.mxu0 %v2794
        %2810 = vmatpush.msra.mxu0 %v2759
        %2811 = vmatpush.msra.mxu0 %v2758
        %2812 = vmatmul.f32.gmra.mxu0 %v2763
        %v2813 = vpop.f32.mrf.mxu0
        %v2814 = vadd.f32 0.0, %v2813
        %2815 = vmatmul.f32.gmra.mxu0 %v2766
        %v2816 = vpop.f32.mrf.mxu0
        %v2817 = vadd.f32 0.0, %v2816
        %2818 = vmatmul.f32.gmra.mxu0 %v2769
        %v2819 = vpop.f32.mrf.mxu0
        %v2820 = vadd.f32 0.0, %v2819
        %2821 = vmatmul.f32.gmra.mxu0 %v2772
        %v2822 = vpop.f32.mrf.mxu0
        %v2823 = vadd.f32 0.0, %v2822
        %2824 = vmatmul.f32.gmra.mxu0 %v2775
        %v2825 = vpop.f32.mrf.mxu0
        %v2826 = vadd.f32 0.0, %v2825
        %2827 = vmatmul.f32.gmra.mxu0 %v2778
        %v2828 = vpop.f32.mrf.mxu0
        %v2829 = vadd.f32 0.0, %v2828
        %2830 = vmatmul.f32.gmra.mxu0 %v2781
        %v2831 = vpop.f32.mrf.mxu0
        %v2832 = vadd.f32 0.0, %v2831
        %2833 = vmatmul.f32.gmra.mxu0 %v2784
        %v2834 = vpop.f32.mrf.mxu0
        %v2835 = vadd.f32 0.0, %v2834
        %2836 = vmatmul.f32.gmra.mxu0 %v2787
        %v2837 = vpop.f32.mrf.mxu0
        %v2838 = vadd.f32 0.0, %v2837
        %2839 = vmatmul.f32.gmra.mxu0 %v2790
        %v2840 = vpop.f32.mrf.mxu0
        %v2841 = vadd.f32 0.0, %v2840
        %2842 = vdwg.mxu0
        %v2843 = vmul.f32 %v2216, %v2216
        %v2844 = vmul.f32 %v2217, %v2217
        %v2845 = vmul.f32 %v2218, %v2218
        %v2846 = vmul.f32 %v2219, %v2219
        %v2847 = vmul.f32 %v2220, %v2220
        %v2848 = vmul.f32 %v2221, %v2221
        %v2849 = vmul.f32 %v2222, %v2222
        %v2850 = vmul.f32 %v2223, %v2223
        %v2851 = vmul.f32 %v2224, %v2224
        %v2852 = vmul.f32 %v2225, %v2225
        %v2853 = vsel %vm2761, %v2843, 0.0
        %2854 = vadd.xlane.f32.xlu0 %v2853
        %v2855 = vpop.xlane.xlu0 %2854
        %v2856 = vsel %vm2761, %v2844, 0.0
        %2857 = vadd.xlane.f32.xlu0 %v2856
        %v2858 = vpop.xlane.xlu0 %2857
        %v2859 = vsel %vm2761, %v2845, 0.0
        %2860 = vadd.xlane.f32.xlu0 %v2859
        %v2861 = vpop.xlane.xlu0 %2860
        %v2862 = vsel %vm2761, %v2846, 0.0
        %2863 = vadd.xlane.f32.xlu0 %v2862
        %v2864 = vpop.xlane.xlu0 %2863
        %v2865 = vsel %vm2761, %v2847, 0.0
        %2866 = vadd.xlane.f32.xlu0 %v2865
        %v2867 = vpop.xlane.xlu0 %2866
        %v2868 = vsel %vm2761, %v2848, 0.0
        %2869 = vadd.xlane.f32.xlu0 %v2868
        %v2870 = vpop.xlane.xlu0 %2869
        %v2871 = vsel %vm2761, %v2849, 0.0
        %2872 = vadd.xlane.f32.xlu0 %v2871
        %v2873 = vpop.xlane.xlu0 %2872
        %v2874 = vsel %vm2761, %v2850, 0.0
        %2875 = vadd.xlane.f32.xlu0 %v2874
        %v2876 = vpop.xlane.xlu0 %2875
        %v2877 = vsel %vm2761, %v2851, 0.0
        %2878 = vadd.xlane.f32.xlu0 %v2877
        %v2879 = vpop.xlane.xlu0 %2878
        %v2880 = vsel %vm2761, %v2852, 0.0
        %2881 = vadd.xlane.f32.xlu0 %v2880
        %v2882 = vpop.xlane.xlu0 %2881
        %v2883 = vrsqrt.pop %v2855
        %v2884 = vmul.f32 %v2883, %v2855
        %v2885 = vmul.f32 %v2884, %v2883
        %v2886 = vmul.f32 0.5, %v2885
        %v2887 = vsub.f32 1.5, %v2886
        %v2888 = vmul.f32 %v2883, %v2887
        %v2889 = vmul.f32 %v2855, %v2888
        %vm2890 = vcmp.eq.f32.partialorder %v2855, inf
        %v2891 = vsel %vm2890, %v2855, %v2889
        %vm2892 = vcmp.eq.f32.partialorder %v2855, 0.0
        %v2893 = vand.u32 %v2855, 2147483648
        %v2894 = vsel %vm2892, %v2893, %v2891
        %v2895 = vrsqrt.pop %v2858
        %v2896 = vmul.f32 %v2895, %v2858
        %v2897 = vmul.f32 %v2896, %v2895
        %v2898 = vmul.f32 0.5, %v2897
        %v2899 = vsub.f32 1.5, %v2898
        %v2900 = vmul.f32 %v2895, %v2899
        %v2901 = vmul.f32 %v2858, %v2900
        %vm2902 = vcmp.eq.f32.partialorder %v2858, inf
        %v2903 = vsel %vm2902, %v2858, %v2901
        %vm2904 = vcmp.eq.f32.partialorder %v2858, 0.0
        %v2905 = vand.u32 %v2858, 2147483648
        %v2906 = vsel %vm2904, %v2905, %v2903
        %v2907 = vrsqrt.pop %v2861
        %v2908 = vmul.f32 %v2907, %v2861
        %v2909 = vmul.f32 %v2908, %v2907
        %v2910 = vmul.f32 0.5, %v2909
        %v2911 = vsub.f32 1.5, %v2910
        %v2912 = vmul.f32 %v2907, %v2911
        %v2913 = vmul.f32 %v2861, %v2912
        %vm2914 = vcmp.eq.f32.partialorder %v2861, inf
        %v2915 = vsel %vm2914, %v2861, %v2913
        %vm2916 = vcmp.eq.f32.partialorder %v2861, 0.0
        %v2917 = vand.u32 %v2861, 2147483648
        %v2918 = vsel %vm2916, %v2917, %v2915
        %v2919 = vrsqrt.pop %v2864
        %v2920 = vmul.f32 %v2919, %v2864
        %v2921 = vmul.f32 %v2920, %v2919
        %v2922 = vmul.f32 0.5, %v2921
        %v2923 = vsub.f32 1.5, %v2922
        %v2924 = vmul.f32 %v2919, %v2923
        %v2925 = vmul.f32 %v2864, %v2924
        %vm2926 = vcmp.eq.f32.partialorder %v2864, inf
        %v2927 = vsel %vm2926, %v2864, %v2925
        %vm2928 = vcmp.eq.f32.partialorder %v2864, 0.0
        %v2929 = vand.u32 %v2864, 2147483648
        %v2930 = vsel %vm2928, %v2929, %v2927
        %v2931 = vrsqrt.pop %v2867
        %v2932 = vmul.f32 %v2931, %v2867
        %v2933 = vmul.f32 %v2932, %v2931
        %v2934 = vmul.f32 0.5, %v2933
        %v2935 = vsub.f32 1.5, %v2934
        %v2936 = vmul.f32 %v2931, %v2935
        %v2937 = vmul.f32 %v2867, %v2936
        %vm2938 = vcmp.eq.f32.partialorder %v2867, inf
        %v2939 = vsel %vm2938, %v2867, %v2937
        %vm2940 = vcmp.eq.f32.partialorder %v2867, 0.0
        %v2941 = vand.u32 %v2867, 2147483648
        %v2942 = vsel %vm2940, %v2941, %v2939
        %v2943 = vrsqrt.pop %v2870
        %v2944 = vmul.f32 %v2943, %v2870
        %v2945 = vmul.f32 %v2944, %v2943
        %v2946 = vmul.f32 0.5, %v2945
        %v2947 = vsub.f32 1.5, %v2946
        %v2948 = vmul.f32 %v2943, %v2947
        %v2949 = vmul.f32 %v2870, %v2948
        %vm2950 = vcmp.eq.f32.partialorder %v2870, inf
        %v2951 = vsel %vm2950, %v2870, %v2949
        %vm2952 = vcmp.eq.f32.partialorder %v2870, 0.0
        %v2953 = vand.u32 %v2870, 2147483648
        %v2954 = vsel %vm2952, %v2953, %v2951
        %v2955 = vrsqrt.pop %v2873
        %v2956 = vmul.f32 %v2955, %v2873
        %v2957 = vmul.f32 %v2956, %v2955
        %v2958 = vmul.f32 0.5, %v2957
        %v2959 = vsub.f32 1.5, %v2958
        %v2960 = vmul.f32 %v2955, %v2959
        %v2961 = vmul.f32 %v2873, %v2960
        %vm2962 = vcmp.eq.f32.partialorder %v2873, inf
        %v2963 = vsel %vm2962, %v2873, %v2961
        %vm2964 = vcmp.eq.f32.partialorder %v2873, 0.0
        %v2965 = vand.u32 %v2873, 2147483648
        %v2966 = vsel %vm2964, %v2965, %v2963
        %v2967 = vrsqrt.pop %v2876
        %v2968 = vmul.f32 %v2967, %v2876
        %v2969 = vmul.f32 %v2968, %v2967
        %v2970 = vmul.f32 0.5, %v2969
        %v2971 = vsub.f32 1.5, %v2970
        %v2972 = vmul.f32 %v2967, %v2971
        %v2973 = vmul.f32 %v2876, %v2972
        %vm2974 = vcmp.eq.f32.partialorder %v2876, inf
        %v2975 = vsel %vm2974, %v2876, %v2973
        %vm2976 = vcmp.eq.f32.partialorder %v2876, 0.0
        %v2977 = vand.u32 %v2876, 2147483648
        %v2978 = vsel %vm2976, %v2977, %v2975
        %v2979 = vrsqrt.pop %v2879
        %v2980 = vmul.f32 %v2979, %v2879
        %v2981 = vmul.f32 %v2980, %v2979
        %v2982 = vmul.f32 0.5, %v2981
        %v2983 = vsub.f32 1.5, %v2982
        %v2984 = vmul.f32 %v2979, %v2983
        %v2985 = vmul.f32 %v2879, %v2984
        %vm2986 = vcmp.eq.f32.partialorder %v2879, inf
        %v2987 = vsel %vm2986, %v2879, %v2985
        %vm2988 = vcmp.eq.f32.partialorder %v2879, 0.0
        %v2989 = vand.u32 %v2879, 2147483648
        %v2990 = vsel %vm2988, %v2989, %v2987
        %v2991 = vrsqrt.pop %v2882
        %v2992 = vmul.f32 %v2991, %v2882
        %v2993 = vmul.f32 %v2992, %v2991
        %v2994 = vmul.f32 0.5, %v2993
        %v2995 = vsub.f32 1.5, %v2994
        %v2996 = vmul.f32 %v2991, %v2995
        %v2997 = vmul.f32 %v2882, %v2996
        %vm2998 = vcmp.eq.f32.partialorder %v2882, inf
        %v2999 = vsel %vm2998, %v2882, %v2997
        %vm3000 = vcmp.eq.f32.partialorder %v2882, 0.0
        %v3001 = vand.u32 %v2882, 2147483648
        %v3002 = vsel %vm3000, %v3001, %v2999
        %v3003 = vld [vmem:[%s11] sm:$0x1]
        %v3005 = vperm.slane %v3003, 0
        %v3007 = vmul.f32 %v2894, %v3005
        %v3008 = vmul.f32 %v2906, %v3005
        %v3009 = vmul.f32 %v2918, %v3005
        %v3010 = vmul.f32 %v2930, %v3005
        %v3011 = vmul.f32 %v2942, %v3005
        %v3012 = vmul.f32 %v2954, %v3005
        %v3013 = vmul.f32 %v2966, %v3005
        %v3014 = vmul.f32 %v2978, %v3005
        %v3015 = vmul.f32 %v2990, %v3005
        %v3016 = vmul.f32 %v3002, %v3005
        %v3017 = vmax.f32 %v3007, 1e-08
        %v3018 = vmax.f32 %v3008, 1e-08
        %v3019 = vmax.f32 %v3009, 1e-08
        %v3020 = vmax.f32 %v3010, 1e-08
        %v3021 = vmax.f32 %v3011, 1e-08
        %v3022 = vmax.f32 %v3012, 1e-08
        %v3023 = vmax.f32 %v3013, 1e-08
        %v3024 = vmax.f32 %v3014, 1e-08
        %v3025 = vmax.f32 %v3015, 1e-08
        %v3026 = vmax.f32 %v3016, 1e-08
        %v3027 = vrcp.pop %v3017
        %v3028 = vrcp.pop %v3018
        %v3029 = vrcp.pop %v3019
        %v3030 = vrcp.pop %v3020
        %v3031 = vrcp.pop %v3021
        %v3032 = vrcp.pop %v3022
        %v3033 = vrcp.pop %v3023
        %v3034 = vrcp.pop %v3024
        %v3035 = vrcp.pop %v3025
        %v3036 = vrcp.pop %v3026
        %v3037 = vmul.f32 %v2814, %v3027
        %v3038 = vmul.f32 %v2817, %v3028
        %v3039 = vmul.f32 %v2820, %v3029
        %v3040 = vmul.f32 %v2823, %v3030
        %v3041 = vmul.f32 %v2826, %v3031
        %v3042 = vmul.f32 %v2829, %v3032
        %v3043 = vmul.f32 %v2832, %v3033
        %v3044 = vmul.f32 %v2835, %v3034
        %v3045 = vmul.f32 %v2838, %v3035
        %v3046 = vmul.f32 %v2841, %v3036
        %3048 = vset.pattern.permute.xlu0 20
        %3049 = vperm.xlu0 %3048, %v2396
        %v3050 = vpop.permute.xlu0 %3049
        %3053 = vset.pattern.permute.xlu0 20
        %3054 = vperm.xlu0 %3053, %v2397
        %v3055 = vpop.permute.xlu0 %3054
        %3058 = vset.pattern.permute.xlu0 20
        %3059 = vperm.xlu0 %3058, %v2398
        %v3060 = vpop.permute.xlu0 %3059
        %3063 = vset.pattern.permute.xlu0 20
        %3064 = vperm.xlu0 %3063, %v2399
        %v3065 = vpop.permute.xlu0 %3064
        %3068 = vset.pattern.permute.xlu0 20
        %3069 = vperm.xlu0 %3068, %v2400
        %v3070 = vpop.permute.xlu0 %3069
        %3073 = vset.pattern.permute.xlu0 20
        %3074 = vperm.xlu0 %3073, %v2401
        %v3075 = vpop.permute.xlu0 %3074
        %3078 = vset.pattern.permute.xlu0 20
        %3079 = vperm.xlu0 %3078, %v2402
        %v3080 = vpop.permute.xlu0 %3079
        %3083 = vset.pattern.permute.xlu0 20
        %3084 = vperm.xlu0 %3083, %v2403
        %v3085 = vpop.permute.xlu0 %3084
        %3088 = vset.pattern.permute.xlu0 20
        %3089 = vperm.xlu0 %3088, %v2404
        %v3090 = vpop.permute.xlu0 %3089
        %3093 = vset.pattern.permute.xlu0 20
        %3094 = vperm.xlu0 %3093, %v2405
        %v3095 = vpop.permute.xlu0 %3094
        %v3097 = vmul.f32 %v3050, %v3037
        %v3098 = vmul.f32 %v3055, %v3038
        %v3099 = vmul.f32 %v3060, %v3039
        %v3100 = vmul.f32 %v3065, %v3040
        %v3101 = vmul.f32 %v3070, %v3041
        %v3102 = vmul.f32 %v3075, %v3042
        %v3103 = vmul.f32 %v3080, %v3043
        %v3104 = vmul.f32 %v3085, %v3044
        %v3105 = vmul.f32 %v3090, %v3045
        %v3106 = vmul.f32 %v3095, %v3046
        %3107 = vmax.xlane.f32.xlu0 %v3097
        %v3108 = vpop.xlane.xlu0 %3107
        %3109 = vmax.xlane.f32.xlu0 %v3098
        %v3110 = vpop.xlane.xlu0 %3109
        %3111 = vmax.xlane.f32.xlu0 %v3099
        %v3112 = vpop.xlane.xlu0 %3111
        %3113 = vmax.xlane.f32.xlu0 %v3100
        %v3114 = vpop.xlane.xlu0 %3113
        %3115 = vmax.xlane.f32.xlu0 %v3101
        %v3116 = vpop.xlane.xlu0 %3115
        %3117 = vmax.xlane.f32.xlu0 %v3102
        %v3118 = vpop.xlane.xlu0 %3117
        %3119 = vmax.xlane.f32.xlu0 %v3103
        %v3120 = vpop.xlane.xlu0 %3119
        %3121 = vmax.xlane.f32.xlu0 %v3104
        %v3122 = vpop.xlane.xlu0 %3121
        %3123 = vmax.xlane.f32.xlu0 %v3105
        %v3124 = vpop.xlane.xlu0 %3123
        %3125 = vmax.xlane.f32.xlu0 %v3106
        %v3126 = vpop.xlane.xlu0 %3125
        %v3127 = vsub.f32 %v3097, %v3108
        %v3128 = vsub.f32 %v3098, %v3110
        %v3129 = vsub.f32 %v3099, %v3112
        %v3130 = vsub.f32 %v3100, %v3114
        %v3131 = vsub.f32 %v3101, %v3116
        %v3132 = vsub.f32 %v3102, %v3118
        %v3133 = vsub.f32 %v3103, %v3120
        %v3134 = vsub.f32 %v3104, %v3122
        %v3135 = vsub.f32 %v3105, %v3124
        %v3136 = vsub.f32 %v3106, %v3126
        %v3137 = vmul.f32 %v3127, 1.442695
        %v3138 = vpow.pop %v3137
        %v3139 = vmul.f32 %v3128, 1.442695
        %v3140 = vpow.pop %v3139
        %v3141 = vmul.f32 %v3129, 1.442695
        %v3142 = vpow.pop %v3141
        %v3143 = vmul.f32 %v3130, 1.442695
        %v3144 = vpow.pop %v3143
        %v3145 = vmul.f32 %v3131, 1.442695
        %v3146 = vpow.pop %v3145
        %v3147 = vmul.f32 %v3132, 1.442695
        %v3148 = vpow.pop %v3147
        %v3149 = vmul.f32 %v3133, 1.442695
        %v3150 = vpow.pop %v3149
        %v3151 = vmul.f32 %v3134, 1.442695
        %v3152 = vpow.pop %v3151
        %v3153 = vmul.f32 %v3135, 1.442695
        %v3154 = vpow.pop %v3153
        %v3155 = vmul.f32 %v3136, 1.442695
        %v3156 = vpow.pop %v3155
        %3157 = vadd.xlane.f32.xlu0 %v3138
        %v3158 = vpop.xlane.xlu0 %3157
        %3159 = vadd.xlane.f32.xlu0 %v3140
        %v3160 = vpop.xlane.xlu0 %3159
        %3161 = vadd.xlane.f32.xlu0 %v3142
        %v3162 = vpop.xlane.xlu0 %3161
        %3163 = vadd.xlane.f32.xlu0 %v3144
        %v3164 = vpop.xlane.xlu0 %3163
        %3165 = vadd.xlane.f32.xlu0 %v3146
        %v3166 = vpop.xlane.xlu0 %3165
        %3167 = vadd.xlane.f32.xlu0 %v3148
        %v3168 = vpop.xlane.xlu0 %3167
        %3169 = vadd.xlane.f32.xlu0 %v3150
        %v3170 = vpop.xlane.xlu0 %3169
        %3171 = vadd.xlane.f32.xlu0 %v3152
        %v3172 = vpop.xlane.xlu0 %3171
        %3173 = vadd.xlane.f32.xlu0 %v3154
        %v3174 = vpop.xlane.xlu0 %3173
        %3175 = vadd.xlane.f32.xlu0 %v3156
        %v3176 = vpop.xlane.xlu0 %3175
        %v3177 = vrcp.pop %v3158
        %v3178 = vrcp.pop %v3160
        %v3179 = vrcp.pop %v3162
        %v3180 = vrcp.pop %v3164
        %v3181 = vrcp.pop %v3166
        %v3182 = vrcp.pop %v3168
        %v3183 = vrcp.pop %v3170
        %v3184 = vrcp.pop %v3172
        %v3185 = vrcp.pop %v3174
        %v3186 = vrcp.pop %v3176
        %v3187 = vmul.f32 %v3138, %v3177
        %v3188 = vmul.f32 %v3140, %v3178
        %v3189 = vmul.f32 %v3142, %v3179
        %v3190 = vmul.f32 %v3144, %v3180
        %v3191 = vmul.f32 %v3146, %v3181
        %v3192 = vmul.f32 %v3148, %v3182
        %v3193 = vmul.f32 %v3150, %v3183
        %v3194 = vmul.f32 %v3152, %v3184
        %v3195 = vmul.f32 %v3154, %v3185
        %v3196 = vmul.f32 %v3156, %v3186
        %3198 = vset.pattern.permute.xlu0 21
        %3199 = vperm.xlu0 %3198, %v2460
        %v3200 = vpop.permute.xlu0 %3199
        %3203 = vset.pattern.permute.xlu0 21
        %3204 = vperm.xlu0 %3203, %v2475
        %v3205 = vpop.permute.xlu0 %3204
        %3208 = vset.pattern.permute.xlu0 21
        %3209 = vperm.xlu0 %3208, %v2490
        %v3210 = vpop.permute.xlu0 %3209
        %3213 = vset.pattern.permute.xlu0 21
        %3214 = vperm.xlu0 %3213, %v2505
        %v3215 = vpop.permute.xlu0 %3214
        %3218 = vset.pattern.permute.xlu0 21
        %3219 = vperm.xlu0 %3218, %v2520
        %v3220 = vpop.permute.xlu0 %3219
        %3223 = vset.pattern.permute.xlu0 21
        %3224 = vperm.xlu0 %3223, %v2535
        %v3225 = vpop.permute.xlu0 %3224
        %3228 = vset.pattern.permute.xlu0 21
        %3229 = vperm.xlu0 %3228, %v2550
        %v3230 = vpop.permute.xlu0 %3229
        %3233 = vset.pattern.permute.xlu0 21
        %3234 = vperm.xlu0 %3233, %v2565
        %v3235 = vpop.permute.xlu0 %3234
        %3238 = vset.pattern.permute.xlu0 21
        %3239 = vperm.xlu0 %3238, %v2580
        %v3240 = vpop.permute.xlu0 %3239
        %3243 = vset.pattern.permute.xlu0 21
        %3244 = vperm.xlu0 %3243, %v2595
        %v3245 = vpop.permute.xlu0 %3244
        %v3247 = vmul.f32 %v3200, %v3187
        %v3248 = vmul.f32 %v3205, %v3188
        %v3249 = vmul.f32 %v3210, %v3189
        %v3250 = vmul.f32 %v3215, %v3190
        %v3251 = vmul.f32 %v3220, %v3191
        %v3252 = vmul.f32 %v3225, %v3192
        %v3253 = vmul.f32 %v3230, %v3193
        %v3254 = vmul.f32 %v3235, %v3194
        %v3255 = vmul.f32 %v3240, %v3195
        %v3256 = vmul.f32 %v3245, %v3196
        %v3257 = vsub.f32 1.0, %v2460
        %v3258 = vsub.f32 1.0, %v2475
        %v3259 = vsub.f32 1.0, %v2490
        %v3260 = vsub.f32 1.0, %v2505
        %v3261 = vsub.f32 1.0, %v2520
        %v3262 = vsub.f32 1.0, %v2535
        %v3263 = vsub.f32 1.0, %v2550
        %v3264 = vsub.f32 1.0, %v2565
        %v3265 = vsub.f32 1.0, %v2580
        %v3266 = vsub.f32 1.0, %v2595
        %v3267 = vld [vmem:[%s686] sm:$0xff]
        %v3268 = vld [vmem:[%s686 + $0x8] sm:$0xff]
        %v3269 = vld [vmem:[%s686 + $0x10] sm:$0xff]
        %v3270 = vld [vmem:[%s686 + $0x18] sm:$0xff]
        %v3271 = vld [vmem:[%s686 + $0x20] sm:$0xff]
        %v3272 = vld [vmem:[%s686 + $0x28] sm:$0xff]
        %v3273 = vld [vmem:[%s686 + $0x30] sm:$0xff]
        %v3274 = vld [vmem:[%s686 + $0x38] sm:$0xff]
        %v3275 = vld [vmem:[%s686 + $0x40] sm:$0xff]
        %v3276 = vld [vmem:[%s686 + $0x48] sm:$0xff]
        %3278 = vset.pattern.permute.xlu0 21
        %3279 = vperm.xlu0 %3278, %v3257
        %v3280 = vpop.permute.xlu0 %3279
        %3283 = vset.pattern.permute.xlu0 21
        %3284 = vperm.xlu0 %3283, %v3258
        %v3285 = vpop.permute.xlu0 %3284
        %3288 = vset.pattern.permute.xlu0 21
        %3289 = vperm.xlu0 %3288, %v3259
        %v3290 = vpop.permute.xlu0 %3289
        %3293 = vset.pattern.permute.xlu0 21
        %3294 = vperm.xlu0 %3293, %v3260
        %v3295 = vpop.permute.xlu0 %3294
        %3298 = vset.pattern.permute.xlu0 21
        %3299 = vperm.xlu0 %3298, %v3261
        %v3300 = vpop.permute.xlu0 %3299
        %3303 = vset.pattern.permute.xlu0 21
        %3304 = vperm.xlu0 %3303, %v3262
        %v3305 = vpop.permute.xlu0 %3304
        %3308 = vset.pattern.permute.xlu0 21
        %3309 = vperm.xlu0 %3308, %v3263
        %v3310 = vpop.permute.xlu0 %3309
        %3313 = vset.pattern.permute.xlu0 21
        %3314 = vperm.xlu0 %3313, %v3264
        %v3315 = vpop.permute.xlu0 %3314
        %3318 = vset.pattern.permute.xlu0 21
        %3319 = vperm.xlu0 %3318, %v3265
        %v3320 = vpop.permute.xlu0 %3319
        %3323 = vset.pattern.permute.xlu0 21
        %3324 = vperm.xlu0 %3323, %v3266
        %v3325 = vpop.permute.xlu0 %3324
        %v3327 = vmul.f32 %v3280, %v3267
        %v3328 = vmul.f32 %v3285, %v3268
        %v3329 = vmul.f32 %v3290, %v3269
        %v3330 = vmul.f32 %v3295, %v3270
        %v3331 = vmul.f32 %v3300, %v3271
        %v3332 = vmul.f32 %v3305, %v3272
        %v3333 = vmul.f32 %v3310, %v3273
        %v3334 = vmul.f32 %v3315, %v3274
        %v3335 = vmul.f32 %v3320, %v3275
        %v3336 = vmul.f32 %v3325, %v3276
        %v3337 = vadd.f32 %v3247, %v3327
        %v3338 = vadd.f32 %v3248, %v3328
        %v3339 = vadd.f32 %v3249, %v3329
        %v3340 = vadd.f32 %v3250, %v3330
        %v3341 = vadd.f32 %v3251, %v3331
        %v3342 = vadd.f32 %v3252, %v3332
        %v3343 = vadd.f32 %v3253, %v3333
        %v3344 = vadd.f32 %v3254, %v3334
        %v3345 = vadd.f32 %v3255, %v3335
        %v3346 = vadd.f32 %v3256, %v3336
        %3347 = vrot.lane.b32.xlu0 %v3337, 1
        %v3348 = vpop.permute.xlu0 %3347
        %3349 = vrot.lane.b32.xlu0 %v3338, 1
        %v3350 = vpop.permute.xlu0 %3349
        %3351 = vrot.lane.b32.xlu0 %v3339, 1
        %v3352 = vpop.permute.xlu0 %3351
        %3353 = vrot.lane.b32.xlu0 %v3340, 1
        %v3354 = vpop.permute.xlu0 %3353
        %3355 = vrot.lane.b32.xlu0 %v3341, 1
        %v3356 = vpop.permute.xlu0 %3355
        %3357 = vrot.lane.b32.xlu0 %v3342, 1
        %v3358 = vpop.permute.xlu0 %3357
        %3359 = vrot.lane.b32.xlu0 %v3343, 1
        %v3360 = vpop.permute.xlu0 %3359
        %3361 = vrot.lane.b32.xlu0 %v3344, 1
        %v3362 = vpop.permute.xlu0 %3361
        %3363 = vrot.lane.b32.xlu0 %v3345, 1
        %v3364 = vpop.permute.xlu0 %3363
        %3365 = vrot.lane.b32.xlu0 %v3346, 1
        %v3366 = vpop.permute.xlu0 %3365
        %3367 = vrot.lane.b32.xlu0 %v3337, 127
        %v3368 = vpop.permute.xlu0 %3367
        %3369 = vrot.lane.b32.xlu0 %v3338, 127
        %v3370 = vpop.permute.xlu0 %3369
        %3371 = vrot.lane.b32.xlu0 %v3339, 127
        %v3372 = vpop.permute.xlu0 %3371
        %3373 = vrot.lane.b32.xlu0 %v3340, 127
        %v3374 = vpop.permute.xlu0 %3373
        %3375 = vrot.lane.b32.xlu0 %v3341, 127
        %v3376 = vpop.permute.xlu0 %3375
        %3377 = vrot.lane.b32.xlu0 %v3342, 127
        %v3378 = vpop.permute.xlu0 %3377
        %3379 = vrot.lane.b32.xlu0 %v3343, 127
        %v3380 = vpop.permute.xlu0 %3379
        %3381 = vrot.lane.b32.xlu0 %v3344, 127
        %v3382 = vpop.permute.xlu0 %3381
        %3383 = vrot.lane.b32.xlu0 %v3345, 127
        %v3384 = vpop.permute.xlu0 %3383
        %3385 = vrot.lane.b32.xlu0 %v3346, 127
        %v3386 = vpop.permute.xlu0 %3385
        %3388 = vset.pattern.permute.xlu0 22
        %3389 = vperm.xlu0 %3388, %v2738
        %v3390 = vpop.permute.xlu0 %3389
        %3393 = vset.pattern.permute.xlu0 22
        %3394 = vperm.xlu0 %3393, %v2739
        %v3395 = vpop.permute.xlu0 %3394
        %3398 = vset.pattern.permute.xlu0 22
        %3399 = vperm.xlu0 %3398, %v2740
        %v3400 = vpop.permute.xlu0 %3399
        %3403 = vset.pattern.permute.xlu0 22
        %3404 = vperm.xlu0 %3403, %v2741
        %v3405 = vpop.permute.xlu0 %3404
        %3408 = vset.pattern.permute.xlu0 22
        %3409 = vperm.xlu0 %3408, %v2742
        %v3410 = vpop.permute.xlu0 %3409
        %3413 = vset.pattern.permute.xlu0 22
        %3414 = vperm.xlu0 %3413, %v2743
        %v3415 = vpop.permute.xlu0 %3414
        %3418 = vset.pattern.permute.xlu0 22
        %3419 = vperm.xlu0 %3418, %v2744
        %v3420 = vpop.permute.xlu0 %3419
        %3423 = vset.pattern.permute.xlu0 22
        %3424 = vperm.xlu0 %3423, %v2745
        %v3425 = vpop.permute.xlu0 %3424
        %3428 = vset.pattern.permute.xlu0 22
        %3429 = vperm.xlu0 %3428, %v2746
        %v3430 = vpop.permute.xlu0 %3429
        %3433 = vset.pattern.permute.xlu0 22
        %3434 = vperm.xlu0 %3433, %v2747
        %v3435 = vpop.permute.xlu0 %3434
        %v3437 = vmul.f32 %v3348, %v3390
        %v3438 = vmul.f32 %v3350, %v3395
        %v3439 = vmul.f32 %v3352, %v3400
        %v3440 = vmul.f32 %v3354, %v3405
        %v3441 = vmul.f32 %v3356, %v3410
        %v3442 = vmul.f32 %v3358, %v3415
        %v3443 = vmul.f32 %v3360, %v3420
        %v3444 = vmul.f32 %v3362, %v3425
        %v3445 = vmul.f32 %v3364, %v3430
        %v3446 = vmul.f32 %v3366, %v3435
        %3447 = vset.pattern.permute.xlu0 23
        %3448 = vperm.xlu0 %3447, %v2738
        %v3449 = vpop.permute.xlu0 %3448
        %3451 = vset.pattern.permute.xlu0 23
        %3452 = vperm.xlu0 %3451, %v2739
        %v3453 = vpop.permute.xlu0 %3452
        %3455 = vset.pattern.permute.xlu0 23
        %3456 = vperm.xlu0 %3455, %v2740
        %v3457 = vpop.permute.xlu0 %3456
        %3459 = vset.pattern.permute.xlu0 23
        %3460 = vperm.xlu0 %3459, %v2741
        %v3461 = vpop.permute.xlu0 %3460
        %3463 = vset.pattern.permute.xlu0 23
        %3464 = vperm.xlu0 %3463, %v2742
        %v3465 = vpop.permute.xlu0 %3464
        %3467 = vset.pattern.permute.xlu0 23
        %3468 = vperm.xlu0 %3467, %v2743
        %v3469 = vpop.permute.xlu0 %3468
        %3471 = vset.pattern.permute.xlu0 23
        %3472 = vperm.xlu0 %3471, %v2744
        %v3473 = vpop.permute.xlu0 %3472
        %3475 = vset.pattern.permute.xlu0 23
        %3476 = vperm.xlu0 %3475, %v2745
        %v3477 = vpop.permute.xlu0 %3476
        %3479 = vset.pattern.permute.xlu0 23
        %3480 = vperm.xlu0 %3479, %v2746
        %v3481 = vpop.permute.xlu0 %3480
        %3483 = vset.pattern.permute.xlu0 23
        %3484 = vperm.xlu0 %3483, %v2747
        %v3485 = vpop.permute.xlu0 %3484
        %v3487 = vmul.f32 %v3337, %v3449
        %v3488 = vmul.f32 %v3338, %v3453
        %v3489 = vmul.f32 %v3339, %v3457
        %v3490 = vmul.f32 %v3340, %v3461
        %v3491 = vmul.f32 %v3341, %v3465
        %v3492 = vmul.f32 %v3342, %v3469
        %v3493 = vmul.f32 %v3343, %v3473
        %v3494 = vmul.f32 %v3344, %v3477
        %v3495 = vmul.f32 %v3345, %v3481
        %v3496 = vmul.f32 %v3346, %v3485
        %v3497 = vadd.f32 %v3437, %v3487
        %v3498 = vadd.f32 %v3438, %v3488
        %v3499 = vadd.f32 %v3439, %v3489
        %v3500 = vadd.f32 %v3440, %v3490
        %v3501 = vadd.f32 %v3441, %v3491
        %v3502 = vadd.f32 %v3442, %v3492
        %v3503 = vadd.f32 %v3443, %v3493
        %v3504 = vadd.f32 %v3444, %v3494
        %v3505 = vadd.f32 %v3445, %v3495
        %v3506 = vadd.f32 %v3446, %v3496
        %3507 = vset.pattern.permute.xlu0 24
        %3508 = vperm.xlu0 %3507, %v2738
        %v3509 = vpop.permute.xlu0 %3508
        %3511 = vset.pattern.permute.xlu0 24
        %3512 = vperm.xlu0 %3511, %v2739
        %v3513 = vpop.permute.xlu0 %3512
        %3515 = vset.pattern.permute.xlu0 24
        %3516 = vperm.xlu0 %3515, %v2740
        %v3517 = vpop.permute.xlu0 %3516
        %3519 = vset.pattern.permute.xlu0 24
        %3520 = vperm.xlu0 %3519, %v2741
        %v3521 = vpop.permute.xlu0 %3520
        %3523 = vset.pattern.permute.xlu0 24
        %3524 = vperm.xlu0 %3523, %v2742
        %v3525 = vpop.permute.xlu0 %3524
        %3527 = vset.pattern.permute.xlu0 24
        %3528 = vperm.xlu0 %3527, %v2743
        %v3529 = vpop.permute.xlu0 %3528
        %3531 = vset.pattern.permute.xlu0 24
        %3532 = vperm.xlu0 %3531, %v2744
        %v3533 = vpop.permute.xlu0 %3532
        %3535 = vset.pattern.permute.xlu0 24
        %3536 = vperm.xlu0 %3535, %v2745
        %v3537 = vpop.permute.xlu0 %3536
        %3539 = vset.pattern.permute.xlu0 24
        %3540 = vperm.xlu0 %3539, %v2746
        %v3541 = vpop.permute.xlu0 %3540
        %3543 = vset.pattern.permute.xlu0 24
        %3544 = vperm.xlu0 %3543, %v2747
        %v3545 = vpop.permute.xlu0 %3544
        %v3547 = vmul.f32 %v3368, %v3509
        %v3548 = vmul.f32 %v3370, %v3513
        %v3549 = vmul.f32 %v3372, %v3517
        %v3550 = vmul.f32 %v3374, %v3521
        %v3551 = vmul.f32 %v3376, %v3525
        %v3552 = vmul.f32 %v3378, %v3529
        %v3553 = vmul.f32 %v3380, %v3533
        %v3554 = vmul.f32 %v3382, %v3537
        %v3555 = vmul.f32 %v3384, %v3541
        %v3556 = vmul.f32 %v3386, %v3545
        %v3557 = vadd.f32 %v3497, %v3547
        %v3558 = vadd.f32 %v3498, %v3548
        %v3559 = vadd.f32 %v3499, %v3549
        %v3560 = vadd.f32 %v3500, %v3550
        %v3561 = vadd.f32 %v3501, %v3551
        %v3562 = vadd.f32 %v3502, %v3552
        %v3563 = vadd.f32 %v3503, %v3553
        %v3564 = vadd.f32 %v3504, %v3554
        %v3565 = vadd.f32 %v3505, %v3555
        %v3566 = vadd.f32 %v3506, %v3556
        %v3567 = vadd.f32 %v3557, 1e-30
        %v3568 = vadd.f32 %v3558, 1e-30
        %v3569 = vadd.f32 %v3559, 1e-30
        %v3570 = vadd.f32 %v3560, 1e-30
        %v3571 = vadd.f32 %v3561, 1e-30
        %v3572 = vadd.f32 %v3562, 1e-30
        %v3573 = vadd.f32 %v3563, 1e-30
        %v3574 = vadd.f32 %v3564, 1e-30
        %v3575 = vadd.f32 %v3565, 1e-30
        %v3576 = vadd.f32 %v3566, 1e-30
        %v3577 = vlog2.pop %v3567
        %v3578 = vmul.f32 %v3577, 0.6931472
        %v3579 = vlog2.pop %v3568
        %v3580 = vmul.f32 %v3579, 0.6931472
        %v3581 = vlog2.pop %v3569
        %v3582 = vmul.f32 %v3581, 0.6931472
        %v3583 = vlog2.pop %v3570
        %v3584 = vmul.f32 %v3583, 0.6931472
        %v3585 = vlog2.pop %v3571
        %v3586 = vmul.f32 %v3585, 0.6931472
        %v3587 = vlog2.pop %v3572
        %v3588 = vmul.f32 %v3587, 0.6931472
        %v3589 = vlog2.pop %v3573
        %v3590 = vmul.f32 %v3589, 0.6931472
        %v3591 = vlog2.pop %v3574
        %v3592 = vmul.f32 %v3591, 0.6931472
        %v3593 = vlog2.pop %v3575
        %v3594 = vmul.f32 %v3593, 0.6931472
        %v3595 = vlog2.pop %v3576
        %v3596 = vmul.f32 %v3595, 0.6931472
        %3598 = vset.pattern.permute.xlu0 25
        %3599 = vperm.xlu0 %3598, %v2748
        %v3600 = vpop.permute.xlu0 %3599
        %3603 = vset.pattern.permute.xlu0 25
        %3604 = vperm.xlu0 %3603, %v2749
        %v3605 = vpop.permute.xlu0 %3604
        %3608 = vset.pattern.permute.xlu0 25
        %3609 = vperm.xlu0 %3608, %v2750
        %v3610 = vpop.permute.xlu0 %3609
        %3613 = vset.pattern.permute.xlu0 25
        %3614 = vperm.xlu0 %3613, %v2751
        %v3615 = vpop.permute.xlu0 %3614
        %3618 = vset.pattern.permute.xlu0 25
        %3619 = vperm.xlu0 %3618, %v2752
        %v3620 = vpop.permute.xlu0 %3619
        %3623 = vset.pattern.permute.xlu0 25
        %3624 = vperm.xlu0 %3623, %v2753
        %v3625 = vpop.permute.xlu0 %3624
        %3628 = vset.pattern.permute.xlu0 25
        %3629 = vperm.xlu0 %3628, %v2754
        %v3630 = vpop.permute.xlu0 %3629
        %3633 = vset.pattern.permute.xlu0 25
        %3634 = vperm.xlu0 %3633, %v2755
        %v3635 = vpop.permute.xlu0 %3634
        %3638 = vset.pattern.permute.xlu0 25
        %3639 = vperm.xlu0 %3638, %v2756
        %v3640 = vpop.permute.xlu0 %3639
        %3643 = vset.pattern.permute.xlu0 25
        %3644 = vperm.xlu0 %3643, %v2757
        %v3645 = vpop.permute.xlu0 %3644
        %v3647 = vmul.f32 %v3600, %v3578
        %v3648 = vmul.f32 %v3605, %v3580
        %v3649 = vmul.f32 %v3610, %v3582
        %v3650 = vmul.f32 %v3615, %v3584
        %v3651 = vmul.f32 %v3620, %v3586
        %v3652 = vmul.f32 %v3625, %v3588
        %v3653 = vmul.f32 %v3630, %v3590
        %v3654 = vmul.f32 %v3635, %v3592
        %v3655 = vmul.f32 %v3640, %v3594
        %v3656 = vmul.f32 %v3645, %v3596
        %v3657 = vmul.f32 %v3647, 1.442695
        %v3658 = vpow.pop %v3657
        %v3659 = vmul.f32 %v3648, 1.442695
        %v3660 = vpow.pop %v3659
        %v3661 = vmul.f32 %v3649, 1.442695
        %v3662 = vpow.pop %v3661
        %v3663 = vmul.f32 %v3650, 1.442695
        %v3664 = vpow.pop %v3663
        %v3665 = vmul.f32 %v3651, 1.442695
        %v3666 = vpow.pop %v3665
        %v3667 = vmul.f32 %v3652, 1.442695
        %v3668 = vpow.pop %v3667
        %v3669 = vmul.f32 %v3653, 1.442695
        %v3670 = vpow.pop %v3669
        %v3671 = vmul.f32 %v3654, 1.442695
        %v3672 = vpow.pop %v3671
        %v3673 = vmul.f32 %v3655, 1.442695
        %v3674 = vpow.pop %v3673
        %v3675 = vmul.f32 %v3656, 1.442695
        %v3676 = vpow.pop %v3675
        %3677 = vadd.xlane.f32.xlu0 %v3658
        %v3678 = vpop.xlane.xlu0 %3677
        %3679 = vadd.xlane.f32.xlu0 %v3660
        %v3680 = vpop.xlane.xlu0 %3679
        %3681 = vadd.xlane.f32.xlu0 %v3662
        %v3682 = vpop.xlane.xlu0 %3681
        %3683 = vadd.xlane.f32.xlu0 %v3664
        %v3684 = vpop.xlane.xlu0 %3683
        %3685 = vadd.xlane.f32.xlu0 %v3666
        %v3686 = vpop.xlane.xlu0 %3685
        %3687 = vadd.xlane.f32.xlu0 %v3668
        %v3688 = vpop.xlane.xlu0 %3687
        %3689 = vadd.xlane.f32.xlu0 %v3670
        %v3690 = vpop.xlane.xlu0 %3689
        %3691 = vadd.xlane.f32.xlu0 %v3672
        %v3692 = vpop.xlane.xlu0 %3691
        %3693 = vadd.xlane.f32.xlu0 %v3674
        %v3694 = vpop.xlane.xlu0 %3693
        %3695 = vadd.xlane.f32.xlu0 %v3676
        %v3696 = vpop.xlane.xlu0 %3695
        %v3697 = vadd.f32 %v3678, 1e-16
        %v3698 = vadd.f32 %v3680, 1e-16
        %v3699 = vadd.f32 %v3682, 1e-16
        %v3700 = vadd.f32 %v3684, 1e-16
        %v3701 = vadd.f32 %v3686, 1e-16
        %v3702 = vadd.f32 %v3688, 1e-16
        %v3703 = vadd.f32 %v3690, 1e-16
        %v3704 = vadd.f32 %v3692, 1e-16
        %v3705 = vadd.f32 %v3694, 1e-16
        %v3706 = vadd.f32 %v3696, 1e-16
        %v3707 = vrcp.pop %v3697
        %v3708 = vrcp.pop %v3698
        %v3709 = vrcp.pop %v3699
        %v3710 = vrcp.pop %v3700
        %v3711 = vrcp.pop %v3701
        %v3712 = vrcp.pop %v3702
        %v3713 = vrcp.pop %v3703
        %v3714 = vrcp.pop %v3704
        %v3715 = vrcp.pop %v3705
        %v3716 = vrcp.pop %v3706
        %v3717 = vmul.f32 %v3658, %v3707
        %v3718 = vmul.f32 %v3660, %v3708
        %v3719 = vmul.f32 %v3662, %v3709
        %v3720 = vmul.f32 %v3664, %v3710
        %v3721 = vmul.f32 %v3666, %v3711
        %v3722 = vmul.f32 %v3668, %v3712
        %v3723 = vmul.f32 %v3670, %v3713
        %v3724 = vmul.f32 %v3672, %v3714
        %v3725 = vmul.f32 %v3674, %v3715
        %v3726 = vmul.f32 %v3676, %v3716
        %v3727 = vld [vmem:[%s12] sm:$0xff]
        %v3728 = vld [vmem:[%s12 + $0x8] sm:$0xff]
        %v3729 = vld [vmem:[%s12 + $0x10] sm:$0xff]
        %v3730 = vld [vmem:[%s12 + $0x18] sm:$0xff]
        %v3731 = vld [vmem:[%s12 + $0x20] sm:$0xff]
        %v3732 = vld [vmem:[%s12 + $0x28] sm:$0xff]
        %v3733 = vld [vmem:[%s12 + $0x30] sm:$0xff]
        %v3734 = vld [vmem:[%s12 + $0x38] sm:$0xff]
        %v3735 = vld [vmem:[%s12 + $0x40] sm:$0xff]
        %v3736 = vld [vmem:[%s12 + $0x48] sm:$0xff]
        %v3737 = vld [vmem:[%s12 + $0x50] sm:$0xff]
        %v3738 = vld [vmem:[%s12 + $0x58] sm:$0xff]
        %v3739 = vld [vmem:[%s12 + $0x60] sm:$0xff]
        %v3740 = vld [vmem:[%s12 + $0x68] sm:$0xff]
        %v3741 = vld [vmem:[%s12 + $0x70] sm:$0xff]
        %v3742 = vld [vmem:[%s12 + $0x78] sm:$0xff]
        %3743 = vmatpush.msra.mxu0 %v3742
        %3744 = vmatpush.msra.mxu0 %v3741
        %3745 = vmatpush.msra.mxu0 %v3740
        %3746 = vmatpush.msra.mxu0 %v3739
        %3747 = vmatpush.msra.mxu0 %v3738
        %3748 = vmatpush.msra.mxu0 %v3737
        %3749 = vmatpush.msra.mxu0 %v3736
        %3750 = vmatpush.msra.mxu0 %v3735
        %3751 = vmatpush.msra.mxu0 %v3734
        %3752 = vmatpush.msra.mxu0 %v3733
        %3753 = vmatpush.msra.mxu0 %v3732
        %3754 = vmatpush.msra.mxu0 %v3731
        %3755 = vmatpush.msra.mxu0 %v3730
        %3756 = vmatpush.msra.mxu0 %v3729
        %3757 = vmatpush.msra.mxu0 %v3728
        %3758 = vmatpush.msra.mxu0 %v3727
        %3759 = vmatmul.f32.gmra.mxu0 %v3717
        %v3760 = vpop.f32.mrf.mxu0
        %v3761 = vadd.f32 0.0, %v3760
        %3762 = vmatmul.f32.gmra.mxu0 %v3718
        %v3763 = vpop.f32.mrf.mxu0
        %v3764 = vadd.f32 0.0, %v3763
        %3765 = vmatmul.f32.gmra.mxu0 %v3719
        %v3766 = vpop.f32.mrf.mxu0
        %v3767 = vadd.f32 0.0, %v3766
        %3768 = vmatmul.f32.gmra.mxu0 %v3720
        %v3769 = vpop.f32.mrf.mxu0
        %v3770 = vadd.f32 0.0, %v3769
        %3771 = vmatmul.f32.gmra.mxu0 %v3721
        %v3772 = vpop.f32.mrf.mxu0
        %v3773 = vadd.f32 0.0, %v3772
        %3774 = vmatmul.f32.gmra.mxu0 %v3722
        %v3775 = vpop.f32.mrf.mxu0
        %v3776 = vadd.f32 0.0, %v3775
        %3777 = vmatmul.f32.gmra.mxu0 %v3723
        %v3778 = vpop.f32.mrf.mxu0
        %v3779 = vadd.f32 0.0, %v3778
        %3780 = vmatmul.f32.gmra.mxu0 %v3724
        %v3781 = vpop.f32.mrf.mxu0
        %v3782 = vadd.f32 0.0, %v3781
        %3783 = vmatmul.f32.gmra.mxu0 %v3725
        %v3784 = vpop.f32.mrf.mxu0
        %v3785 = vadd.f32 0.0, %v3784
        %3786 = vmatmul.f32.gmra.mxu0 %v3726
        %v3787 = vpop.f32.mrf.mxu0
        %v3788 = vadd.f32 0.0, %v3787
        %3789 = vdwg.mxu0
        %v3790 = vld [vmem:[#allocation13] sm:$0xff]
        %v3791 = vld [vmem:[#allocation13 + $0x8] sm:$0xff]
        %v3792 = vld [vmem:[#allocation13 + $0x10] sm:$0xf]
        %v3794 = vsel %vm2761, %v3761, 0
        %v3797 = vsel %vm2761, %v3764, 0
        %v3800 = vsel %vm2761, %v3767, 0
        %v3803 = vsel %vm2761, %v3770, 0
        %v3806 = vsel %vm2761, %v3773, 0
        %v3809 = vsel %vm2761, %v3776, 0
        %v3812 = vsel %vm2761, %v3779, 0
        %v3815 = vsel %vm2761, %v3782, 0
        %v3818 = vsel %vm2761, %v3785, 0
        %v3821 = vsel %vm2761, %v3788, 0
        %v3824 = vsel %vm2792, %v3792, 0
        %3826 = vmatpush.msra.mxu0 0.0
        %3827 = vmatpush.msra.mxu0 0.0
        %3828 = vmatpush.msra.mxu0 0.0
        %3829 = vmatpush.msra.mxu0 0.0
        %3830 = vmatpush.msra.mxu0 0.0
        %3831 = vmatpush.msra.mxu0 0.0
        %3832 = vmatpush.msra.mxu0 0.0
        %3833 = vmatpush.msra.mxu0 0.0
        %3834 = vmatpush.msra.mxu0 0.0
        %3835 = vmatpush.msra.mxu0 0.0
        %3836 = vmatpush.msra.mxu0 0.0
        %3837 = vmatpush.msra.mxu0 0.0
        %3838 = vmatpush.msra.mxu0 0.0
        %3839 = vmatpush.msra.mxu0 %v3824
        %3840 = vmatpush.msra.mxu0 %v3791
        %3841 = vmatpush.msra.mxu0 %v3790
        %3842 = vmatmul.f32.gmra.mxu0 %v3794
        %v3843 = vpop.f32.mrf.mxu0
        %v3844 = vadd.f32 0.0, %v3843
        %3845 = vmatmul.f32.gmra.mxu0 %v3797
        %v3846 = vpop.f32.mrf.mxu0
        %v3847 = vadd.f32 0.0, %v3846
        %3848 = vmatmul.f32.gmra.mxu0 %v3800
        %v3849 = vpop.f32.mrf.mxu0
        %v3850 = vadd.f32 0.0, %v3849
        %3851 = vmatmul.f32.gmra.mxu0 %v3803
        %v3852 = vpop.f32.mrf.mxu0
        %v3853 = vadd.f32 0.0, %v3852
        %3854 = vmatmul.f32.gmra.mxu0 %v3806
        %v3855 = vpop.f32.mrf.mxu0
        %v3856 = vadd.f32 0.0, %v3855
        %3857 = vmatmul.f32.gmra.mxu0 %v3809
        %v3858 = vpop.f32.mrf.mxu0
        %v3859 = vadd.f32 0.0, %v3858
        %3860 = vmatmul.f32.gmra.mxu0 %v3812
        %v3861 = vpop.f32.mrf.mxu0
        %v3862 = vadd.f32 0.0, %v3861
        %3863 = vmatmul.f32.gmra.mxu0 %v3815
        %v3864 = vpop.f32.mrf.mxu0
        %v3865 = vadd.f32 0.0, %v3864
        %3866 = vmatmul.f32.gmra.mxu0 %v3818
        %v3867 = vpop.f32.mrf.mxu0
        %v3868 = vadd.f32 0.0, %v3867
        %3869 = vmatmul.f32.gmra.mxu0 %v3821
        %v3870 = vpop.f32.mrf.mxu0
        %v3871 = vadd.f32 0.0, %v3870
        %3872 = vdwg.mxu0
        %v3873 = vadd.f32 %v2187, %v3844
        %v3874 = vadd.f32 %v2190, %v3847
        %v3875 = vadd.f32 %v2193, %v3850
        %v3876 = vadd.f32 %v2196, %v3853
        %v3877 = vadd.f32 %v2199, %v3856
        %v3878 = vadd.f32 %v2202, %v3859
        %v3879 = vadd.f32 %v2205, %v3862
        %v3880 = vadd.f32 %v2208, %v3865
        %v3881 = vadd.f32 %v2211, %v3868
        %v3882 = vadd.f32 %v2214, %v3871
        %v3883 = vsub.f32 0.0, %v3873
        %v3884 = vsub.f32 0.0, %v3874
        %v3885 = vsub.f32 0.0, %v3875
        %v3886 = vsub.f32 0.0, %v3876
        %v3887 = vsub.f32 0.0, %v3877
        %v3888 = vsub.f32 0.0, %v3878
        %v3889 = vsub.f32 0.0, %v3879
        %v3890 = vsub.f32 0.0, %v3880
        %v3891 = vsub.f32 0.0, %v3881
        %v3892 = vsub.f32 0.0, %v3882
        %v3893 = vmul.f32 %v3883, 1.442695
        %v3894 = vpow.pop %v3893
        %v3895 = vmul.f32 %v3884, 1.442695
        %v3896 = vpow.pop %v3895
        %v3897 = vmul.f32 %v3885, 1.442695
        %v3898 = vpow.pop %v3897
        %v3899 = vmul.f32 %v3886, 1.442695
        %v3900 = vpow.pop %v3899
        %v3901 = vmul.f32 %v3887, 1.442695
        %v3902 = vpow.pop %v3901
        %v3903 = vmul.f32 %v3888, 1.442695
        %v3904 = vpow.pop %v3903
        %v3905 = vmul.f32 %v3889, 1.442695
        %v3906 = vpow.pop %v3905
        %v3907 = vmul.f32 %v3890, 1.442695
        %v3908 = vpow.pop %v3907
        %v3909 = vmul.f32 %v3891, 1.442695
        %v3910 = vpow.pop %v3909
        %v3911 = vmul.f32 %v3892, 1.442695
        %v3912 = vpow.pop %v3911
        %v3913 = vadd.f32 %v3894, 1.0
        %v3914 = vadd.f32 %v3896, 1.0
        %v3915 = vadd.f32 %v3898, 1.0
        %v3916 = vadd.f32 %v3900, 1.0
        %v3917 = vadd.f32 %v3902, 1.0
        %v3918 = vadd.f32 %v3904, 1.0
        %v3919 = vadd.f32 %v3906, 1.0
        %v3920 = vadd.f32 %v3908, 1.0
        %v3921 = vadd.f32 %v3910, 1.0
        %v3922 = vadd.f32 %v3912, 1.0
        %v3923 = vrcp.pop %v3913
        %v3924 = vmul.f32 %v3913, %v3923
        %v3925 = vsub.f32 1.0, %v3924
        %v3926 = vmul.f32 %v3923, %v3925
        %v3927 = vadd.f32 %v3923, %v3926
        %vm3928 = vweird.f32 %v3913
        %vm3929 = vweird.f32 %v3923
        %vm3930 = vmor %vm3928, %vm3929
        %v3931 = vsel %vm3930, %v3923, %v3927
        %v3932 = vand.u32 2147483647, %v3913
        %vm3933 = vcmp.eq.f32.partialorder %v3932, 8.507059e+37
        %v3934 = vand.u32 %v3913, 2147483648
        %v3935 = vor.u32 1.1754944e-38, %v3934
        %v3936 = vsel %vm3933, %v3935, %v3931
        %v3937 = vmul.f32 1.0, %v3936
        %v3938 = vrcp.pop %v3914
        %v3939 = vmul.f32 %v3914, %v3938
        %v3940 = vsub.f32 1.0, %v3939
        %v3941 = vmul.f32 %v3938, %v3940
        %v3942 = vadd.f32 %v3938, %v3941
        %vm3943 = vweird.f32 %v3914
        %vm3944 = vweird.f32 %v3938
        %vm3945 = vmor %vm3943, %vm3944
        %v3946 = vsel %vm3945, %v3938, %v3942
        %v3947 = vand.u32 2147483647, %v3914
        %vm3948 = vcmp.eq.f32.partialorder %v3947, 8.507059e+37
        %v3949 = vand.u32 %v3914, 2147483648
        %v3950 = vor.u32 1.1754944e-38, %v3949
        %v3951 = vsel %vm3948, %v3950, %v3946
        %v3952 = vmul.f32 1.0, %v3951
        %v3953 = vrcp.pop %v3915
        %v3954 = vmul.f32 %v3915, %v3953
        %v3955 = vsub.f32 1.0, %v3954
        %v3956 = vmul.f32 %v3953, %v3955
        %v3957 = vadd.f32 %v3953, %v3956
        %vm3958 = vweird.f32 %v3915
        %vm3959 = vweird.f32 %v3953
        %vm3960 = vmor %vm3958, %vm3959
        %v3961 = vsel %vm3960, %v3953, %v3957
        %v3962 = vand.u32 2147483647, %v3915
        %vm3963 = vcmp.eq.f32.partialorder %v3962, 8.507059e+37
        %v3964 = vand.u32 %v3915, 2147483648
        %v3965 = vor.u32 1.1754944e-38, %v3964
        %v3966 = vsel %vm3963, %v3965, %v3961
        %v3967 = vmul.f32 1.0, %v3966
        %v3968 = vrcp.pop %v3916
        %v3969 = vmul.f32 %v3916, %v3968
        %v3970 = vsub.f32 1.0, %v3969
        %v3971 = vmul.f32 %v3968, %v3970
        %v3972 = vadd.f32 %v3968, %v3971
        %vm3973 = vweird.f32 %v3916
        %vm3974 = vweird.f32 %v3968
        %vm3975 = vmor %vm3973, %vm3974
        %v3976 = vsel %vm3975, %v3968, %v3972
        %v3977 = vand.u32 2147483647, %v3916
        %vm3978 = vcmp.eq.f32.partialorder %v3977, 8.507059e+37
        %v3979 = vand.u32 %v3916, 2147483648
        %v3980 = vor.u32 1.1754944e-38, %v3979
        %v3981 = vsel %vm3978, %v3980, %v3976
        %v3982 = vmul.f32 1.0, %v3981
        %v3983 = vrcp.pop %v3917
        %v3984 = vmul.f32 %v3917, %v3983
        %v3985 = vsub.f32 1.0, %v3984
        %v3986 = vmul.f32 %v3983, %v3985
        %v3987 = vadd.f32 %v3983, %v3986
        %vm3988 = vweird.f32 %v3917
        %vm3989 = vweird.f32 %v3983
        %vm3990 = vmor %vm3988, %vm3989
        %v3991 = vsel %vm3990, %v3983, %v3987
        %v3992 = vand.u32 2147483647, %v3917
        %vm3993 = vcmp.eq.f32.partialorder %v3992, 8.507059e+37
        %v3994 = vand.u32 %v3917, 2147483648
        %v3995 = vor.u32 1.1754944e-38, %v3994
        %v3996 = vsel %vm3993, %v3995, %v3991
        %v3997 = vmul.f32 1.0, %v3996
        %v3998 = vrcp.pop %v3918
        %v3999 = vmul.f32 %v3918, %v3998
        %v4000 = vsub.f32 1.0, %v3999
        %v4001 = vmul.f32 %v3998, %v4000
        %v4002 = vadd.f32 %v3998, %v4001
        %vm4003 = vweird.f32 %v3918
        %vm4004 = vweird.f32 %v3998
        %vm4005 = vmor %vm4003, %vm4004
        %v4006 = vsel %vm4005, %v3998, %v4002
        %v4007 = vand.u32 2147483647, %v3918
        %vm4008 = vcmp.eq.f32.partialorder %v4007, 8.507059e+37
        %v4009 = vand.u32 %v3918, 2147483648
        %v4010 = vor.u32 1.1754944e-38, %v4009
        %v4011 = vsel %vm4008, %v4010, %v4006
        %v4012 = vmul.f32 1.0, %v4011
        %v4013 = vrcp.pop %v3919
        %v4014 = vmul.f32 %v3919, %v4013
        %v4015 = vsub.f32 1.0, %v4014
        %v4016 = vmul.f32 %v4013, %v4015
        %v4017 = vadd.f32 %v4013, %v4016
        %vm4018 = vweird.f32 %v3919
        %vm4019 = vweird.f32 %v4013
        %vm4020 = vmor %vm4018, %vm4019
        %v4021 = vsel %vm4020, %v4013, %v4017
        %v4022 = vand.u32 2147483647, %v3919
        %vm4023 = vcmp.eq.f32.partialorder %v4022, 8.507059e+37
        %v4024 = vand.u32 %v3919, 2147483648
        %v4025 = vor.u32 1.1754944e-38, %v4024
        %v4026 = vsel %vm4023, %v4025, %v4021
        %v4027 = vmul.f32 1.0, %v4026
        %v4028 = vrcp.pop %v3920
        %v4029 = vmul.f32 %v3920, %v4028
        %v4030 = vsub.f32 1.0, %v4029
        %v4031 = vmul.f32 %v4028, %v4030
        %v4032 = vadd.f32 %v4028, %v4031
        %vm4033 = vweird.f32 %v3920
        %vm4034 = vweird.f32 %v4028
        %vm4035 = vmor %vm4033, %vm4034
        %v4036 = vsel %vm4035, %v4028, %v4032
        %v4037 = vand.u32 2147483647, %v3920
        %vm4038 = vcmp.eq.f32.partialorder %v4037, 8.507059e+37
        %v4039 = vand.u32 %v3920, 2147483648
        %v4040 = vor.u32 1.1754944e-38, %v4039
        %v4041 = vsel %vm4038, %v4040, %v4036
        %v4042 = vmul.f32 1.0, %v4041
        %v4043 = vrcp.pop %v3921
        %v4044 = vmul.f32 %v3921, %v4043
        %v4045 = vsub.f32 1.0, %v4044
        %v4046 = vmul.f32 %v4043, %v4045
        %v4047 = vadd.f32 %v4043, %v4046
        %vm4048 = vweird.f32 %v3921
        %vm4049 = vweird.f32 %v4043
        %vm4050 = vmor %vm4048, %vm4049
        %v4051 = vsel %vm4050, %v4043, %v4047
        %v4052 = vand.u32 2147483647, %v3921
        %vm4053 = vcmp.eq.f32.partialorder %v4052, 8.507059e+37
        %v4054 = vand.u32 %v3921, 2147483648
        %v4055 = vor.u32 1.1754944e-38, %v4054
        %v4056 = vsel %vm4053, %v4055, %v4051
        %v4057 = vmul.f32 1.0, %v4056
        %v4058 = vrcp.pop %v3922
        %v4059 = vmul.f32 %v3922, %v4058
        %v4060 = vsub.f32 1.0, %v4059
        %v4061 = vmul.f32 %v4058, %v4060
        %v4062 = vadd.f32 %v4058, %v4061
        %vm4063 = vweird.f32 %v3922
        %vm4064 = vweird.f32 %v4058
        %vm4065 = vmor %vm4063, %vm4064
        %v4066 = vsel %vm4065, %v4058, %v4062
        %v4067 = vand.u32 2147483647, %v3922
        %vm4068 = vcmp.eq.f32.partialorder %v4067, 8.507059e+37
        %v4069 = vand.u32 %v3922, 2147483648
        %v4070 = vor.u32 1.1754944e-38, %v4069
        %v4071 = vsel %vm4068, %v4070, %v4066
        %v4072 = vmul.f32 1.0, %v4071
        %4073 = vst [vmem:[%s748] sm:$0xff] %v3937
        %4074 = vst [vmem:[%s748 + $0x8] sm:$0xff] %v3952
        %4075 = vst [vmem:[%s748 + $0x10] sm:$0xff] %v3967
        %4076 = vst [vmem:[%s748 + $0x18] sm:$0xff] %v3982
        %4077 = vst [vmem:[%s748 + $0x20] sm:$0xff] %v3997
        %4078 = vst [vmem:[%s748 + $0x28] sm:$0xff] %v4012
        %4079 = vst [vmem:[%s748 + $0x30] sm:$0xff] %v4027
        %4080 = vst [vmem:[%s748 + $0x38] sm:$0xff] %v4042
        %4081 = vst [vmem:[%s748 + $0x40] sm:$0xff] %v4057
        %4082 = vst [vmem:[%s748 + $0x48] sm:$0xff] %v4072
        %4083 = vst [vmem:[%s755] sm:$0xff] %v2074
        %4084 = vst [vmem:[%s755 + $0x8] sm:$0xff] %v2075
        %4085 = vst [vmem:[%s755 + $0x10] sm:$0xff] %v2076
        %4086 = vst [vmem:[%s755 + $0x18] sm:$0xff] %v2077
        %4087 = vst [vmem:[%s755 + $0x20] sm:$0xff] %v2078
        %4088 = vst [vmem:[%s755 + $0x28] sm:$0xff] %v2079
        %4089 = vst [vmem:[%s755 + $0x30] sm:$0xff] %v2080
        %4090 = vst [vmem:[%s755 + $0x38] sm:$0xff] %v2081
        %4091 = vst [vmem:[%s755 + $0x40] sm:$0xff] %v2082
        %4092 = vst [vmem:[%s755 + $0x48] sm:$0xff] %v2083
        %4093 = vst [vmem:[%s762] sm:$0xff] %v2054
        %4094 = vst [vmem:[%s762 + $0x8] sm:$0xff] %v2055
        %4095 = vst [vmem:[%s762 + $0x10] sm:$0xff] %v2056
        %4096 = vst [vmem:[%s762 + $0x18] sm:$0xff] %v2057
        %4097 = vst [vmem:[%s762 + $0x20] sm:$0xff] %v2058
        %4098 = vst [vmem:[%s762 + $0x28] sm:$0xff] %v2059
        %4099 = vst [vmem:[%s762 + $0x30] sm:$0xff] %v2060
        %4100 = vst [vmem:[%s762 + $0x38] sm:$0xff] %v2061
        %4101 = vst [vmem:[%s762 + $0x40] sm:$0xff] %v2062
        %4102 = vst [vmem:[%s762 + $0x48] sm:$0xff] %v2063
        %s4103 = sand.u32 %s387, 1
        %s4104 = scalar_lea.sflag [#allocation4], %s4103
        %s4105 = sand.u32 %s387, 1
        %s4106 = smul.addr %s4105, 80
        %s4107 = scalar_lea.vmem [#allocation16], %s4106
        %s4108 = sand.u32 %s44, 1
        %s4109 = scalar_lea.sflag [#allocation18], %s4108
        %s4110 = sand.u32 %s413, 1
        %s4111 = smul.addr %s4110, 80
        %s4112 = scalar_lea.vmem [#allocation17], %s4111
        %s4113 = sand.u32 %s44, 1
        %s4114 = scalar_lea.sflag [#allocation18], %s4113
        %s4115 = sand.u32 %s439, 1
        %s4116 = smul.addr %s4115, 80
        %s4117 = scalar_lea.vmem [#allocation19], %s4116
        // Predicated region
        $region113: #{tpu_custom_call.1} parent=79 // pred_check
          %p4118 = pneg %p397
        $region114: #{tpu_custom_call.1} parent=79 // pred_check_branch
          %4120 = sbr.rel (%p4118) target = $region116
        $region115: #{tpu_custom_call.1} parent=79 // pred_region
          %s4121 = smul.u32 10, %s44
          %4123 = vsyncadd %s4104, 0
          %s4124 = smul.addr %s4121, 8
          %s4125 = scalar_lea.hbm %s15, %s4124
          %s4126 = sshll.u32 %s4107, 4
          %s4127 = int_to_ptr.vmem [resolvable:$true] %s4126
          %s4128 = sshll.u32 %s4125, 4
          %s4129 = int_to_ptr.hbm [resolvable:$true] %s4128
          %4134 = dma.vmem_to_hbm [thread:$0]  %s4127, 1280, %s4129, %s4104, 128, 128, 8
        $region116: #{tpu_custom_call.1} parent=79 // pred_fallthru
          _
        // Predicated region
        $region117: #{tpu_custom_call.1} parent=79 // pred_check
          %p4135 = pneg %p423
        $region118: #{tpu_custom_call.1} parent=79 // pred_check_branch
          %4137 = sbr.rel (%p4135) target = $region120
        $region119: #{tpu_custom_call.1} parent=79 // pred_region
          %s4138 = smul.u32 10, %s44
          %4140 = vsyncadd %s4109, 0
          %s4141 = smul.addr %s4138, 8
          %s4142 = scalar_lea.hbm %s16, %s4141
          %s4143 = sshll.u32 %s4112, 4
          %s4144 = int_to_ptr.vmem [resolvable:$true] %s4143
          %s4145 = sshll.u32 %s4142, 4
          %s4146 = int_to_ptr.hbm [resolvable:$true] %s4145
          %4151 = dma.vmem_to_hbm [thread:$0]  %s4144, 1280, %s4146, %s4109, 128, 128, 8
        $region120: #{tpu_custom_call.1} parent=79 // pred_fallthru
          _
        // Predicated region
        $region121: #{tpu_custom_call.1} parent=79 // pred_check
          %p4152 = pneg %p449
        $region122: #{tpu_custom_call.1} parent=79 // pred_check_branch
          %4154 = sbr.rel (%p4152) target = $region124
        $region123: #{tpu_custom_call.1} parent=79 // pred_region
          %s4155 = smul.u32 10, %s44
          %4157 = vsyncadd %s4114, 0
          %s4158 = smul.addr %s4155, 8
          %s4159 = scalar_lea.hbm %s17, %s4158
          %s4160 = sshll.u32 %s4117, 4
          %s4161 = int_to_ptr.vmem [resolvable:$true] %s4160
          %s4162 = sshll.u32 %s4159, 4
          %s4163 = int_to_ptr.hbm [resolvable:$true] %s4162
          %4168 = dma.vmem_to_hbm [thread:$0]  %s4161, 1280, %s4163, %s4114, 128, 128, 8
        $region124: #{tpu_custom_call.1} parent=79 // pred_fallthru
          _
      $region80: #{tpu_custom_call.1} parent=5 // pred_fallthru
        _
      %p4169 = scmp.le.s32.totalorder 2, %s39
      // Predicated region
      $region125: #{tpu_custom_call.1} parent=5 // pred_check
        %p4170 = pneg %p4169
      $region126: #{tpu_custom_call.1} parent=5 // pred_check_branch
        %4172 = sbr.rel (%p4170) target = $region128
      $region127: #{tpu_custom_call.1} parent=5 // pred_region
        %s4173 = ssub.s32 %s39, 2
        // Predicated region
        $region129: #{tpu_custom_call.1} parent=127 // pred_check
          %p4174 = pneg %p403
        $region130: #{tpu_custom_call.1} parent=127 // pred_check_branch
          %4176 = sbr.rel (%p4174) target = $region132
        $region131: #{tpu_custom_call.1} parent=127 // pred_region
          %s4177 = sand.u32 %s388, 1
          %s4178 = scalar_lea.sflag [#allocation4], %s4177
          %s4179 = sand.u32 %s388, 1
          %s4180 = smul.addr %s4179, 80
          %s4181 = scalar_lea.vmem [#allocation16], %s4180
          %4183 = dma.done %s4178, 1280
        $region132: #{tpu_custom_call.1} parent=127 // pred_fallthru
          _
        // Predicated region
        $region133: #{tpu_custom_call.1} parent=127 // pred_check
          %p4184 = pneg %p429
        $region134: #{tpu_custom_call.1} parent=127 // pred_check_branch
          %4186 = sbr.rel (%p4184) target = $region136
        $region135: #{tpu_custom_call.1} parent=127 // pred_region
          %s4187 = sand.u32 %s45, 1
          %s4188 = scalar_lea.sflag [#allocation18], %s4187
          %s4189 = sand.u32 %s414, 1
          %s4190 = smul.addr %s4189, 80
          %s4191 = scalar_lea.vmem [#allocation17], %s4190
          %4193 = dma.done %s4188, 1280
        $region136: #{tpu_custom_call.1} parent=127 // pred_fallthru
          _
        // Predicated region
        $region137: #{tpu_custom_call.1} parent=127 // pred_check
          %p4194 = pneg %p455
        $region138: #{tpu_custom_call.1} parent=127 // pred_check_branch
          %4196 = sbr.rel (%p4194) target = $region140
        $region139: #{tpu_custom_call.1} parent=127 // pred_region
          %s4197 = sand.u32 %s45, 1
          %s4198 = scalar_lea.sflag [#allocation18], %s4197
          %s4199 = sand.u32 %s440, 1
          %s4200 = smul.addr %s4199, 80
          %s4201 = scalar_lea.vmem [#allocation19], %s4200
          %4203 = dma.done %s4198, 1280
        $region140: #{tpu_custom_call.1} parent=127 // pred_fallthru
          _
      $region128: #{tpu_custom_call.1} parent=5 // pred_fallthru
        _
    $region6: #{tpu_custom_call.1} parent=1 // loop_footer
      %s43 = sadd.s32 1, %s39
    $region7: #{tpu_custom_call.1} parent=1 // loop_footer_branch
      %38 = sbr.rel target = $region3
    $region8: #{tpu_custom_call.1} parent=1 // loop_exit
      _
    %4204 = vsyncpa [#allocation3], 1
    %s4205 = scalar_lea.sflag [#allocation3], 1
    %4206 = vsyncpa %s4205, 1
    %4207 = vsyncpa [#allocation6], 1
    %4208 = vsyncpa [#allocation9], 1
    %s4209 = scalar_lea.sflag [#allocation9], 1
    %4210 = vsyncpa %s4209, 1
    %4211 = vsyncpa [#allocation12], 1
    %4212 = vsyncpa [#allocation15], 1
    %s4213 = scalar_lea.sflag [#allocation15], 1
    %4214 = vsyncpa %s4213, 1
    %4215 = vsyncpa [#allocation4], 1
    %s4216 = scalar_lea.sflag [#allocation4], 1
    %4217 = vsyncpa %s4216, 1
    %4218 = vsyncpa [#allocation18], 1
    %s4219 = scalar_lea.sflag [#allocation18], 1
    %4220 = vsyncpa %s4219, 1

</llo_original>
